<compile_context>
chip_gen: v7x
topology: tpu7x:2x2x1
jax: 0.10.0
libtpu: 0.0.40
codegen_flags: <defaults>
</compile_context>

<pallas_src>
import functools

import jax
import jax.numpy as jnp
from jax.experimental import pallas as pl
from jax.experimental.pallas import tpu as pltpu

NEG_SLOPE = 0.01  # PyTorch LeakyReLU default


def _leaky_relu(v):
    return jnp.where(v > 0, v, NEG_SLOPE * v)


def _sage_en_kernel(x_aug_ref, adj_ref, ws_ref, w1_ref, w2_ref, w3_ref, bias_ref, out_ref,
                    *, nfeat, tm, hid1, hid2):
    i = pl.program_id(0)
    row0 = pl.multiple_of(i * tm, tm)

    x_aug = x_aug_ref[...]                         # (N, F+1) bf16, resident; last column == 1
    x_tile = x_aug_ref[pl.ds(row0, tm), :]         # (TM, F+1) rows handled by this grid step
    adj = adj_ref[...]                             # (TM, N) bf16 0/1 adjacency rows

    # --- SageConv aggregation: adj @ [x | 1] = [adj@x | degree] in a single MXU pass ---
    agg = jnp.dot(adj, x_aug, preferred_element_type=jnp.float32)     # (TM, F+1)
    deg = agg[:, nfeat:nfeat + 1]                                     # (TM, 1) exact row sums
    neigh = agg[:, :nfeat] / (deg + 1.0)                              # exact divide (matches torch)

    # proj(cat([x, neigh], -1)), bias=False.  One fused (2F, E) weight, statically sliced
    # (avoids an unaligned lane-dim concat); bf16 operands, f32 accumulation.
    ws = ws_ref[...]                                                  # (2F, E) bf16
    combined = (jnp.dot(x_tile[:, :nfeat], ws[:nfeat, :], preferred_element_type=jnp.float32)
                + jnp.dot(neigh.astype(jnp.bfloat16), ws[nfeat:, :],
                          preferred_element_type=jnp.float32))

    h = jnp.maximum(combined, 0.0)                 # F.relu
    # TODO(synk): F.dropout(p, training=True) omitted — eval()/inference semantics (identity).

    # --- MLP head: (Linear + LeakyReLU) x3; weights pre-transposed (in, out), bf16 operands ---
    bias = bias_ref[...]                           # (3, out_pad) f32 slab: b1 | b2 | b3(+poison)
    h1 = _leaky_relu(jnp.dot(h.astype(jnp.bfloat16), w1_ref[...],
                             preferred_element_type=jnp.float32) + bias[0:1, :hid1])
    h2 = _leaky_relu(jnp.dot(h1.astype(jnp.bfloat16), w2_ref[...],
                             preferred_element_type=jnp.float32) + bias[1:2, :hid2])
    h3 = _leaky_relu(jnp.dot(h2.astype(jnp.bfloat16), w3_ref[...],
                             preferred_element_type=jnp.float32) + bias[2:3, :])

    # --- softmax over dim=1: padded lanes carry a -1e30 bias -> exp() == 0, no mask needed ---
    m = jnp.max(h3, axis=1, keepdims=True)
    e = jnp.exp(h3 - m)
    s = jnp.sum(e, axis=1, keepdims=True)
    r = pl.reciprocal(s, approx=True)              # EUP slot
    r = r * (2.0 - s * r)                          # one Newton step on a (TM,1) column (~free)
    out_ref[...] = (e * r).astype(out_ref.dtype)


def _choose_row_tile(n, *, vmem_budget_bytes=16 * 1024 * 1024):
    """Largest row tile whose double-buffered bf16 adjacency stream fits the budget, preferring an
    even number of grid steps so v7x's two TensorCores split the 'parallel' axis evenly."""
    best = None
    for tm in (1024, 512, 256, 128, 64, 32, 16, 8):
        if tm > n or n % tm:
            continue
        if 2 * tm * n * 2 > vmem_budget_bytes:     # 2 buffers x (tm, n) x bf16
            continue
        if best is None:
            best = tm
        if (n // tm) % 2 == 0:
            return tm
    return best if best is not None else n


def sage_en_forward(x, adj, params, *, row_tile=None, vmem_limit_bytes=64 * 1024 * 1024):
    """Row-tiled pallas_call: grid over node-row blocks; weights + full x stay resident."""
    n, nfeat = x.shape
    assert adj.shape == (n, n)
    assert params["ws"].shape[0] == 2 * nfeat
    nembed = params["ws"].shape[1]
    hid1 = params["w1t"].shape[1]
    hid2 = params["w2t"].shape[1]
    out_pad = params["w3t"].shape[1]
    out_dim = params["out_dim"]

    bf = jnp.bfloat16
    # Fold degree computation into the aggregation matmul: adj @ [x | 1] = [adj@x | degree].
    x_aug = jnp.concatenate([x, jnp.ones((n, 1), x.dtype)], axis=1).astype(bf)
    adj_bf = adj.astype(bf)        # 0/1 adjacency -> lossless in bf16; halves the dominant stream

    tm = row_tile if row_tile is not None else _choose_row_tile(n)
    assert n % tm == 0 and (tm % 8 == 0 or tm == n), "bad row tile"
    grid = (n // tm,)

    kernel = functools.partial(_sage_en_kernel, nfeat=nfeat, tm=tm, hid1=hid1, hid2=hid2)

    def run(single_buffer_residents):
        def resident(shape):
            # Constant-index inputs: single-buffer them to halve their VMEM footprint (v7x 64 MiB).
            if single_buffer_residents:
                return pl.BlockSpec(shape, lambda i: (0, 0), pipeline_mode=pl.Buffered(1))
            return pl.BlockSpec(shape, lambda i: (0, 0))

        out_padded = pl.pallas_call(
            kernel,
            out_shape=jax.ShapeDtypeStruct((n, out_pad), bf),
            grid_spec=pltpu.PrefetchScalarGridSpec(
                num_scalar_prefetch=0,
                grid=grid,
                in_specs=[
                    resident((n, nfeat + 1)),                   # x_aug (row tile sliced in kernel)
                    pl.BlockSpec((tm, n), lambda i: (i, 0)),    # adj row tile (dominant HBM stream)
                    resident((2 * nfeat, nembed)),              # fused SageConv proj weight (in,out)
                    resident((nembed, hid1)),                   # W1^T
                    resident((hid1, hid2)),                     # W2^T
                    resident((hid2, out_pad)),                  # W3^T (lane-padded to 128)
                    resident((3, out_pad)),                     # bias slab (b1 | b2 | b3-poisoned)
                ],
                out_specs=pl.BlockSpec((tm, out_pad), lambda i: (i, 0)),
            ),
            compiler_params=pltpu.CompilerParams(
                dimension_semantics=("parallel",),   # megacore sharding on v7x, harmless elsewhere
                vmem_limit_bytes=vmem_limit_bytes,
            ),
        )(x_aug, adj_bf, params["ws"], params["w1t"], params["w2t"], params["w3t"],
          params["bias"])
        return jax.block_until_ready(out_padded)

    try:
        out_padded = run(True)
    except Exception:               # pipeline_mode=pl.Buffered(1) unsupported on this jax/backend
        out_padded = run(False)

    return out_padded[:, :out_dim].astype(jnp.float32)


def init_params(key, nfeat, nembed, input_dim, hidden_dim1, hidden_dim2, out_dim, out_pad=128):
    """Deterministic synthetic parameters (PyTorch init/shapes), stored pre-transposed (in, out)."""
    assert input_dim == nembed, "MLP input_dim must equal SageConv nembed"
    assert hidden_dim1 <= out_pad and hidden_dim2 <= out_pad and out_dim <= out_pad
    ks = jax.random.split(key, 4)
    # SageConv.proj: Linear(2*nfeat, nembed, bias=False), nn.init.normal_ (std=1)
    wsage = jax.random.normal(ks[0], (nembed, 2 * nfeat), dtype=jnp.float32)

    def lin(k, out_f, in_f):
        bound = 1.0 / jnp.sqrt(in_f)
        kw, kb = jax.random.split(k)
        w = jax.random.uniform(kw, (out_f, in_f), jnp.float32, -bound, bound)
        b = jax.random.uniform(kb, (out_f,), jnp.float32, -bound, bound)
        return w, b

    w1, b1 = lin(ks[1], hidden_dim1, input_dim)
    w2, b2 = lin(ks[2], hidden_dim2, hidden_dim1)
    w3, b3 = lin(ks[3], out_dim, hidden_dim2)

    # Last layer lane-padded to 128 with zero weight columns.
    w3t = jnp.zeros((hidden_dim2, out_pad), jnp.float32).at[:, :out_dim].set(w3.T)

    # One bias slab; padded lanes of b3 poisoned with -1e30 so the in-kernel softmax needs no mask.
    bias = jnp.zeros((3, out_pad), jnp.float32)
    bias = bias.at[0, :hidden_dim1].set(b1)
    bias = bias.at[1, :hidden_dim2].set(b2)
    bias = bias.at[2, :].set(-1e30)
    bias = bias.at[2, :out_dim].set(b3)

    bf = jnp.bfloat16
    return {
        "ws": wsage.T.astype(bf),                 # (2*nfeat, nembed): rows [0:F)=self, [F:2F)=neigh
        "w1t": w1.T.astype(bf),                   # (input_dim, hid1)
        "w2t": w2.T.astype(bf),                   # (hid1, hid2)
        "w3t": w3t.astype(bf),                    # (hid2, out_pad)
        "bias": bias,                             # (3, out_pad) f32
        "out_dim": out_dim,
    }


def sage_en_reference(x, adj, params):
    """Pure-JAX reference mirroring the kernel's bf16-operand / f32-accumulate math, with exact
    normalization and an exact softmax."""
    f32, bf = jnp.float32, jnp.bfloat16
    od = params["out_dim"]
    nfeat = x.shape[1]
    hid1 = params["w1t"].shape[1]
    hid2 = params["w2t"].shape[1]

    xb, adjb = x.astype(bf), adj.astype(bf)
    deg = jnp.sum(adj, axis=1, keepdims=True)
    neigh = jnp.dot(adjb, xb, preferred_element_type=f32) / (deg + 1.0)
    ws = params["ws"]
    combined = (jnp.dot(xb, ws[:nfeat, :], preferred_element_type=f32)
                + jnp.dot(neigh.astype(bf), ws[nfeat:, :], preferred_element_type=f32))
    h = jnp.maximum(combined, 0.0)
    bias = params["bias"]
    h1 = _leaky_relu(jnp.dot(h.astype(bf), params["w1t"], preferred_element_type=f32)
                     + bias[0:1, :hid1])
    h2 = _leaky_relu(jnp.dot(h1.astype(bf), params["w2t"], preferred_element_type=f32)
                     + bias[1:2, :hid2])
    h3 = _leaky_relu(jnp.dot(h2.astype(bf), params["w3t"][:, :od], preferred_element_type=f32)
                     + bias[2:3, :od])
    return jax.nn.softmax(h3, axis=1)


if __name__ == "__main__":
    # Small shapes consistent with the module (MLP input_dim must equal nembed).
    N, NFEAT, NEMBED = 256, 16, 32
    INPUT_DIM, HID1, HID2, OUT_DIM = NEMBED, 32, 32, 16

    key = jax.random.PRNGKey(0)
    kx, kadj, kp = jax.random.split(key, 3)

    x = jax.random.normal(kx, (N, NFEAT), dtype=jnp.float32)
    # Dense 0/1 adjacency (non-sparse branch of SageConv).
    adj = (jax.random.uniform(kadj, (N, N)) > 0.5).astype(jnp.float32)

    params = init_params(kp, NFEAT, NEMBED, INPUT_DIM, HID1, HID2, OUT_DIM)

    out = jax.block_until_ready(sage_en_forward(x, adj, params))
    ref = sage_en_reference(x, adj, params)

    assert out.shape == (N, OUT_DIM)
    # Tolerance dominated by the bf16 output quantization (~2^-9); normalizations are exact.
    assert bool(jnp.allclose(jnp.sum(out, axis=1), 1.0, atol=5e-3))
    assert bool(jnp.allclose(out, ref, atol=5e-3))
    print("KERNEL_OK")
</pallas_src>

<mosaic_0001>
module attributes {stable_mosaic.version = 11 : i64} {
  func.func @_sage_en_kernel(%arg0: i32, %arg1: memref<256x17xbf16, #tpu.memory_space<vmem>>, %arg2: memref<128x256xbf16, #tpu.memory_space<vmem>>, %arg3: memref<32x32xbf16, #tpu.memory_space<vmem>>, %arg4: memref<32x32xbf16, #tpu.memory_space<vmem>>, %arg5: memref<32x32xbf16, #tpu.memory_space<vmem>>, %arg6: memref<32x128xbf16, #tpu.memory_space<vmem>>, %arg7: memref<3x128xf32, #tpu.memory_space<vmem>>, %arg8: memref<128x128xbf16, #tpu.memory_space<vmem>>) attributes {dimension_semantics = [#tpu.dimension_semantics<parallel>], iteration_bounds = array<i64: 2>, scalar_prefetch = 0 : i64, scratch_operands = 0 : i64, tpu.core_type = #tpu.core_type<tc>, window_params = [{pipeline_mode = #tpu.pipeline_mode<synchronous>, transform_indices = @transform_0, window_bounds = array<i64: 256, 17>}, {transform_indices = @transform_1, window_bounds = array<i64: 128, 256>}, {pipeline_mode = #tpu.pipeline_mode<synchronous>, transform_indices = @transform_2, window_bounds = array<i64: 32, 32>}, {pipeline_mode = #tpu.pipeline_mode<synchronous>, transform_indices = @transform_3, window_bounds = array<i64: 32, 32>}, {pipeline_mode = #tpu.pipeline_mode<synchronous>, transform_indices = @transform_4, window_bounds = array<i64: 32, 32>}, {pipeline_mode = #tpu.pipeline_mode<synchronous>, transform_indices = @transform_5, window_bounds = array<i64: 32, 128>}, {pipeline_mode = #tpu.pipeline_mode<synchronous>, transform_indices = @transform_6, window_bounds = array<i64: 3, 128>}, {transform_indices = @transform_7, window_bounds = array<i64: 128, 128>}]} {
    %c128_i32 = arith.constant 128 : i32
    %0 = arith.muli %arg0, %c128_i32 : i32
    %1 = tpu.assume_multiple %0, 128 : i32
    %c0 = arith.constant 0 : index
    %c0_0 = arith.constant 0 : index
    %2 = vector.load %arg1[%c0, %c0_0] : memref<256x17xbf16, #tpu.memory_space<vmem>>, vector<256x17xbf16>
    %3 = arith.index_cast %1 : i32 to index
    %c0_1 = arith.constant 0 : index
    %4 = vector.load %arg1[%3, %c0_1] : memref<256x17xbf16, #tpu.memory_space<vmem>>, vector<128x17xbf16>
    %c0_2 = arith.constant 0 : index
    %c0_3 = arith.constant 0 : index
    %5 = vector.load %arg2[%c0_2, %c0_3] : memref<128x256xbf16, #tpu.memory_space<vmem>>, vector<128x256xbf16>
    %cst = arith.constant dense<0.000000e+00> : vector<128x17xf32>
    %6 = tpu.matmul %5, %2, %cst {dimension_numbers = #tpu.dot_dimension_numbers<[1], [0], [0], [1], [0, 0, 1, 1], [], []>} : vector<128x256xbf16>, vector<256x17xbf16>, vector<128x17xf32> -> vector<128x17xf32>
    %7 = vector.extract_strided_slice %6 {offsets = [0, 16], sizes = [128, 1], strides = [1, 1]} : vector<128x17xf32> to vector<128x1xf32>
    %8 = vector.extract_strided_slice %6 {offsets = [0, 0], sizes = [128, 16], strides = [1, 1]} : vector<128x17xf32> to vector<128x16xf32>
    %cst_4 = arith.constant 1.000000e+00 : f32
    %9 = vector.broadcast %cst_4 : f32 to vector<128x1xf32>
    %10 = arith.addf %7, %9 : vector<128x1xf32>
    %11 = vector.broadcast %10 : vector<128x1xf32> to vector<128x16xf32>
    %12 = arith.divf %8, %11 : vector<128x16xf32>
    %c0_5 = arith.constant 0 : index
    %c0_6 = arith.constant 0 : index
    %13 = vector.load %arg3[%c0_5, %c0_6] : memref<32x32xbf16, #tpu.memory_space<vmem>>, vector<32x32xbf16>
    %14 = vector.extract_strided_slice %4 {offsets = [0, 0], sizes = [128, 16], strides = [1, 1]} : vector<128x17xbf16> to vector<128x16xbf16>
    %15 = vector.extract_strided_slice %13 {offsets = [0, 0], sizes = [16, 32], strides = [1, 1]} : vector<32x32xbf16> to vector<16x32xbf16>
    %cst_7 = arith.constant dense<0.000000e+00> : vector<128x32xf32>
    %16 = tpu.matmul %14, %15, %cst_7 {dimension_numbers = #tpu.dot_dimension_numbers<[1], [0], [0], [1], [0, 0, 1, 1], [], []>} : vector<128x16xbf16>, vector<16x32xbf16>, vector<128x32xf32> -> vector<128x32xf32>
    %17 = arith.truncf %12 : vector<128x16xf32> to vector<128x16xbf16>
    %18 = vector.extract_strided_slice %13 {offsets = [16, 0], sizes = [16, 32], strides = [1, 1]} : vector<32x32xbf16> to vector<16x32xbf16>
    %cst_8 = arith.constant dense<0.000000e+00> : vector<128x32xf32>
    %19 = tpu.matmul %17, %18, %cst_8 {dimension_numbers = #tpu.dot_dimension_numbers<[1], [0], [0], [1], [0, 0, 1, 1], [], []>} : vector<128x16xbf16>, vector<16x32xbf16>, vector<128x32xf32> -> vector<128x32xf32>
    %20 = arith.addf %16, %19 : vector<128x32xf32>
    %cst_9 = arith.constant 0.000000e+00 : f32
    %21 = vector.broadcast %cst_9 : f32 to vector<128x32xf32>
    %22 = arith.maximumf %20, %21 : vector<128x32xf32>
    %c0_10 = arith.constant 0 : index
    %c0_11 = arith.constant 0 : index
    %23 = vector.load %arg7[%c0_10, %c0_11] : memref<3x128xf32, #tpu.memory_space<vmem>>, vector<3x128xf32>
    %24 = arith.truncf %22 : vector<128x32xf32> to vector<128x32xbf16>
    %c0_12 = arith.constant 0 : index
    %c0_13 = arith.constant 0 : index
    %25 = vector.load %arg4[%c0_12, %c0_13] : memref<32x32xbf16, #tpu.memory_space<vmem>>, vector<32x32xbf16>
    %cst_14 = arith.constant dense<0.000000e+00> : vector<128x32xf32>
    %26 = tpu.matmul %24, %25, %cst_14 {dimension_numbers = #tpu.dot_dimension_numbers<[1], [0], [0], [1], [0, 0, 1, 1], [], []>} : vector<128x32xbf16>, vector<32x32xbf16>, vector<128x32xf32> -> vector<128x32xf32>
    %27 = vector.extract_strided_slice %23 {offsets = [0, 0], sizes = [1, 32], strides = [1, 1]} : vector<3x128xf32> to vector<1x32xf32>
    %28 = vector.broadcast %27 : vector<1x32xf32> to vector<128x32xf32>
    %29 = arith.addf %26, %28 : vector<128x32xf32>
    %cst_15 = arith.constant 0.000000e+00 : f32
    %30 = vector.broadcast %cst_15 : f32 to vector<128x32xf32>
    %31 = arith.cmpf ogt, %29, %30 : vector<128x32xf32>
    %cst_16 = arith.constant 0.00999999977 : f32
    %32 = vector.broadcast %cst_16 : f32 to vector<128x32xf32>
    %33 = arith.mulf %32, %29 : vector<128x32xf32>
    %34 = arith.select %31, %29, %33 : vector<128x32xi1>, vector<128x32xf32>
    %35 = arith.truncf %34 : vector<128x32xf32> to vector<128x32xbf16>
    %c0_17 = arith.constant 0 : index
    %c0_18 = arith.constant 0 : index
    %36 = vector.load %arg5[%c0_17, %c0_18] : memref<32x32xbf16, #tpu.memory_space<vmem>>, vector<32x32xbf16>
    %cst_19 = arith.constant dense<0.000000e+00> : vector<128x32xf32>
    %37 = tpu.matmul %35, %36, %cst_19 {dimension_numbers = #tpu.dot_dimension_numbers<[1], [0], [0], [1], [0, 0, 1, 1], [], []>} : vector<128x32xbf16>, vector<32x32xbf16>, vector<128x32xf32> -> vector<128x32xf32>
    %38 = vector.extract_strided_slice %23 {offsets = [1, 0], sizes = [1, 32], strides = [1, 1]} : vector<3x128xf32> to vector<1x32xf32>
    %39 = vector.broadcast %38 : vector<1x32xf32> to vector<128x32xf32>
    %40 = arith.addf %37, %39 : vector<128x32xf32>
    %cst_20 = arith.constant 0.000000e+00 : f32
    %41 = vector.broadcast %cst_20 : f32 to vector<128x32xf32>
    %42 = arith.cmpf ogt, %40, %41 : vector<128x32xf32>
    %cst_21 = arith.constant 0.00999999977 : f32
    %43 = vector.broadcast %cst_21 : f32 to vector<128x32xf32>
    %44 = arith.mulf %43, %40 : vector<128x32xf32>
    %45 = arith.select %42, %40, %44 : vector<128x32xi1>, vector<128x32xf32>
    %46 = arith.truncf %45 : vector<128x32xf32> to vector<128x32xbf16>
    %c0_22 = arith.constant 0 : index
    %c0_23 = arith.constant 0 : index
    %47 = vector.load %arg6[%c0_22, %c0_23] : memref<32x128xbf16, #tpu.memory_space<vmem>>, vector<32x128xbf16>
    %cst_24 = arith.constant dense<0.000000e+00> : vector<128x128xf32>
    %48 = tpu.matmul %46, %47, %cst_24 {dimension_numbers = #tpu.dot_dimension_numbers<[1], [0], [0], [1], [0, 0, 1, 1], [], []>} : vector<128x32xbf16>, vector<32x128xbf16>, vector<128x128xf32> -> vector<128x128xf32>
    %49 = vector.extract_strided_slice %23 {offsets = [2, 0], sizes = [1, 128], strides = [1, 1]} : vector<3x128xf32> to vector<1x128xf32>
    %50 = vector.broadcast %49 : vector<1x128xf32> to vector<128x128xf32>
    %51 = arith.addf %48, %50 : vector<128x128xf32>
    %cst_25 = arith.constant 0.000000e+00 : f32
    %52 = vector.broadcast %cst_25 : f32 to vector<128x128xf32>
    %53 = arith.cmpf ogt, %51, %52 : vector<128x128xf32>
    %cst_26 = arith.constant 0.00999999977 : f32
    %54 = vector.broadcast %cst_26 : f32 to vector<128x128xf32>
    %55 = arith.mulf %54, %51 : vector<128x128xf32>
    %56 = arith.select %53, %51, %55 : vector<128x128xi1>, vector<128x128xf32>
    %cst_27 = arith.constant dense<0xFF800000> : vector<128xf32>
    %57 = vector.multi_reduction <maximumf>, %56, %cst_27 [1] : vector<128x128xf32> to vector<128xf32>
    %58 = vector.shape_cast %57 : vector<128xf32> to vector<128x1xf32>
    %59 = vector.broadcast %58 : vector<128x1xf32> to vector<128x128xf32>
    %60 = arith.subf %56, %59 : vector<128x128xf32>
    %61 = math.exp %60 : vector<128x128xf32>
    %cst_28 = arith.constant dense<0.000000e+00> : vector<128xf32>
    %62 = vector.multi_reduction <add>, %61, %cst_28 [1] : vector<128x128xf32> to vector<128xf32>
    %63 = vector.shape_cast %62 : vector<128xf32> to vector<128x1xf32>
    %64 = tpu.reciprocal %63 {approx = true} : vector<128x1xf32> -> vector<128x1xf32>
    %65 = arith.mulf %63, %64 : vector<128x1xf32>
    %cst_29 = arith.constant 2.000000e+00 : f32
    %66 = vector.broadcast %cst_29 : f32 to vector<128x1xf32>
    %67 = arith.subf %66, %65 : vector<128x1xf32>
    %68 = arith.mulf %64, %67 : vector<128x1xf32>
    %69 = vector.broadcast %68 : vector<128x1xf32> to vector<128x128xf32>
    %70 = arith.mulf %61, %69 : vector<128x128xf32>
    %71 = arith.truncf %70 : vector<128x128xf32> to vector<128x128xbf16>
    %c0_30 = arith.constant 0 : index
    %c0_31 = arith.constant 0 : index
    %72 = vector.load %arg8[%c0_30, %c0_31] : memref<128x128xbf16, #tpu.memory_space<vmem>>, vector<128x128xbf16>
    tpu.vector_store %arg8[%c0_30, %c0_31], %71 {strides = array<i32>} : memref<128x128xbf16, #tpu.memory_space<vmem>>, vector<128x128xbf16>,
    return
  }
  func.func @transform_0(%arg0: i32) -> (i32, i32) {
    %c0_i32 = arith.constant 0 : i32
    %c0_i32_0 = arith.constant 0 : i32
    %c0_i32_1 = arith.constant 0 : i32
    return %c0_i32, %c0_i32_0 : i32, i32
  }
  func.func @transform_1(%arg0: i32) -> (i32, i32) {
    %c0_i32 = arith.constant 0 : i32
    %c0_i32_0 = arith.constant 0 : i32
    return %arg0, %c0_i32 : i32, i32
  }
  func.func @transform_2(%arg0: i32) -> (i32, i32) {
    %c0_i32 = arith.constant 0 : i32
    %c0_i32_0 = arith.constant 0 : i32
    %c0_i32_1 = arith.constant 0 : i32
    return %c0_i32, %c0_i32_0 : i32, i32
  }
  func.func @transform_3(%arg0: i32) -> (i32, i32) {
    %c0_i32 = arith.constant 0 : i32
    %c0_i32_0 = arith.constant 0 : i32
    %c0_i32_1 = arith.constant 0 : i32
    return %c0_i32, %c0_i32_0 : i32, i32
  }
  func.func @transform_4(%arg0: i32) -> (i32, i32) {
    %c0_i32 = arith.constant 0 : i32
    %c0_i32_0 = arith.constant 0 : i32
    %c0_i32_1 = arith.constant 0 : i32
    return %c0_i32, %c0_i32_0 : i32, i32
  }
  func.func @transform_5(%arg0: i32) -> (i32, i32) {
    %c0_i32 = arith.constant 0 : i32
    %c0_i32_0 = arith.constant 0 : i32
    %c0_i32_1 = arith.constant 0 : i32
    return %c0_i32, %c0_i32_0 : i32, i32
  }
  func.func @transform_6(%arg0: i32) -> (i32, i32) {
    %c0_i32 = arith.constant 0 : i32
    %c0_i32_0 = arith.constant 0 : i32
    %c0_i32_1 = arith.constant 0 : i32
    return %c0_i32, %c0_i32_0 : i32, i32
  }
  func.func @transform_7(%arg0: i32) -> (i32, i32) {
    %c0_i32 = arith.constant 0 : i32
    %c0_i32_0 = arith.constant 0 : i32
    return %arg0, %c0_i32 : i32, i32
  }
}

module attributes {stable_mosaic.version = 11 : i64} {
  func.func @_sage_en_kernel(%arg0: i32, %arg1: memref<256x17xbf16, #tpu.memory_space<vmem>>, %arg2: memref<128x256xbf16, #tpu.memory_space<vmem>>, %arg3: memref<32x32xbf16, #tpu.memory_space<vmem>>, %arg4: memref<32x32xbf16, #tpu.memory_space<vmem>>, %arg5: memref<32x32xbf16, #tpu.memory_space<vmem>>, %arg6: memref<32x128xbf16, #tpu.memory_space<vmem>>, %arg7: memref<3x128xf32, #tpu.memory_space<vmem>>, %arg8: memref<128x128xbf16, #tpu.memory_space<vmem>>) attributes {dimension_semantics = [#tpu.dimension_semantics<parallel>], iteration_bounds = array<i64: 2>, scalar_prefetch = 0 : i64, scratch_operands = 0 : i64, tpu.core_type = #tpu.core_type<tc>, window_params = [{pipeline_mode = #tpu.pipeline_mode<synchronous>, transform_indices = @transform_0, window_bounds = array<i64: 256, 17>}, {transform_indices = @transform_1, window_bounds = array<i64: 128, 256>}, {pipeline_mode = #tpu.pipeline_mode<synchronous>, transform_indices = @transform_2, window_bounds = array<i64: 32, 32>}, {pipeline_mode = #tpu.pipeline_mode<synchronous>, transform_indices = @transform_3, window_bounds = array<i64: 32, 32>}, {pipeline_mode = #tpu.pipeline_mode<synchronous>, transform_indices = @transform_4, window_bounds = array<i64: 32, 32>}, {pipeline_mode = #tpu.pipeline_mode<synchronous>, transform_indices = @transform_5, window_bounds = array<i64: 32, 128>}, {pipeline_mode = #tpu.pipeline_mode<synchronous>, transform_indices = @transform_6, window_bounds = array<i64: 3, 128>}, {transform_indices = @transform_7, window_bounds = array<i64: 128, 128>}]} {
    %c128_i32 = arith.constant 128 : i32
    %0 = arith.muli %arg0, %c128_i32 : i32
    %1 = tpu.assume_multiple %0, 128 : i32
    %c0 = arith.constant 0 : index
    %c0_0 = arith.constant 0 : index
    %2 = vector.load %arg1[%c0, %c0_0] : memref<256x17xbf16, #tpu.memory_space<vmem>>, vector<256x17xbf16>
    %3 = arith.index_cast %1 : i32 to index
    %c0_1 = arith.constant 0 : index
    %4 = vector.load %arg1[%3, %c0_1] : memref<256x17xbf16, #tpu.memory_space<vmem>>, vector<128x17xbf16>
    %c0_2 = arith.constant 0 : index
    %c0_3 = arith.constant 0 : index
    %5 = vector.load %arg2[%c0_2, %c0_3] : memref<128x256xbf16, #tpu.memory_space<vmem>>, vector<128x256xbf16>
    %cst = arith.constant dense<0.000000e+00> : vector<128x17xf32>
    %6 = tpu.matmul %5, %2, %cst {dimension_numbers = #tpu.dot_dimension_numbers<[1], [0], [0], [1], [0, 0, 1, 1], [], []>} : vector<128x256xbf16>, vector<256x17xbf16>, vector<128x17xf32> -> vector<128x17xf32>
    %7 = vector.extract_strided_slice %6 {offsets = [0, 16], sizes = [128, 1], strides = [1, 1]} : vector<128x17xf32> to vector<128x1xf32>
    %8 = vector.extract_strided_slice %6 {offsets = [0, 0], sizes = [128, 16], strides = [1, 1]} : vector<128x17xf32> to vector<128x16xf32>
    %cst_4 = arith.constant 1.000000e+00 : f32
    %9 = vector.broadcast %cst_4 : f32 to vector<128x1xf32>
    %10 = arith.addf %7, %9 : vector<128x1xf32>
    %11 = vector.broadcast %10 : vector<128x1xf32> to vector<128x16xf32>
    %12 = arith.divf %8, %11 : vector<128x16xf32>
    %c0_5 = arith.constant 0 : index
    %c0_6 = arith.constant 0 : index
    %13 = vector.load %arg3[%c0_5, %c0_6] : memref<32x32xbf16, #tpu.memory_space<vmem>>, vector<32x32xbf16>
    %14 = vector.extract_strided_slice %4 {offsets = [0, 0], sizes = [128, 16], strides = [1, 1]} : vector<128x17xbf16> to vector<128x16xbf16>
    %15 = vector.extract_strided_slice %13 {offsets = [0, 0], sizes = [16, 32], strides = [1, 1]} : vector<32x32xbf16> to vector<16x32xbf16>
    %cst_7 = arith.constant dense<0.000000e+00> : vector<128x32xf32>
    %16 = tpu.matmul %14, %15, %cst_7 {dimension_numbers = #tpu.dot_dimension_numbers<[1], [0], [0], [1], [0, 0, 1, 1], [], []>} : vector<128x16xbf16>, vector<16x32xbf16>, vector<128x32xf32> -> vector<128x32xf32>
    %17 = arith.truncf %12 : vector<128x16xf32> to vector<128x16xbf16>
    %18 = vector.extract_strided_slice %13 {offsets = [16, 0], sizes = [16, 32], strides = [1, 1]} : vector<32x32xbf16> to vector<16x32xbf16>
    %cst_8 = arith.constant dense<0.000000e+00> : vector<128x32xf32>
    %19 = tpu.matmul %17, %18, %cst_8 {dimension_numbers = #tpu.dot_dimension_numbers<[1], [0], [0], [1], [0, 0, 1, 1], [], []>} : vector<128x16xbf16>, vector<16x32xbf16>, vector<128x32xf32> -> vector<128x32xf32>
    %20 = arith.addf %16, %19 : vector<128x32xf32>
    %cst_9 = arith.constant 0.000000e+00 : f32
    %21 = vector.broadcast %cst_9 : f32 to vector<128x32xf32>
    %22 = arith.maximumf %20, %21 : vector<128x32xf32>
    %c0_10 = arith.constant 0 : index
    %c0_11 = arith.constant 0 : index
    %23 = vector.load %arg7[%c0_10, %c0_11] : memref<3x128xf32, #tpu.memory_space<vmem>>, vector<3x128xf32>
    %24 = arith.truncf %22 : vector<128x32xf32> to vector<128x32xbf16>
    %c0_12 = arith.constant 0 : index
    %c0_13 = arith.constant 0 : index
    %25 = vector.load %arg4[%c0_12, %c0_13] : memref<32x32xbf16, #tpu.memory_space<vmem>>, vector<32x32xbf16>
    %cst_14 = arith.constant dense<0.000000e+00> : vector<128x32xf32>
    %26 = tpu.matmul %24, %25, %cst_14 {dimension_numbers = #tpu.dot_dimension_numbers<[1], [0], [0], [1], [0, 0, 1, 1], [], []>} : vector<128x32xbf16>, vector<32x32xbf16>, vector<128x32xf32> -> vector<128x32xf32>
    %27 = vector.extract_strided_slice %23 {offsets = [0, 0], sizes = [1, 32], strides = [1, 1]} : vector<3x128xf32> to vector<1x32xf32>
    %28 = vector.broadcast %27 : vector<1x32xf32> to vector<128x32xf32>
    %29 = arith.addf %26, %28 : vector<128x32xf32>
    %cst_15 = arith.constant 0.000000e+00 : f32
    %30 = vector.broadcast %cst_15 : f32 to vector<128x32xf32>
    %31 = arith.cmpf ogt, %29, %30 : vector<128x32xf32>
    %cst_16 = arith.constant 0.00999999977 : f32
    %32 = vector.broadcast %cst_16 : f32 to vector<128x32xf32>
    %33 = arith.mulf %32, %29 : vector<128x32xf32>
    %34 = arith.select %31, %29, %33 : vector<128x32xi1>, vector<128x32xf32>
    %35 = arith.truncf %34 : vector<128x32xf32> to vector<128x32xbf16>
    %c0_17 = arith.constant 0 : index
    %c0_18 = arith.constant 0 : index
    %36 = vector.load %arg5[%c0_17, %c0_18] : memref<32x32xbf16, #tpu.memory_space<vmem>>, vector<32x32xbf16>
    %cst_19 = arith.constant dense<0.000000e+00> : vector<128x32xf32>
    %37 = tpu.matmul %35, %36, %cst_19 {dimension_numbers = #tpu.dot_dimension_numbers<[1], [0], [0], [1], [0, 0, 1, 1], [], []>} : vector<128x32xbf16>, vector<32x32xbf16>, vector<128x32xf32> -> vector<128x32xf32>
    %38 = vector.extract_strided_slice %23 {offsets = [1, 0], sizes = [1, 32], strides = [1, 1]} : vector<3x128xf32> to vector<1x32xf32>
    %39 = vector.broadcast %38 : vector<1x32xf32> to vector<128x32xf32>
    %40 = arith.addf %37, %39 : vector<128x32xf32>
    %cst_20 = arith.constant 0.000000e+00 : f32
    %41 = vector.broadcast %cst_20 : f32 to vector<128x32xf32>
    %42 = arith.cmpf ogt, %40, %41 : vector<128x32xf32>
    %cst_21 = arith.constant 0.00999999977 : f32
    %43 = vector.broadcast %cst_21 : f32 to vector<128x32xf32>
    %44 = arith.mulf %43, %40 : vector<128x32xf32>
    %45 = arith.select %42, %40, %44 : vector<128x32xi1>, vector<128x32xf32>
    %46 = arith.truncf %45 : vector<128x32xf32> to vector<128x32xbf16>
    %c0_22 = arith.constant 0 : index
    %c0_23 = arith.constant 0 : index
    %47 = vector.load %arg6[%c0_22, %c0_23] : memref<32x128xbf16, #tpu.memory_space<vmem>>, vector<32x128xbf16>
    %cst_24 = arith.constant dense<0.000000e+00> : vector<128x128xf32>
    %48 = tpu.matmul %46, %47, %cst_24 {dimension_numbers = #tpu.dot_dimension_numbers<[1], [0], [0], [1], [0, 0, 1, 1], [], []>} : vector<128x32xbf16>, vector<32x128xbf16>, vector<128x128xf32> -> vector<128x128xf32>
    %49 = vector.extract_strided_slice %23 {offsets = [2, 0], sizes = [1, 128], strides = [1, 1]} : vector<3x128xf32> to vector<1x128xf32>
    %50 = vector.broadcast %49 : vector<1x128xf32> to vector<128x128xf32>
    %51 = arith.addf %48, %50 : vector<128x128xf32>
    %cst_25 = arith.constant 0.000000e+00 : f32
    %52 = vector.broadcast %cst_25 : f32 to vector<128x128xf32>
    %53 = arith.cmpf ogt, %51, %52 : vector<128x128xf32>
    %cst_26 = arith.constant 0.00999999977 : f32
    %54 = vector.broadcast %cst_26 : f32 to vector<128x128xf32>
    %55 = arith.mulf %54, %51 : vector<128x128xf32>
    %56 = arith.select %53, %51, %55 : vector<128x128xi1>, vector<128x128xf32>
    %cst_27 = arith.constant dense<0xFF800000> : vector<128xf32>
    %57 = vector.multi_reduction <maximumf>, %56, %cst_27 [1] : vector<128x128xf32> to vector<128xf32>
    %58 = vector.shape_cast %57 : vector<128xf32> to vector<128x1xf32>
    %59 = vector.broadcast %58 : vector<128x1xf32> to vector<128x128xf32>
    %60 = arith.subf %56, %59 : vector<128x128xf32>
    %61 = math.exp %60 : vector<128x128xf32>
    %cst_28 = arith.constant dense<0.000000e+00> : vector<128xf32>
    %62 = vector.multi_reduction <add>, %61, %cst_28 [1] : vector<128x128xf32> to vector<128xf32>
    %63 = vector.shape_cast %62 : vector<128xf32> to vector<128x1xf32>
    %64 = tpu.reciprocal %63 {approx = true} : vector<128x1xf32> -> vector<128x1xf32>
    %65 = arith.mulf %63, %64 : vector<128x1xf32>
    %cst_29 = arith.constant 2.000000e+00 : f32
    %66 = vector.broadcast %cst_29 : f32 to vector<128x1xf32>
    %67 = arith.subf %66, %65 : vector<128x1xf32>
    %68 = arith.mulf %64, %67 : vector<128x1xf32>
    %69 = vector.broadcast %68 : vector<128x1xf32> to vector<128x128xf32>
    %70 = arith.mulf %61, %69 : vector<128x128xf32>
    %71 = arith.truncf %70 : vector<128x128xf32> to vector<128x128xbf16>
    %c0_30 = arith.constant 0 : index
    %c0_31 = arith.constant 0 : index
    %72 = vector.load %arg8[%c0_30, %c0_31] : memref<128x128xbf16, #tpu.memory_space<vmem>>, vector<128x128xbf16>
    tpu.vector_store %arg8[%c0_30, %c0_31], %71 {strides = array<i32>} : memref<128x128xbf16, #tpu.memory_space<vmem>>, vector<128x128xbf16>,
    return
  }
  func.func @transform_0(%arg0: i32) -> (i32, i32) {
    %c0_i32 = arith.constant 0 : i32
    %c0_i32_0 = arith.constant 0 : i32
    %c0_i32_1 = arith.constant 0 : i32
    return %c0_i32, %c0_i32_0 : i32, i32
  }
  func.func @transform_1(%arg0: i32) -> (i32, i32) {
    %c0_i32 = arith.constant 0 : i32
    %c0_i32_0 = arith.constant 0 : i32
    return %arg0, %c0_i32 : i32, i32
  }
  func.func @transform_2(%arg0: i32) -> (i32, i32) {
    %c0_i32 = arith.constant 0 : i32
    %c0_i32_0 = arith.constant 0 : i32
    %c0_i32_1 = arith.constant 0 : i32
    return %c0_i32, %c0_i32_0 : i32, i32
  }
  func.func @transform_3(%arg0: i32) -> (i32, i32) {
    %c0_i32 = arith.constant 0 : i32
    %c0_i32_0 = arith.constant 0 : i32
    %c0_i32_1 = arith.constant 0 : i32
    return %c0_i32, %c0_i32_0 : i32, i32
  }
  func.func @transform_4(%arg0: i32) -> (i32, i32) {
    %c0_i32 = arith.constant 0 : i32
    %c0_i32_0 = arith.constant 0 : i32
    %c0_i32_1 = arith.constant 0 : i32
    return %c0_i32, %c0_i32_0 : i32, i32
  }
  func.func @transform_5(%arg0: i32) -> (i32, i32) {
    %c0_i32 = arith.constant 0 : i32
    %c0_i32_0 = arith.constant 0 : i32
    %c0_i32_1 = arith.constant 0 : i32
    return %c0_i32, %c0_i32_0 : i32, i32
  }
  func.func @transform_6(%arg0: i32) -> (i32, i32) {
    %c0_i32 = arith.constant 0 : i32
    %c0_i32_0 = arith.constant 0 : i32
    %c0_i32_1 = arith.constant 0 : i32
    return %c0_i32, %c0_i32_0 : i32, i32
  }
  func.func @transform_7(%arg0: i32) -> (i32, i32) {
    %c0_i32 = arith.constant 0 : i32
    %c0_i32_0 = arith.constant 0 : i32
    return %arg0, %c0_i32 : i32, i32
  }
}

</mosaic_0001>

<llo_original>
// kernel: tpu_custom_call.1
$region0: #{tpu_custom_call.1}
  #allocation0 [shape = 'u32[]', space=smem, size = 0x4, offset = 0x4, fixed_abs, tag = 'smem constant byte address 0x4 - core index']
  #allocation1 [shape = 'u32[144,128]{1,0:T(1,128)}', space=vmem, size = 0x12000, scoped, tag = 'internal scratch']
  %s0 = inlined_call_operand.hbm [shape: bf16[256,17], index: 0, kind: input, shape index: {}]
  %s1 = inlined_call_operand.hbm [shape: bf16[256,256], index: 1, kind: input, shape index: {}]
  %s2 = inlined_call_operand.hbm [shape: bf16[32,32], index: 2, kind: input, shape index: {}]
  %s3 = inlined_call_operand.hbm [shape: bf16[32,32], index: 3, kind: input, shape index: {}]
  %s4 = inlined_call_operand.hbm [shape: bf16[32,32], index: 4, kind: input, shape index: {}]
  %s5 = inlined_call_operand.hbm [shape: bf16[32,128], index: 5, kind: input, shape index: {}]
  %s6 = inlined_call_operand.hbm [shape: f32[3,128], index: 6, kind: input, shape index: {}]
  %s7 = inlined_call_operand.hbm [shape: bf16[256,128], index: 7, kind: output, shape index: {}]
  %s8 = sld [smem:[#allocation0]]
  $region89: #{tpu_custom_call.1} parent=0
    _
  %s10 = ssub.s32 1, %s8
  %s11 = scalar_select 0, %s10, %s8
  $region1: #{tpu_custom_call.1} parent=0
    #allocation2 [shape = 'u8[65536]{0}', space=vmem, size = 0x10000, scoped, tag = 'input window, operand 0, single buffered']
    #allocation3 [shape = 's32[2]{0}', space=sflag, size = 0x8, scoped, tag = 'scoped memory for tpu_custom_call.1']
    #allocation4 [shape = 's32[2]{0}', space=sflag, size = 0x8, scoped, tag = 'scoped memory for tpu_custom_call.1']
    #allocation5 [shape = 'u8[131072]{0}', space=vmem, size = 0x20000, scoped, tag = 'input window, operand 1']
    #allocation6 [shape = 's32[2]{0}', space=sflag, size = 0x8, scoped, tag = 'scoped memory for tpu_custom_call.1']
    #allocation7 [shape = 'u8[8192]{0}', space=vmem, size = 0x2000, scoped, tag = 'input window, operand 2, single buffered']
    #allocation8 [shape = 'u8[8192]{0}', space=vmem, size = 0x2000, scoped, tag = 'input window, operand 3, single buffered']
    #allocation9 [shape = 's32[1]{0}', space=sflag, size = 0x4, scoped, tag = 'scoped memory for tpu_custom_call.1']
    #allocation10 [shape = 'u8[8192]{0}', space=vmem, size = 0x2000, scoped, tag = 'input window, operand 4, single buffered']
    #allocation11 [shape = 'u8[8192]{0}', space=vmem, size = 0x2000, scoped, tag = 'input window, operand 5, single buffered']
    #allocation12 [shape = 's32[1]{0}', space=sflag, size = 0x4, scoped, tag = 'scoped memory for tpu_custom_call.1']
    #allocation13 [shape = 'u8[2048]{0}', space=vmem, size = 0x800, scoped, tag = 'input window, operand 6, single buffered']
    #allocation14 [shape = 'u8[65536]{0}', space=vmem, size = 0x10000, scoped, tag = 'output window, operand 0']
    %12 = vsyncpa [#allocation3], 0
    %13 = vsyncpa [#allocation6], 0
    %s14 = scalar_lea.sflag [#allocation6], 1
    %15 = vsyncpa %s14, 0
    %16 = vsyncpa [#allocation9], 0
    %17 = vsyncpa [#allocation12], 0
    %18 = vsyncpa [#allocation4], 0
    %s19 = scalar_lea.sflag [#allocation4], 1
    %20 = vsyncpa %s19, 0
    loop: start=0, step=1, limit=4
    $region2: #{tpu_custom_call.1} parent=1 // loop_pre_header
      _
    $region3: #{tpu_custom_call.1} parent=1 // loop_header
      %s22 = sphi 0, %s26
      %p23 = scmp.ge.s32.totalorder %s22, 4
      %s30 = sphi 0, %s30
      %s32 = sphi 0, %s30
      %s33 = sphi 0, %s32
      %s47 = sphi 0, %s33
      %s53 = sphi 0, %s55
      %s56 = sphi 0, %s53
      %s57 = sphi 0, %s56
      %s73 = sphi 0, %s57
      %s77 = sphi 0, %s77
      %s79 = sphi 0, %s77
      %s80 = sphi 0, %s79
      %s94 = sphi 0, %s80
      %s98 = sphi 0, %s98
      %s100 = sphi 0, %s98
      %s101 = sphi 0, %s100
      %s115 = sphi 0, %s101
      %s119 = sphi 0, %s119
      %s121 = sphi 0, %s119
      %s122 = sphi 0, %s121
      %s136 = sphi 0, %s122
      %s140 = sphi 0, %s140
      %s142 = sphi 0, %s140
      %s143 = sphi 0, %s142
      %s157 = sphi 0, %s143
      %s161 = sphi 0, %s161
      %s163 = sphi 0, %s161
      %s164 = sphi 0, %s163
      %s178 = sphi 0, %s164
      %s184 = sphi 0, %s186
      %s187 = sphi 0, %s184
      %s188 = sphi 0, %s187
      %s204 = sphi 0, %s188
    $region4: #{tpu_custom_call.1} parent=1 // loop_header_branch
      %25 = sbr.rel (%p23) target = $region8
    $region5: #{tpu_custom_call.1} parent=1 // loop_body
      %s27 = ssub.s32 %s22, 1
      %s28 = ssub.s32 %s22, 2
      %s29 = sadd.s32 %s22, 1
      %s31 = sadd.s32 %s30, 1
      %p34 = scmp.eq.s32.totalorder %s22, 1
      %p35 = scmp.ne.s32.totalorder %s30, %s32
      %p36 = scmp.eq.s32.totalorder %s22, 0
      %p37 = por %p35, %p36
      %p38 = scmp.ne.s32.totalorder %s30, %s32
      %p39 = scmp.eq.s32.totalorder %s27, 1
      %p40 = por %p38, %p39
      %p41 = scmp.ne.s32.totalorder %s32, %s33
      %p42 = scmp.eq.s32.totalorder %s27, 0
      %p43 = por %p41, %p42
      %p44 = scmp.ne.s32.totalorder %s32, %s33
      %p45 = scmp.eq.s32.totalorder %s28, 1
      %p46 = por %p44, %p45
      %p48 = scmp.ne.s32.totalorder %s33, %s47
      %p49 = scmp.eq.s32.totalorder %s28, 0
      %p50 = por %p48, %p49
      %s51 = ssub.s32 %s22, %s29
      %p52 = scmp.eq.s32.totalorder %s51, 0
      %s54 = sadd.s32 %s53, 1
      %s55 = scalar_select %p52, %s53, %s54
      %p58 = pneg %p52
      %p59 = scmp.eq.s32.totalorder %s22, 1
      %p60 = por %p58, %p59
      %p61 = scmp.ne.s32.totalorder %s53, %s56
      %p62 = scmp.eq.s32.totalorder %s22, 0
      %p63 = por %p61, %p62
      %p64 = scmp.ne.s32.totalorder %s53, %s56
      %p65 = scmp.eq.s32.totalorder %s27, 1
      %p66 = por %p64, %p65
      %p67 = scmp.ne.s32.totalorder %s56, %s57
      %p68 = scmp.eq.s32.totalorder %s27, 0
      %p69 = por %p67, %p68
      %p70 = scmp.ne.s32.totalorder %s56, %s57
      %p71 = scmp.eq.s32.totalorder %s28, 1
      %p72 = por %p70, %p71
      %p74 = scmp.ne.s32.totalorder %s57, %s73
      %p75 = scmp.eq.s32.totalorder %s28, 0
      %p76 = por %p74, %p75
      %s78 = sadd.s32 %s77, 1
      %p81 = scmp.eq.s32.totalorder %s22, 1
      %p82 = scmp.ne.s32.totalorder %s77, %s79
      %p83 = scmp.eq.s32.totalorder %s22, 0
      %p84 = por %p82, %p83
      %p85 = scmp.ne.s32.totalorder %s77, %s79
      %p86 = scmp.eq.s32.totalorder %s27, 1
      %p87 = por %p85, %p86
      %p88 = scmp.ne.s32.totalorder %s79, %s80
      %p89 = scmp.eq.s32.totalorder %s27, 0
      %p90 = por %p88, %p89
      %p91 = scmp.ne.s32.totalorder %s79, %s80
      %p92 = scmp.eq.s32.totalorder %s28, 1
      %p93 = por %p91, %p92
      %p95 = scmp.ne.s32.totalorder %s80, %s94
      %p96 = scmp.eq.s32.totalorder %s28, 0
      %p97 = por %p95, %p96
      %s99 = sadd.s32 %s98, 1
      %p102 = scmp.eq.s32.totalorder %s22, 1
      %p103 = scmp.ne.s32.totalorder %s98, %s100
      %p104 = scmp.eq.s32.totalorder %s22, 0
      %p105 = por %p103, %p104
      %p106 = scmp.ne.s32.totalorder %s98, %s100
      %p107 = scmp.eq.s32.totalorder %s27, 1
      %p108 = por %p106, %p107
      %p109 = scmp.ne.s32.totalorder %s100, %s101
      %p110 = scmp.eq.s32.totalorder %s27, 0
      %p111 = por %p109, %p110
      %p112 = scmp.ne.s32.totalorder %s100, %s101
      %p113 = scmp.eq.s32.totalorder %s28, 1
      %p114 = por %p112, %p113
      %p116 = scmp.ne.s32.totalorder %s101, %s115
      %p117 = scmp.eq.s32.totalorder %s28, 0
      %p118 = por %p116, %p117
      %s120 = sadd.s32 %s119, 1
      %p123 = scmp.eq.s32.totalorder %s22, 1
      %p124 = scmp.ne.s32.totalorder %s119, %s121
      %p125 = scmp.eq.s32.totalorder %s22, 0
      %p126 = por %p124, %p125
      %p127 = scmp.ne.s32.totalorder %s119, %s121
      %p128 = scmp.eq.s32.totalorder %s27, 1
      %p129 = por %p127, %p128
      %p130 = scmp.ne.s32.totalorder %s121, %s122
      %p131 = scmp.eq.s32.totalorder %s27, 0
      %p132 = por %p130, %p131
      %p133 = scmp.ne.s32.totalorder %s121, %s122
      %p134 = scmp.eq.s32.totalorder %s28, 1
      %p135 = por %p133, %p134
      %p137 = scmp.ne.s32.totalorder %s122, %s136
      %p138 = scmp.eq.s32.totalorder %s28, 0
      %p139 = por %p137, %p138
      %s141 = sadd.s32 %s140, 1
      %p144 = scmp.eq.s32.totalorder %s22, 1
      %p145 = scmp.ne.s32.totalorder %s140, %s142
      %p146 = scmp.eq.s32.totalorder %s22, 0
      %p147 = por %p145, %p146
      %p148 = scmp.ne.s32.totalorder %s140, %s142
      %p149 = scmp.eq.s32.totalorder %s27, 1
      %p150 = por %p148, %p149
      %p151 = scmp.ne.s32.totalorder %s142, %s143
      %p152 = scmp.eq.s32.totalorder %s27, 0
      %p153 = por %p151, %p152
      %p154 = scmp.ne.s32.totalorder %s142, %s143
      %p155 = scmp.eq.s32.totalorder %s28, 1
      %p156 = por %p154, %p155
      %p158 = scmp.ne.s32.totalorder %s143, %s157
      %p159 = scmp.eq.s32.totalorder %s28, 0
      %p160 = por %p158, %p159
      %s162 = sadd.s32 %s161, 1
      %p165 = scmp.eq.s32.totalorder %s22, 1
      %p166 = scmp.ne.s32.totalorder %s161, %s163
      %p167 = scmp.eq.s32.totalorder %s22, 0
      %p168 = por %p166, %p167
      %p169 = scmp.ne.s32.totalorder %s161, %s163
      %p170 = scmp.eq.s32.totalorder %s27, 1
      %p171 = por %p169, %p170
      %p172 = scmp.ne.s32.totalorder %s163, %s164
      %p173 = scmp.eq.s32.totalorder %s27, 0
      %p174 = por %p172, %p173
      %p175 = scmp.ne.s32.totalorder %s163, %s164
      %p176 = scmp.eq.s32.totalorder %s28, 1
      %p177 = por %p175, %p176
      %p179 = scmp.ne.s32.totalorder %s164, %s178
      %p180 = scmp.eq.s32.totalorder %s28, 0
      %p181 = por %p179, %p180
      %s182 = ssub.s32 %s22, %s29
      %p183 = scmp.eq.s32.totalorder %s182, 0
      %s185 = sadd.s32 %s184, 1
      %s186 = scalar_select %p183, %s184, %s185
      %p189 = pneg %p183
      %p190 = scmp.eq.s32.totalorder %s22, 1
      %p191 = por %p189, %p190
      %p192 = scmp.ne.s32.totalorder %s184, %s187
      %p193 = scmp.eq.s32.totalorder %s22, 0
      %p194 = por %p192, %p193
      %p195 = scmp.ne.s32.totalorder %s184, %s187
      %p196 = scmp.eq.s32.totalorder %s27, 1
      %p197 = por %p195, %p196
      %p198 = scmp.ne.s32.totalorder %s187, %s188
      %p199 = scmp.eq.s32.totalorder %s27, 0
      %p200 = por %p198, %p199
      %p201 = scmp.ne.s32.totalorder %s187, %s188
      %p202 = scmp.eq.s32.totalorder %s28, 1
      %p203 = por %p201, %p202
      %p205 = scmp.ne.s32.totalorder %s188, %s204
      %p206 = scmp.eq.s32.totalorder %s28, 0
      %p207 = por %p205, %p206
      %p208 = scmp.le.s32.totalorder 1, %s22
      %p209 = scmp.lt.s32.totalorder %s22, 3
      %p210 = pnand %p208, %p209
      %p211 = pneg %p210
      // Predicated region
      $region9: #{tpu_custom_call.1} parent=5 // pred_check
        _
      $region10: #{tpu_custom_call.1} parent=5 // pred_check_branch
        %213 = sbr.rel (%p210) target = $region12
      $region11: #{tpu_custom_call.1} parent=5 // pred_region
        %s214 = ssub.s32 %s22, 1
        // Predicated region
        $region13: #{tpu_custom_call.1} parent=11 // pred_check
          %p215 = pneg %p43
        $region14: #{tpu_custom_call.1} parent=11 // pred_check_branch
          %217 = sbr.rel (%p215) target = $region16
        $region15: #{tpu_custom_call.1} parent=11 // pred_region
          %s219 = ssub.s32 2048, 2048
          %220 = vsyncadd [#allocation3], %s219
          %s221 = sshll.u32 [#allocation2], 4
          %s222 = int_to_ptr.vmem [resolvable:$true] %s221
          %227 = dma.hbm_to_vmem [thread:$0]  %s0, 2048, %s222, [#allocation3], 64, 64, 4
        $region16: #{tpu_custom_call.1} parent=11 // pred_fallthru
          _
        // Predicated region
        $region17: #{tpu_custom_call.1} parent=11 // pred_check
          %p228 = pneg %p90
        $region18: #{tpu_custom_call.1} parent=11 // pred_check_branch
          %230 = sbr.rel (%p228) target = $region20
        $region19: #{tpu_custom_call.1} parent=11 // pred_region
          %s232 = ssub.s32 256, 256
          %233 = vsyncadd [#allocation6], %s232
          %s234 = sshll.u32 [#allocation7], 4
          %s235 = int_to_ptr.vmem [resolvable:$true] %s234
          %240 = dma.hbm_to_vmem [thread:$0]  %s2, 256, %s235, [#allocation6], 64, 64, 4
        $region20: #{tpu_custom_call.1} parent=11 // pred_fallthru
          _
        // Predicated region
        $region21: #{tpu_custom_call.1} parent=11 // pred_check
          %p241 = pneg %p111
        $region22: #{tpu_custom_call.1} parent=11 // pred_check_branch
          %243 = sbr.rel (%p241) target = $region24
        $region23: #{tpu_custom_call.1} parent=11 // pred_region
          %s245 = ssub.s32 256, 256
          %246 = vsyncadd [#allocation9], %s245
          %s247 = sshll.u32 [#allocation8], 4
          %s248 = int_to_ptr.vmem [resolvable:$true] %s247
          %253 = dma.hbm_to_vmem [thread:$0]  %s3, 256, %s248, [#allocation9], 64, 64, 4
        $region24: #{tpu_custom_call.1} parent=11 // pred_fallthru
          _
        // Predicated region
        $region25: #{tpu_custom_call.1} parent=11 // pred_check
          %p254 = pneg %p132
        $region26: #{tpu_custom_call.1} parent=11 // pred_check_branch
          %256 = sbr.rel (%p254) target = $region28
        $region27: #{tpu_custom_call.1} parent=11 // pred_region
          %s258 = ssub.s32 256, 256
          %259 = vsyncadd [#allocation9], %s258
          %s260 = sshll.u32 [#allocation10], 4
          %s261 = int_to_ptr.vmem [resolvable:$true] %s260
          %266 = dma.hbm_to_vmem [thread:$0]  %s4, 256, %s261, [#allocation9], 64, 64, 4
        $region28: #{tpu_custom_call.1} parent=11 // pred_fallthru
          _
        // Predicated region
        $region29: #{tpu_custom_call.1} parent=11 // pred_check
          %p267 = pneg %p153
        $region30: #{tpu_custom_call.1} parent=11 // pred_check_branch
          %269 = sbr.rel (%p267) target = $region32
        $region31: #{tpu_custom_call.1} parent=11 // pred_region
          %s271 = ssub.s32 256, 256
          %272 = vsyncadd [#allocation12], %s271
          %s273 = sshll.u32 [#allocation11], 4
          %s274 = int_to_ptr.vmem [resolvable:$true] %s273
          %279 = dma.hbm_to_vmem [thread:$0]  %s5, 256, %s274, [#allocation12], 64, 64, 4
        $region32: #{tpu_custom_call.1} parent=11 // pred_fallthru
          _
        // Predicated region
        $region33: #{tpu_custom_call.1} parent=11 // pred_check
          %p280 = pneg %p174
        $region34: #{tpu_custom_call.1} parent=11 // pred_check_branch
          %282 = sbr.rel (%p280) target = $region36
        $region35: #{tpu_custom_call.1} parent=11 // pred_region
          %s284 = ssub.s32 64, 64
          %285 = vsyncadd [#allocation12], %s284
          %s287 = sshll.u32 [#allocation13], 4
          %s288 = int_to_ptr.vmem [resolvable:$true] %s287
          %290 = dma.hbm_to_vmem [thread:$0]  %s6, 64, %s288, [#allocation12]
        $region36: #{tpu_custom_call.1} parent=11 // pred_fallthru
          _
      $region12: #{tpu_custom_call.1} parent=5 // pred_fallthru
        _
      %p291 = scmp.lt.s32.totalorder %s22, 2
      // Predicated region
      $region37: #{tpu_custom_call.1} parent=5 // pred_check
        %p292 = pneg %p291
      $region38: #{tpu_custom_call.1} parent=5 // pred_check_branch
        %294 = sbr.rel (%p292) target = $region40
      $region39: #{tpu_custom_call.1} parent=5 // pred_region
        // Predicated region
        $region41: #{tpu_custom_call.1} parent=39 // pred_check
          %p295 = pneg %p63
        $region42: #{tpu_custom_call.1} parent=39 // pred_check_branch
          %297 = sbr.rel (%p295) target = $region44
        $region43: #{tpu_custom_call.1} parent=39 // pred_region
          %s298 = sand.u32 %s22, 1
          %s299 = scalar_lea.sflag [#allocation6], %s298
          %s300 = sand.u32 %s53, 1
          %s301 = smul.addr %s300, 128
          %s302 = scalar_lea.vmem [#allocation5], %s301
          %s303 = smul.u32 16, %s22
          %s305 = ssub.s32 2048, 2048
          %306 = vsyncadd %s299, %s305
          %s307 = smul.addr %s303, 2
          %s308 = smul.addr %s307, 64
          %s309 = scalar_lea.hbm %s1, %s308
          %s310 = sshll.u32 %s302, 4
          %s311 = int_to_ptr.vmem [resolvable:$true] %s310
          %316 = dma.hbm_to_vmem [thread:$0]  %s309, 2048, %s311, %s299, 128, 128, 8
        $region44: #{tpu_custom_call.1} parent=39 // pred_fallthru
          _
      $region40: #{tpu_custom_call.1} parent=5 // pred_fallthru
        _
      %p317 = scmp.le.s32.totalorder 1, %s22
      %p318 = scmp.lt.s32.totalorder %s22, 3
      %p319 = pnand %p317, %p318
      %p320 = pneg %p319
      // Predicated region
      $region45: #{tpu_custom_call.1} parent=5 // pred_check
        _
      $region46: #{tpu_custom_call.1} parent=5 // pred_check_branch
        %322 = sbr.rel (%p319) target = $region48
      $region47: #{tpu_custom_call.1} parent=5 // pred_region
        %s323 = ssub.s32 %s22, 1
        // Predicated region
        $region49: #{tpu_custom_call.1} parent=47 // pred_check
          %p324 = pneg %p43
        $region50: #{tpu_custom_call.1} parent=47 // pred_check_branch
          %326 = sbr.rel (%p324) target = $region52
        $region51: #{tpu_custom_call.1} parent=47 // pred_region
          %327 = dma.done [#allocation3], 2048
        $region52: #{tpu_custom_call.1} parent=47 // pred_fallthru
          _
        %s328 = sand.u32 %s27, 1
        %s329 = scalar_lea.sflag [#allocation6], %s328
        %s330 = sand.u32 %s56, 1
        %s331 = smul.addr %s330, 128
        %s332 = scalar_lea.vmem [#allocation5], %s331
        // Predicated region
        $region53: #{tpu_custom_call.1} parent=47 // pred_check
          %p333 = pneg %p69
        $region54: #{tpu_custom_call.1} parent=47 // pred_check_branch
          %335 = sbr.rel (%p333) target = $region56
        $region55: #{tpu_custom_call.1} parent=47 // pred_region
          %336 = dma.done %s329, 2048
        $region56: #{tpu_custom_call.1} parent=47 // pred_fallthru
          _
        // Predicated region
        $region57: #{tpu_custom_call.1} parent=47 // pred_check
          %p337 = pneg %p90
        $region58: #{tpu_custom_call.1} parent=47 // pred_check_branch
          %339 = sbr.rel (%p337) target = $region60
        $region59: #{tpu_custom_call.1} parent=47 // pred_region
          %340 = dma.done [#allocation6], 256
        $region60: #{tpu_custom_call.1} parent=47 // pred_fallthru
          _
        // Predicated region
        $region61: #{tpu_custom_call.1} parent=47 // pred_check
          %p341 = pneg %p111
        $region62: #{tpu_custom_call.1} parent=47 // pred_check_branch
          %343 = sbr.rel (%p341) target = $region64
        $region63: #{tpu_custom_call.1} parent=47 // pred_region
          %344 = dma.done [#allocation9], 256
        $region64: #{tpu_custom_call.1} parent=47 // pred_fallthru
          _
        // Predicated region
        $region65: #{tpu_custom_call.1} parent=47 // pred_check
          %p345 = pneg %p132
        $region66: #{tpu_custom_call.1} parent=47 // pred_check_branch
          %347 = sbr.rel (%p345) target = $region68
        $region67: #{tpu_custom_call.1} parent=47 // pred_region
          %348 = dma.done [#allocation9], 256
        $region68: #{tpu_custom_call.1} parent=47 // pred_fallthru
          _
        // Predicated region
        $region69: #{tpu_custom_call.1} parent=47 // pred_check
          %p349 = pneg %p153
        $region70: #{tpu_custom_call.1} parent=47 // pred_check_branch
          %351 = sbr.rel (%p349) target = $region72
        $region71: #{tpu_custom_call.1} parent=47 // pred_region
          %352 = dma.done [#allocation12], 256
        $region72: #{tpu_custom_call.1} parent=47 // pred_fallthru
          _
        // Predicated region
        $region73: #{tpu_custom_call.1} parent=47 // pred_check
          %p353 = pneg %p174
        $region74: #{tpu_custom_call.1} parent=47 // pred_check_branch
          %355 = sbr.rel (%p353) target = $region76
        $region75: #{tpu_custom_call.1} parent=47 // pred_region
          %356 = dma.done [#allocation12], 64
        $region76: #{tpu_custom_call.1} parent=47 // pred_fallthru
          _
        %p357 = pneg %p43
        %p358 = pneg %p40
        %s359 = sand.u32 %s27, 1
        %s360 = scalar_lea.sflag [#allocation6], %s359
        %s361 = sand.u32 %s56, 1
        %s362 = smul.addr %s361, 128
        %s363 = scalar_lea.vmem [#allocation5], %s362
        %p364 = pneg %p69
        %p365 = pneg %p66
        %p366 = pneg %p90
        %p367 = pneg %p87
        %p368 = pneg %p111
        %p369 = pneg %p108
        %p370 = pneg %p132
        %p371 = pneg %p129
        %p372 = pneg %p153
        %p373 = pneg %p150
        %p374 = pneg %p174
        %p375 = pneg %p171
        %p376 = pneg %p200
        %p377 = pneg %p197
        %s378 = sand.u32 %s187, 1
        %s379 = scalar_lea.sflag [#allocation4], %s378
        %s380 = sand.u32 %s187, 1
        %s381 = smul.addr %s380, 64
        %s382 = scalar_lea.vmem [#allocation14], %s381
        %s383 = smul.u32 16, %s27
        %s384 = smul.u32 16, %s27
        %s386 = smul.u32 %s27, 128
        %v387 = vld [vmem:[#allocation2] sm:$0xf]
        %v388 = vld [vmem:[#allocation2 + $0x4] sm:$0xf]
        %v389 = vld [vmem:[#allocation2 + $0x8] sm:$0xf]
        %v390 = vld [vmem:[#allocation2 + $0xc] sm:$0xf]
        %v391 = vld [vmem:[#allocation2 + $0x10] sm:$0xf]
        %v392 = vld [vmem:[#allocation2 + $0x14] sm:$0xf]
        %v393 = vld [vmem:[#allocation2 + $0x18] sm:$0xf]
        %v394 = vld [vmem:[#allocation2 + $0x1c] sm:$0xf]
        %v395 = vld [vmem:[#allocation2 + $0x20] sm:$0xf]
        %v396 = vld [vmem:[#allocation2 + $0x24] sm:$0xf]
        %v397 = vld [vmem:[#allocation2 + $0x28] sm:$0xf]
        %v398 = vld [vmem:[#allocation2 + $0x2c] sm:$0xf]
        %v399 = vld [vmem:[#allocation2 + $0x30] sm:$0xf]
        %v400 = vld [vmem:[#allocation2 + $0x34] sm:$0xf]
        %v401 = vld [vmem:[#allocation2 + $0x38] sm:$0xf]
        %v402 = vld [vmem:[#allocation2 + $0x3c] sm:$0xf]
        %v403 = vld [vmem:[#allocation2 + $0x40] sm:$0xf]
        %v404 = vld [vmem:[#allocation2 + $0x44] sm:$0xf]
        %v405 = vld [vmem:[#allocation2 + $0x48] sm:$0xf]
        %v406 = vld [vmem:[#allocation2 + $0x4c] sm:$0xf]
        %v407 = vld [vmem:[#allocation2 + $0x50] sm:$0xf]
        %v408 = vld [vmem:[#allocation2 + $0x54] sm:$0xf]
        %v409 = vld [vmem:[#allocation2 + $0x58] sm:$0xf]
        %v410 = vld [vmem:[#allocation2 + $0x5c] sm:$0xf]
        %v411 = vld [vmem:[#allocation2 + $0x60] sm:$0xf]
        %v412 = vld [vmem:[#allocation2 + $0x64] sm:$0xf]
        %v413 = vld [vmem:[#allocation2 + $0x68] sm:$0xf]
        %v414 = vld [vmem:[#allocation2 + $0x6c] sm:$0xf]
        %v415 = vld [vmem:[#allocation2 + $0x70] sm:$0xf]
        %v416 = vld [vmem:[#allocation2 + $0x74] sm:$0xf]
        %v417 = vld [vmem:[#allocation2 + $0x78] sm:$0xf]
        %v418 = vld [vmem:[#allocation2 + $0x7c] sm:$0xf]
        %s419 = sshra.s32 %s386, 3
        %s420 = sand.u32 %s386, 7
        %s421 = smul.addr %s419, 4
        %s422 = scalar_lea.vmem [#allocation2], %s421
        %v423 = vld [vmem:[%s422] sm:$0xf]
        %v424 = vld [vmem:[%s422 + $0x4] sm:$0xf]
        %v425 = vld [vmem:[%s422 + $0x8] sm:$0xf]
        %v426 = vld [vmem:[%s422 + $0xc] sm:$0xf]
        %v427 = vld [vmem:[%s422 + $0x10] sm:$0xf]
        %v428 = vld [vmem:[%s422 + $0x14] sm:$0xf]
        %v429 = vld [vmem:[%s422 + $0x18] sm:$0xf]
        %v430 = vld [vmem:[%s422 + $0x1c] sm:$0xf]
        %v431 = vld [vmem:[%s422 + $0x20] sm:$0xf]
        %v432 = vld [vmem:[%s422 + $0x24] sm:$0xf]
        %v433 = vld [vmem:[%s422 + $0x28] sm:$0xf]
        %v434 = vld [vmem:[%s422 + $0x2c] sm:$0xf]
        %v435 = vld [vmem:[%s422 + $0x30] sm:$0xf]
        %v436 = vld [vmem:[%s422 + $0x34] sm:$0xf]
        %v437 = vld [vmem:[%s422 + $0x38] sm:$0xf]
        %v438 = vld [vmem:[%s422 + $0x3c] sm:$0xf]
        %v439 = vld [vmem:[%s332] sm:$0xff]
        %v440 = vld [vmem:[%s332 + $0x8] sm:$0xff]
        %v441 = vld [vmem:[%s332 + $0x10] sm:$0xff]
        %v442 = vld [vmem:[%s332 + $0x18] sm:$0xff]
        %v443 = vld [vmem:[%s332 + $0x20] sm:$0xff]
        %v444 = vld [vmem:[%s332 + $0x28] sm:$0xff]
        %v445 = vld [vmem:[%s332 + $0x30] sm:$0xff]
        %v446 = vld [vmem:[%s332 + $0x38] sm:$0xff]
        %v447 = vld [vmem:[%s332 + $0x40] sm:$0xff]
        %v448 = vld [vmem:[%s332 + $0x48] sm:$0xff]
        %v449 = vld [vmem:[%s332 + $0x50] sm:$0xff]
        %v450 = vld [vmem:[%s332 + $0x58] sm:$0xff]
        %v451 = vld [vmem:[%s332 + $0x60] sm:$0xff]
        %v452 = vld [vmem:[%s332 + $0x68] sm:$0xff]
        %v453 = vld [vmem:[%s332 + $0x70] sm:$0xff]
        %v454 = vld [vmem:[%s332 + $0x78] sm:$0xff]
        %v471 = vunpack.c.l.b16 %v439
        %v472 = vunpack.c.h.b16 %v439
        %v473 = vunpack.c.l.b16 %v440
        %v474 = vunpack.c.h.b16 %v440
        %v475 = vunpack.c.l.b16 %v441
        %v476 = vunpack.c.h.b16 %v441
        %v477 = vunpack.c.l.b16 %v442
        %v478 = vunpack.c.h.b16 %v442
        %v479 = vunpack.c.l.b16 %v443
        %v480 = vunpack.c.h.b16 %v443
        %v481 = vunpack.c.l.b16 %v444
        %v482 = vunpack.c.h.b16 %v444
        %v483 = vunpack.c.l.b16 %v445
        %v484 = vunpack.c.h.b16 %v445
        %v485 = vunpack.c.l.b16 %v446
        %v486 = vunpack.c.h.b16 %v446
        %v487 = vunpack.c.l.b16 %v447
        %v488 = vunpack.c.h.b16 %v447
        %v489 = vunpack.c.l.b16 %v448
        %v490 = vunpack.c.h.b16 %v448
        %v491 = vunpack.c.l.b16 %v449
        %v492 = vunpack.c.h.b16 %v449
        %v493 = vunpack.c.l.b16 %v450
        %v494 = vunpack.c.h.b16 %v450
        %v495 = vunpack.c.l.b16 %v451
        %v496 = vunpack.c.h.b16 %v451
        %v497 = vunpack.c.l.b16 %v452
        %v498 = vunpack.c.h.b16 %v452
        %v499 = vunpack.c.l.b16 %v453
        %v500 = vunpack.c.h.b16 %v453
        %v501 = vunpack.c.l.b16 %v454
        %v502 = vunpack.c.h.b16 %v454
        %v503 = vpack.c.b16 %v473, %v471
        %v504 = vpack.c.b16 %v474, %v472
        %v505 = vpack.c.b16 %v477, %v475
        %v506 = vpack.c.b16 %v478, %v476
        %v507 = vpack.c.b16 %v481, %v479
        %v508 = vpack.c.b16 %v482, %v480
        %v509 = vpack.c.b16 %v485, %v483
        %v510 = vpack.c.b16 %v486, %v484
        %v511 = vpack.c.b16 %v489, %v487
        %v512 = vpack.c.b16 %v490, %v488
        %v513 = vpack.c.b16 %v493, %v491
        %v514 = vpack.c.b16 %v494, %v492
        %v515 = vpack.c.b16 %v497, %v495
        %v516 = vpack.c.b16 %v498, %v496
        %v517 = vpack.c.b16 %v501, %v499
        %v518 = vpack.c.b16 %v502, %v500
        %v567 = vunpack.c.l.b16 %v387
        %v568 = vunpack.c.l.b16 %v388
        %v569 = vunpack.c.l.b16 %v389
        %v570 = vunpack.c.l.b16 %v390
        %v571 = vunpack.c.l.b16 %v391
        %v572 = vunpack.c.l.b16 %v392
        %v573 = vunpack.c.l.b16 %v393
        %v574 = vunpack.c.l.b16 %v394
        %v575 = vunpack.c.l.b16 %v395
        %v576 = vunpack.c.l.b16 %v396
        %v577 = vunpack.c.l.b16 %v397
        %v578 = vunpack.c.l.b16 %v398
        %v579 = vunpack.c.l.b16 %v399
        %v580 = vunpack.c.l.b16 %v400
        %v581 = vunpack.c.l.b16 %v401
        %v582 = vunpack.c.l.b16 %v402
        %v583 = vunpack.c.l.b16 %v403
        %v584 = vunpack.c.l.b16 %v404
        %v585 = vunpack.c.l.b16 %v405
        %v586 = vunpack.c.l.b16 %v406
        %v587 = vunpack.c.l.b16 %v407
        %v588 = vunpack.c.l.b16 %v408
        %v589 = vunpack.c.l.b16 %v409
        %v590 = vunpack.c.l.b16 %v410
        %v591 = vunpack.c.l.b16 %v411
        %v592 = vunpack.c.l.b16 %v412
        %v593 = vunpack.c.l.b16 %v413
        %v594 = vunpack.c.l.b16 %v414
        %v595 = vunpack.c.l.b16 %v415
        %v596 = vunpack.c.l.b16 %v416
        %v597 = vunpack.c.l.b16 %v417
        %v598 = vunpack.c.l.b16 %v418
        %v599 = vpack.c.b16 %v568, %v567
        %v600 = vpack.c.b16 %v570, %v569
        %v601 = vpack.c.b16 %v572, %v571
        %v602 = vpack.c.b16 %v574, %v573
        %v603 = vpack.c.b16 %v576, %v575
        %v604 = vpack.c.b16 %v578, %v577
        %v605 = vpack.c.b16 %v580, %v579
        %v606 = vpack.c.b16 %v582, %v581
        %v607 = vpack.c.b16 %v584, %v583
        %v608 = vpack.c.b16 %v586, %v585
        %v609 = vpack.c.b16 %v588, %v587
        %v610 = vpack.c.b16 %v590, %v589
        %v611 = vpack.c.b16 %v592, %v591
        %v612 = vpack.c.b16 %v594, %v593
        %v613 = vpack.c.b16 %v596, %v595
        %v614 = vpack.c.b16 %v598, %v597
        %631 = vmatprep.subr.bf16.mxu0 0
        %632 = vmatpush1.bf16.msra.mxu0 %v599
        %633 = vmatprep.subr.bf16.mxu0 0
        %634 = vmatpush1.bf16.msra.mxu0 %v600
        %635 = vmatprep.subr.bf16.mxu0 0
        %636 = vmatpush1.bf16.msra.mxu0 %v601
        %637 = vmatprep.subr.bf16.mxu0 0
        %638 = vmatpush1.bf16.msra.mxu0 %v602
        %639 = vmatprep.subr.bf16.mxu0 0
        %640 = vmatpush1.bf16.msra.mxu0 %v603
        %641 = vmatprep.subr.bf16.mxu0 0
        %642 = vmatpush1.bf16.msra.mxu0 %v604
        %643 = vmatprep.subr.bf16.mxu0 0
        %644 = vmatpush1.bf16.msra.mxu0 %v605
        %645 = vmatprep.subr.bf16.mxu0 0
        %646 = vmatpush1.bf16.msra.mxu0 %v606
        %647 = vmatprep.subr.bf16.mxu0 0
        %648 = vmatpush1.bf16.msra.mxu0 %v607
        %649 = vmatprep.subr.bf16.mxu0 0
        %650 = vmatpush1.bf16.msra.mxu0 %v608
        %651 = vmatprep.subr.bf16.mxu0 0
        %652 = vmatpush1.bf16.msra.mxu0 %v609
        %653 = vmatprep.subr.bf16.mxu0 0
        %654 = vmatpush1.bf16.msra.mxu0 %v610
        %655 = vmatprep.subr.bf16.mxu0 0
        %656 = vmatpush1.bf16.msra.mxu0 %v611
        %657 = vmatprep.subr.bf16.mxu0 0
        %658 = vmatpush1.bf16.msra.mxu0 %v612
        %659 = vmatprep.subr.bf16.mxu0 0
        %660 = vmatpush1.bf16.msra.mxu0 %v613
        %661 = vmatprep.subr.bf16.mxu0 0
        %662 = vmatpush1.bf16.msra.mxu0 %v614
        %663 = vmatprep.mubr.bf16.mxu0 %v504
        %664 = vmatmul.mubr.bf16.gmra.mrb[0].mxu0 %v503
        %v665 = vpop.f32.mrb[0].mxu0
        %v666 = vadd.f32 0.0, %v665
        %v667 = vpop.f32.mrb[0].mxu0
        %v668 = vpop.f32.mrb[0].mxu0
        %v669 = vadd.f32 0.0, %v668
        %v670 = vpop.f32.mrb[0].mxu0
        %671 = vmatprep.mubr.bf16.mxu0 %v506
        %672 = vmatmul.mubr.bf16.gmra.mrb[0].mxu0 %v505
        %v673 = vpop.f32.mrb[0].mxu0
        %v674 = vadd.f32 0.0, %v673
        %v675 = vpop.f32.mrb[0].mxu0
        %v676 = vpop.f32.mrb[0].mxu0
        %v677 = vadd.f32 0.0, %v676
        %v678 = vpop.f32.mrb[0].mxu0
        %679 = vmatprep.mubr.bf16.mxu0 %v508
        %680 = vmatmul.mubr.bf16.gmra.mrb[0].mxu0 %v507
        %v681 = vpop.f32.mrb[0].mxu0
        %v682 = vadd.f32 0.0, %v681
        %v683 = vpop.f32.mrb[0].mxu0
        %v684 = vpop.f32.mrb[0].mxu0
        %v685 = vadd.f32 0.0, %v684
        %v686 = vpop.f32.mrb[0].mxu0
        %687 = vmatprep.mubr.bf16.mxu0 %v510
        %688 = vmatmul.mubr.bf16.gmra.mrb[0].mxu0 %v509
        %v689 = vpop.f32.mrb[0].mxu0
        %v690 = vadd.f32 0.0, %v689
        %v691 = vpop.f32.mrb[0].mxu0
        %v692 = vpop.f32.mrb[0].mxu0
        %v693 = vadd.f32 0.0, %v692
        %v694 = vpop.f32.mrb[0].mxu0
        %695 = vmatprep.mubr.bf16.mxu0 %v512
        %696 = vmatmul.mubr.bf16.gmra.mrb[0].mxu0 %v511
        %v697 = vpop.f32.mrb[0].mxu0
        %v698 = vadd.f32 0.0, %v697
        %v699 = vpop.f32.mrb[0].mxu0
        %v700 = vpop.f32.mrb[0].mxu0
        %v701 = vadd.f32 0.0, %v700
        %v702 = vpop.f32.mrb[0].mxu0
        %703 = vmatprep.mubr.bf16.mxu0 %v514
        %704 = vmatmul.mubr.bf16.gmra.mrb[0].mxu0 %v513
        %v705 = vpop.f32.mrb[0].mxu0
        %v706 = vadd.f32 0.0, %v705
        %v707 = vpop.f32.mrb[0].mxu0
        %v708 = vpop.f32.mrb[0].mxu0
        %v709 = vadd.f32 0.0, %v708
        %v710 = vpop.f32.mrb[0].mxu0
        %711 = vmatprep.mubr.bf16.mxu0 %v516
        %712 = vmatmul.mubr.bf16.gmra.mrb[0].mxu0 %v515
        %v713 = vpop.f32.mrb[0].mxu0
        %v714 = vadd.f32 0.0, %v713
        %v715 = vpop.f32.mrb[0].mxu0
        %v716 = vpop.f32.mrb[0].mxu0
        %v717 = vadd.f32 0.0, %v716
        %v718 = vpop.f32.mrb[0].mxu0
        %719 = vmatprep.mubr.bf16.mxu0 %v518
        %720 = vmatmul.mubr.bf16.gmra.mrb[0].mxu0 %v517
        %v721 = vpop.f32.mrb[0].mxu0
        %v722 = vadd.f32 0.0, %v721
        %v723 = vpop.f32.mrb[0].mxu0
        %v724 = vpop.f32.mrb[0].mxu0
        %v725 = vadd.f32 0.0, %v724
        %v726 = vpop.f32.mrb[0].mxu0
        %727 = vdwg.mxu0
        %v728 = vadd.f32 %v666, 1.0
        %v729 = vadd.f32 %v669, 1.0
        %v730 = vadd.f32 %v674, 1.0
        %v731 = vadd.f32 %v677, 1.0
        %v732 = vadd.f32 %v682, 1.0
        %v733 = vadd.f32 %v685, 1.0
        %v734 = vadd.f32 %v690, 1.0
        %v735 = vadd.f32 %v693, 1.0
        %v736 = vadd.f32 %v698, 1.0
        %v737 = vadd.f32 %v701, 1.0
        %v738 = vadd.f32 %v706, 1.0
        %v739 = vadd.f32 %v709, 1.0
        %v740 = vadd.f32 %v714, 1.0
        %v741 = vadd.f32 %v717, 1.0
        %v742 = vadd.f32 %v722, 1.0
        %v743 = vadd.f32 %v725, 1.0
        %745 = vset.pattern.permute.xlu0 16
        %746 = vperm.xlu0 %745, %v728
        %v747 = vpop.permute.xlu0 %746
        %750 = vset.pattern.permute.xlu0 16
        %751 = vperm.xlu0 %750, %v729
        %v752 = vpop.permute.xlu0 %751
        %755 = vset.pattern.permute.xlu0 16
        %756 = vperm.xlu0 %755, %v730
        %v757 = vpop.permute.xlu0 %756
        %760 = vset.pattern.permute.xlu0 16
        %761 = vperm.xlu0 %760, %v731
        %v762 = vpop.permute.xlu0 %761
        %765 = vset.pattern.permute.xlu0 16
        %766 = vperm.xlu0 %765, %v732
        %v767 = vpop.permute.xlu0 %766
        %770 = vset.pattern.permute.xlu0 16
        %771 = vperm.xlu0 %770, %v733
        %v772 = vpop.permute.xlu0 %771
        %775 = vset.pattern.permute.xlu0 16
        %776 = vperm.xlu0 %775, %v734
        %v777 = vpop.permute.xlu0 %776
        %780 = vset.pattern.permute.xlu0 16
        %781 = vperm.xlu0 %780, %v735
        %v782 = vpop.permute.xlu0 %781
        %785 = vset.pattern.permute.xlu0 16
        %786 = vperm.xlu0 %785, %v736
        %v787 = vpop.permute.xlu0 %786
        %790 = vset.pattern.permute.xlu0 16
        %791 = vperm.xlu0 %790, %v737
        %v792 = vpop.permute.xlu0 %791
        %795 = vset.pattern.permute.xlu0 16
        %796 = vperm.xlu0 %795, %v738
        %v797 = vpop.permute.xlu0 %796
        %800 = vset.pattern.permute.xlu0 16
        %801 = vperm.xlu0 %800, %v739
        %v802 = vpop.permute.xlu0 %801
        %805 = vset.pattern.permute.xlu0 16
        %806 = vperm.xlu0 %805, %v740
        %v807 = vpop.permute.xlu0 %806
        %810 = vset.pattern.permute.xlu0 16
        %811 = vperm.xlu0 %810, %v741
        %v812 = vpop.permute.xlu0 %811
        %815 = vset.pattern.permute.xlu0 16
        %816 = vperm.xlu0 %815, %v742
        %v817 = vpop.permute.xlu0 %816
        %820 = vset.pattern.permute.xlu0 16
        %821 = vperm.xlu0 %820, %v743
        %v822 = vpop.permute.xlu0 %821
        %v824 = vrcp.pop %v747
        %v825 = vmul.f32 %v666, %v824
        %v826 = vrcp.pop %v752
        %v827 = vmul.f32 %v669, %v826
        %v828 = vrcp.pop %v757
        %v829 = vmul.f32 %v674, %v828
        %v830 = vrcp.pop %v762
        %v831 = vmul.f32 %v677, %v830
        %v832 = vrcp.pop %v767
        %v833 = vmul.f32 %v682, %v832
        %v834 = vrcp.pop %v772
        %v835 = vmul.f32 %v685, %v834
        %v836 = vrcp.pop %v777
        %v837 = vmul.f32 %v690, %v836
        %v838 = vrcp.pop %v782
        %v839 = vmul.f32 %v693, %v838
        %v840 = vrcp.pop %v787
        %v841 = vmul.f32 %v698, %v840
        %v842 = vrcp.pop %v792
        %v843 = vmul.f32 %v701, %v842
        %v844 = vrcp.pop %v797
        %v845 = vmul.f32 %v706, %v844
        %v846 = vrcp.pop %v802
        %v847 = vmul.f32 %v709, %v846
        %v848 = vrcp.pop %v807
        %v849 = vmul.f32 %v714, %v848
        %v850 = vrcp.pop %v812
        %v851 = vmul.f32 %v717, %v850
        %v852 = vrcp.pop %v817
        %v853 = vmul.f32 %v722, %v852
        %v854 = vrcp.pop %v822
        %v855 = vmul.f32 %v725, %v854
        %v856 = vld [vmem:[#allocation7] sm:$0xf]
        %v857 = vld [vmem:[#allocation7 + $0x4] sm:$0xf]
        %v858 = vld [vmem:[#allocation7 + $0x8] sm:$0xf]
        %v859 = vld [vmem:[#allocation7 + $0xc] sm:$0xf]
        %v860 = vpack.c.bf16 %v827, %v825
        %v861 = vpack.c.bf16 %v831, %v829
        %v862 = vpack.c.bf16 %v835, %v833
        %v863 = vpack.c.bf16 %v839, %v837
        %v864 = vpack.c.bf16 %v843, %v841
        %v865 = vpack.c.bf16 %v847, %v845
        %v866 = vpack.c.bf16 %v851, %v849
        %v867 = vpack.c.bf16 %v855, %v853
        %v870 = vunpack.c.l.b16 %v858
        %v871 = vunpack.c.l.b16 %v859
        %v872 = vpack.c.b16 %v871, %v870
        %vm874 = vcmask 130048
        %v876 = vsel %vm874, %v860, 0
        %v879 = vsel %vm874, %v861, 0
        %v882 = vsel %vm874, %v862, 0
        %v885 = vsel %vm874, %v863, 0
        %v888 = vsel %vm874, %v864, 0
        %v891 = vsel %vm874, %v865, 0
        %v894 = vsel %vm874, %v866, 0
        %v897 = vsel %vm874, %v867, 0
        %899 = vmatprep.subr.bf16.mxu0 0
        %900 = vmatpush1.bf16.msra.mxu0 %v872
        %901 = vmatprep.subr.bf16.mxu0 0
        %902 = vmatpush1.bf16.msra.mxu0 0
        %903 = vmatprep.subr.bf16.mxu0 0
        %904 = vmatpush1.bf16.msra.mxu0 0
        %905 = vmatprep.subr.bf16.mxu0 0
        %906 = vmatpush1.bf16.msra.mxu0 0
        %907 = vmatprep.subr.bf16.mxu0 0
        %908 = vmatpush1.bf16.msra.mxu0 0
        %909 = vmatprep.subr.bf16.mxu0 0
        %910 = vmatpush1.bf16.msra.mxu0 0
        %911 = vmatprep.subr.bf16.mxu0 0
        %912 = vmatpush1.bf16.msra.mxu0 0
        %913 = vmatprep.subr.bf16.mxu0 0
        %914 = vmatpush1.bf16.msra.mxu0 0
        %915 = vmatprep.subr.bf16.mxu0 0
        %916 = vmatpush1.bf16.msra.mxu0 0
        %917 = vmatprep.subr.bf16.mxu0 0
        %918 = vmatpush1.bf16.msra.mxu0 0
        %919 = vmatprep.subr.bf16.mxu0 0
        %920 = vmatpush1.bf16.msra.mxu0 0
        %921 = vmatprep.subr.bf16.mxu0 0
        %922 = vmatpush1.bf16.msra.mxu0 0
        %923 = vmatprep.subr.bf16.mxu0 0
        %924 = vmatpush1.bf16.msra.mxu0 0
        %925 = vmatprep.subr.bf16.mxu0 0
        %926 = vmatpush1.bf16.msra.mxu0 0
        %927 = vmatprep.subr.bf16.mxu0 0
        %928 = vmatpush1.bf16.msra.mxu0 0
        %929 = vmatprep.subr.bf16.mxu0 0
        %930 = vmatpush1.bf16.msra.mxu0 0
        %931 = vmatprep.mubr.bf16.mxu0 0
        %932 = vmatmul.mubr.bf16.gmra.mrb[0].mxu0 %v876
        %v933 = vpop.f32.mrb[0].mxu0
        %v934 = vadd.f32 0.0, %v933
        %v935 = vpop.f32.mrb[0].mxu0
        %v936 = vpop.f32.mrb[0].mxu0
        %v937 = vadd.f32 0.0, %v936
        %v938 = vpop.f32.mrb[0].mxu0
        %939 = vmatprep.mubr.bf16.mxu0 0
        %940 = vmatmul.mubr.bf16.gmra.mrb[0].mxu0 %v879
        %v941 = vpop.f32.mrb[0].mxu0
        %v942 = vadd.f32 0.0, %v941
        %v943 = vpop.f32.mrb[0].mxu0
        %v944 = vpop.f32.mrb[0].mxu0
        %v945 = vadd.f32 0.0, %v944
        %v946 = vpop.f32.mrb[0].mxu0
        %947 = vmatprep.mubr.bf16.mxu0 0
        %948 = vmatmul.mubr.bf16.gmra.mrb[0].mxu0 %v882
        %v949 = vpop.f32.mrb[0].mxu0
        %v950 = vadd.f32 0.0, %v949
        %v951 = vpop.f32.mrb[0].mxu0
        %v952 = vpop.f32.mrb[0].mxu0
        %v953 = vadd.f32 0.0, %v952
        %v954 = vpop.f32.mrb[0].mxu0
        %955 = vmatprep.mubr.bf16.mxu0 0
        %956 = vmatmul.mubr.bf16.gmra.mrb[0].mxu0 %v885
        %v957 = vpop.f32.mrb[0].mxu0
        %v958 = vadd.f32 0.0, %v957
        %v959 = vpop.f32.mrb[0].mxu0
        %v960 = vpop.f32.mrb[0].mxu0
        %v961 = vadd.f32 0.0, %v960
        %v962 = vpop.f32.mrb[0].mxu0
        %963 = vmatprep.mubr.bf16.mxu0 0
        %964 = vmatmul.mubr.bf16.gmra.mrb[0].mxu0 %v888
        %v965 = vpop.f32.mrb[0].mxu0
        %v966 = vadd.f32 0.0, %v965
        %v967 = vpop.f32.mrb[0].mxu0
        %v968 = vpop.f32.mrb[0].mxu0
        %v969 = vadd.f32 0.0, %v968
        %v970 = vpop.f32.mrb[0].mxu0
        %971 = vmatprep.mubr.bf16.mxu0 0
        %972 = vmatmul.mubr.bf16.gmra.mrb[0].mxu0 %v891
        %v973 = vpop.f32.mrb[0].mxu0
        %v974 = vadd.f32 0.0, %v973
        %v975 = vpop.f32.mrb[0].mxu0
        %v976 = vpop.f32.mrb[0].mxu0
        %v977 = vadd.f32 0.0, %v976
        %v978 = vpop.f32.mrb[0].mxu0
        %979 = vmatprep.mubr.bf16.mxu0 0
        %980 = vmatmul.mubr.bf16.gmra.mrb[0].mxu0 %v894
        %v981 = vpop.f32.mrb[0].mxu0
        %v982 = vadd.f32 0.0, %v981
        %v983 = vpop.f32.mrb[0].mxu0
        %v984 = vpop.f32.mrb[0].mxu0
        %v985 = vadd.f32 0.0, %v984
        %v986 = vpop.f32.mrb[0].mxu0
        %987 = vmatprep.mubr.bf16.mxu0 0
        %988 = vmatmul.mubr.bf16.gmra.mrb[0].mxu0 %v897
        %v989 = vpop.f32.mrb[0].mxu0
        %v990 = vadd.f32 0.0, %v989
        %v991 = vpop.f32.mrb[0].mxu0
        %v992 = vpop.f32.mrb[0].mxu0
        %v993 = vadd.f32 0.0, %v992
        %v994 = vpop.f32.mrb[0].mxu0
        %995 = vdwg.mxu0
        %v1012 = vunpack.c.l.b16 %v423
        %v1013 = vunpack.c.l.b16 %v424
        %v1014 = vunpack.c.l.b16 %v425
        %v1015 = vunpack.c.l.b16 %v426
        %v1016 = vunpack.c.l.b16 %v427
        %v1017 = vunpack.c.l.b16 %v428
        %v1018 = vunpack.c.l.b16 %v429
        %v1019 = vunpack.c.l.b16 %v430
        %v1020 = vunpack.c.l.b16 %v431
        %v1021 = vunpack.c.l.b16 %v432
        %v1022 = vunpack.c.l.b16 %v433
        %v1023 = vunpack.c.l.b16 %v434
        %v1024 = vunpack.c.l.b16 %v435
        %v1025 = vunpack.c.l.b16 %v436
        %v1026 = vunpack.c.l.b16 %v437
        %v1027 = vunpack.c.l.b16 %v438
        %v1028 = vpack.c.b16 %v1013, %v1012
        %v1029 = vpack.c.b16 %v1015, %v1014
        %v1030 = vpack.c.b16 %v1017, %v1016
        %v1031 = vpack.c.b16 %v1019, %v1018
        %v1032 = vpack.c.b16 %v1021, %v1020
        %v1033 = vpack.c.b16 %v1023, %v1022
        %v1034 = vpack.c.b16 %v1025, %v1024
        %v1035 = vpack.c.b16 %v1027, %v1026
        %v1038 = vunpack.c.l.b16 %v856
        %v1039 = vunpack.c.l.b16 %v857
        %v1040 = vpack.c.b16 %v1039, %v1038
        %v1043 = vsel %vm874, %v1028, 0
        %v1046 = vsel %vm874, %v1029, 0
        %v1049 = vsel %vm874, %v1030, 0
        %v1052 = vsel %vm874, %v1031, 0
        %v1055 = vsel %vm874, %v1032, 0
        %v1058 = vsel %vm874, %v1033, 0
        %v1061 = vsel %vm874, %v1034, 0
        %v1064 = vsel %vm874, %v1035, 0
        %1066 = vmatprep.subr.bf16.mxu0 0
        %1067 = vmatpush1.bf16.msra.mxu0 %v1040
        %1068 = vmatprep.subr.bf16.mxu0 0
        %1069 = vmatpush1.bf16.msra.mxu0 0
        %1070 = vmatprep.subr.bf16.mxu0 0
        %1071 = vmatpush1.bf16.msra.mxu0 0
        %1072 = vmatprep.subr.bf16.mxu0 0
        %1073 = vmatpush1.bf16.msra.mxu0 0
        %1074 = vmatprep.subr.bf16.mxu0 0
        %1075 = vmatpush1.bf16.msra.mxu0 0
        %1076 = vmatprep.subr.bf16.mxu0 0
        %1077 = vmatpush1.bf16.msra.mxu0 0
        %1078 = vmatprep.subr.bf16.mxu0 0
        %1079 = vmatpush1.bf16.msra.mxu0 0
        %1080 = vmatprep.subr.bf16.mxu0 0
        %1081 = vmatpush1.bf16.msra.mxu0 0
        %1082 = vmatprep.subr.bf16.mxu0 0
        %1083 = vmatpush1.bf16.msra.mxu0 0
        %1084 = vmatprep.subr.bf16.mxu0 0
        %1085 = vmatpush1.bf16.msra.mxu0 0
        %1086 = vmatprep.subr.bf16.mxu0 0
        %1087 = vmatpush1.bf16.msra.mxu0 0
        %1088 = vmatprep.subr.bf16.mxu0 0
        %1089 = vmatpush1.bf16.msra.mxu0 0
        %1090 = vmatprep.subr.bf16.mxu0 0
        %1091 = vmatpush1.bf16.msra.mxu0 0
        %1092 = vmatprep.subr.bf16.mxu0 0
        %1093 = vmatpush1.bf16.msra.mxu0 0
        %1094 = vmatprep.subr.bf16.mxu0 0
        %1095 = vmatpush1.bf16.msra.mxu0 0
        %1096 = vmatprep.subr.bf16.mxu0 0
        %1097 = vmatpush1.bf16.msra.mxu0 0
        %1098 = vmatprep.mubr.bf16.mxu0 0
        %1099 = vmatmul.mubr.bf16.gmra.mrb[0].mxu0 %v1043
        %v1100 = vpop.f32.mrb[0].mxu0
        %v1101 = vadd.f32 %v934, %v1100
        %v1102 = vpop.f32.mrb[0].mxu0
        %v1103 = vpop.f32.mrb[0].mxu0
        %v1104 = vadd.f32 %v937, %v1103
        %v1105 = vpop.f32.mrb[0].mxu0
        %1106 = vmatprep.mubr.bf16.mxu0 0
        %1107 = vmatmul.mubr.bf16.gmra.mrb[0].mxu0 %v1046
        %v1108 = vpop.f32.mrb[0].mxu0
        %v1109 = vadd.f32 %v942, %v1108
        %v1110 = vpop.f32.mrb[0].mxu0
        %v1111 = vpop.f32.mrb[0].mxu0
        %v1112 = vadd.f32 %v945, %v1111
        %v1113 = vpop.f32.mrb[0].mxu0
        %1114 = vmatprep.mubr.bf16.mxu0 0
        %1115 = vmatmul.mubr.bf16.gmra.mrb[0].mxu0 %v1049
        %v1116 = vpop.f32.mrb[0].mxu0
        %v1117 = vadd.f32 %v950, %v1116
        %v1118 = vpop.f32.mrb[0].mxu0
        %v1119 = vpop.f32.mrb[0].mxu0
        %v1120 = vadd.f32 %v953, %v1119
        %v1121 = vpop.f32.mrb[0].mxu0
        %1122 = vmatprep.mubr.bf16.mxu0 0
        %1123 = vmatmul.mubr.bf16.gmra.mrb[0].mxu0 %v1052
        %v1124 = vpop.f32.mrb[0].mxu0
        %v1125 = vadd.f32 %v958, %v1124
        %v1126 = vpop.f32.mrb[0].mxu0
        %v1127 = vpop.f32.mrb[0].mxu0
        %v1128 = vadd.f32 %v961, %v1127
        %v1129 = vpop.f32.mrb[0].mxu0
        %1130 = vmatprep.mubr.bf16.mxu0 0
        %1131 = vmatmul.mubr.bf16.gmra.mrb[0].mxu0 %v1055
        %v1132 = vpop.f32.mrb[0].mxu0
        %v1133 = vadd.f32 %v966, %v1132
        %v1134 = vpop.f32.mrb[0].mxu0
        %v1135 = vpop.f32.mrb[0].mxu0
        %v1136 = vadd.f32 %v969, %v1135
        %v1137 = vpop.f32.mrb[0].mxu0
        %1138 = vmatprep.mubr.bf16.mxu0 0
        %1139 = vmatmul.mubr.bf16.gmra.mrb[0].mxu0 %v1058
        %v1140 = vpop.f32.mrb[0].mxu0
        %v1141 = vadd.f32 %v974, %v1140
        %v1142 = vpop.f32.mrb[0].mxu0
        %v1143 = vpop.f32.mrb[0].mxu0
        %v1144 = vadd.f32 %v977, %v1143
        %v1145 = vpop.f32.mrb[0].mxu0
        %1146 = vmatprep.mubr.bf16.mxu0 0
        %1147 = vmatmul.mubr.bf16.gmra.mrb[0].mxu0 %v1061
        %v1148 = vpop.f32.mrb[0].mxu0
        %v1149 = vadd.f32 %v982, %v1148
        %v1150 = vpop.f32.mrb[0].mxu0
        %v1151 = vpop.f32.mrb[0].mxu0
        %v1152 = vadd.f32 %v985, %v1151
        %v1153 = vpop.f32.mrb[0].mxu0
        %1154 = vmatprep.mubr.bf16.mxu0 0
        %1155 = vmatmul.mubr.bf16.gmra.mrb[0].mxu0 %v1064
        %v1156 = vpop.f32.mrb[0].mxu0
        %v1157 = vadd.f32 %v990, %v1156
        %v1158 = vpop.f32.mrb[0].mxu0
        %v1159 = vpop.f32.mrb[0].mxu0
        %v1160 = vadd.f32 %v993, %v1159
        %v1161 = vpop.f32.mrb[0].mxu0
        %1162 = vdwg.mxu0
        %v1163 = vmax.f32 %v1101, 0.0
        %v1164 = vmax.f32 %v1104, 0.0
        %v1165 = vmax.f32 %v1109, 0.0
        %v1166 = vmax.f32 %v1112, 0.0
        %v1167 = vmax.f32 %v1117, 0.0
        %v1168 = vmax.f32 %v1120, 0.0
        %v1169 = vmax.f32 %v1125, 0.0
        %v1170 = vmax.f32 %v1128, 0.0
        %v1171 = vmax.f32 %v1133, 0.0
        %v1172 = vmax.f32 %v1136, 0.0
        %v1173 = vmax.f32 %v1141, 0.0
        %v1174 = vmax.f32 %v1144, 0.0
        %v1175 = vmax.f32 %v1149, 0.0
        %v1176 = vmax.f32 %v1152, 0.0
        %v1177 = vmax.f32 %v1157, 0.0
        %v1178 = vmax.f32 %v1160, 0.0
        %v1179 = vld [vmem:[#allocation13] sm:$0x7]
        %v1180 = vpack.c.bf16 %v1164, %v1163
        %v1181 = vpack.c.bf16 %v1166, %v1165
        %v1182 = vpack.c.bf16 %v1168, %v1167
        %v1183 = vpack.c.bf16 %v1170, %v1169
        %v1184 = vpack.c.bf16 %v1172, %v1171
        %v1185 = vpack.c.bf16 %v1174, %v1173
        %v1186 = vpack.c.bf16 %v1176, %v1175
        %v1187 = vpack.c.bf16 %v1178, %v1177
        %v1188 = vld [vmem:[#allocation8] sm:$0xf]
        %v1189 = vld [vmem:[#allocation8 + $0x4] sm:$0xf]
        %v1190 = vld [vmem:[#allocation8 + $0x8] sm:$0xf]
        %v1191 = vld [vmem:[#allocation8 + $0xc] sm:$0xf]
        %v1192 = vlaneseq
        %v1193 = vshrl.u32 %v1192, 7
        %v1194 = vsub.s32 0, %v1193
        %v1195 = vrot.slane %v1179, %v1194
        %v1200 = vunpack.c.l.b16 %v1188
        %v1201 = vunpack.c.l.b16 %v1189
        %v1202 = vunpack.c.l.b16 %v1190
        %v1203 = vunpack.c.l.b16 %v1191
        %v1204 = vpack.c.b16 %v1201, %v1200
        %v1205 = vpack.c.b16 %v1203, %v1202
        %vm1208 = vcmask 261120
        %v1210 = vsel %vm1208, %v1180, 0
        %v1213 = vsel %vm1208, %v1181, 0
        %v1216 = vsel %vm1208, %v1182, 0
        %v1219 = vsel %vm1208, %v1183, 0
        %v1222 = vsel %vm1208, %v1184, 0
        %v1225 = vsel %vm1208, %v1185, 0
        %v1228 = vsel %vm1208, %v1186, 0
        %v1231 = vsel %vm1208, %v1187, 0
        %1233 = vmatprep.subr.bf16.mxu0 0
        %1234 = vmatpush1.bf16.msra.mxu0 %v1204
        %1235 = vmatprep.subr.bf16.mxu0 0
        %1236 = vmatpush1.bf16.msra.mxu0 %v1205
        %1237 = vmatprep.subr.bf16.mxu0 0
        %1238 = vmatpush1.bf16.msra.mxu0 0
        %1239 = vmatprep.subr.bf16.mxu0 0
        %1240 = vmatpush1.bf16.msra.mxu0 0
        %1241 = vmatprep.subr.bf16.mxu0 0
        %1242 = vmatpush1.bf16.msra.mxu0 0
        %1243 = vmatprep.subr.bf16.mxu0 0
        %1244 = vmatpush1.bf16.msra.mxu0 0
        %1245 = vmatprep.subr.bf16.mxu0 0
        %1246 = vmatpush1.bf16.msra.mxu0 0
        %1247 = vmatprep.subr.bf16.mxu0 0
        %1248 = vmatpush1.bf16.msra.mxu0 0
        %1249 = vmatprep.subr.bf16.mxu0 0
        %1250 = vmatpush1.bf16.msra.mxu0 0
        %1251 = vmatprep.subr.bf16.mxu0 0
        %1252 = vmatpush1.bf16.msra.mxu0 0
        %1253 = vmatprep.subr.bf16.mxu0 0
        %1254 = vmatpush1.bf16.msra.mxu0 0
        %1255 = vmatprep.subr.bf16.mxu0 0
        %1256 = vmatpush1.bf16.msra.mxu0 0
        %1257 = vmatprep.subr.bf16.mxu0 0
        %1258 = vmatpush1.bf16.msra.mxu0 0
        %1259 = vmatprep.subr.bf16.mxu0 0
        %1260 = vmatpush1.bf16.msra.mxu0 0
        %1261 = vmatprep.subr.bf16.mxu0 0
        %1262 = vmatpush1.bf16.msra.mxu0 0
        %1263 = vmatprep.subr.bf16.mxu0 0
        %1264 = vmatpush1.bf16.msra.mxu0 0
        %1265 = vmatprep.mubr.bf16.mxu0 0
        %1266 = vmatmul.mubr.bf16.gmra.mrb[0].mxu0 %v1210
        %v1267 = vpop.f32.mrb[0].mxu0
        %v1268 = vadd.f32 %v1195, %v1267
        %v1269 = vpop.f32.mrb[0].mxu0
        %v1270 = vpop.f32.mrb[0].mxu0
        %v1271 = vadd.f32 %v1195, %v1270
        %v1272 = vpop.f32.mrb[0].mxu0
        %1273 = vmatprep.mubr.bf16.mxu0 0
        %1274 = vmatmul.mubr.bf16.gmra.mrb[0].mxu0 %v1213
        %v1275 = vpop.f32.mrb[0].mxu0
        %v1276 = vadd.f32 %v1195, %v1275
        %v1277 = vpop.f32.mrb[0].mxu0
        %v1278 = vpop.f32.mrb[0].mxu0
        %v1279 = vadd.f32 %v1195, %v1278
        %v1280 = vpop.f32.mrb[0].mxu0
        %1281 = vmatprep.mubr.bf16.mxu0 0
        %1282 = vmatmul.mubr.bf16.gmra.mrb[0].mxu0 %v1216
        %v1283 = vpop.f32.mrb[0].mxu0
        %v1284 = vadd.f32 %v1195, %v1283
        %v1285 = vpop.f32.mrb[0].mxu0
        %v1286 = vpop.f32.mrb[0].mxu0
        %v1287 = vadd.f32 %v1195, %v1286
        %v1288 = vpop.f32.mrb[0].mxu0
        %1289 = vmatprep.mubr.bf16.mxu0 0
        %1290 = vmatmul.mubr.bf16.gmra.mrb[0].mxu0 %v1219
        %v1291 = vpop.f32.mrb[0].mxu0
        %v1292 = vadd.f32 %v1195, %v1291
        %v1293 = vpop.f32.mrb[0].mxu0
        %v1294 = vpop.f32.mrb[0].mxu0
        %v1295 = vadd.f32 %v1195, %v1294
        %v1296 = vpop.f32.mrb[0].mxu0
        %1297 = vmatprep.mubr.bf16.mxu0 0
        %1298 = vmatmul.mubr.bf16.gmra.mrb[0].mxu0 %v1222
        %v1299 = vpop.f32.mrb[0].mxu0
        %v1300 = vadd.f32 %v1195, %v1299
        %v1301 = vpop.f32.mrb[0].mxu0
        %v1302 = vpop.f32.mrb[0].mxu0
        %v1303 = vadd.f32 %v1195, %v1302
        %v1304 = vpop.f32.mrb[0].mxu0
        %1305 = vmatprep.mubr.bf16.mxu0 0
        %1306 = vmatmul.mubr.bf16.gmra.mrb[0].mxu0 %v1225
        %v1307 = vpop.f32.mrb[0].mxu0
        %v1308 = vadd.f32 %v1195, %v1307
        %v1309 = vpop.f32.mrb[0].mxu0
        %v1310 = vpop.f32.mrb[0].mxu0
        %v1311 = vadd.f32 %v1195, %v1310
        %v1312 = vpop.f32.mrb[0].mxu0
        %1313 = vmatprep.mubr.bf16.mxu0 0
        %1314 = vmatmul.mubr.bf16.gmra.mrb[0].mxu0 %v1228
        %v1315 = vpop.f32.mrb[0].mxu0
        %v1316 = vadd.f32 %v1195, %v1315
        %v1317 = vpop.f32.mrb[0].mxu0
        %v1318 = vpop.f32.mrb[0].mxu0
        %v1319 = vadd.f32 %v1195, %v1318
        %v1320 = vpop.f32.mrb[0].mxu0
        %1321 = vmatprep.mubr.bf16.mxu0 0
        %1322 = vmatmul.mubr.bf16.gmra.mrb[0].mxu0 %v1231
        %v1323 = vpop.f32.mrb[0].mxu0
        %v1324 = vadd.f32 %v1195, %v1323
        %v1325 = vpop.f32.mrb[0].mxu0
        %v1326 = vpop.f32.mrb[0].mxu0
        %v1327 = vadd.f32 %v1195, %v1326
        %v1328 = vpop.f32.mrb[0].mxu0
        %1329 = vdwg.mxu0
        %vm1330 = vcmp.gt.f32.partialorder %v1268, 0.0
        %vm1331 = vcmp.gt.f32.partialorder %v1271, 0.0
        %vm1332 = vcmp.gt.f32.partialorder %v1276, 0.0
        %vm1333 = vcmp.gt.f32.partialorder %v1279, 0.0
        %vm1334 = vcmp.gt.f32.partialorder %v1284, 0.0
        %vm1335 = vcmp.gt.f32.partialorder %v1287, 0.0
        %vm1336 = vcmp.gt.f32.partialorder %v1292, 0.0
        %vm1337 = vcmp.gt.f32.partialorder %v1295, 0.0
        %vm1338 = vcmp.gt.f32.partialorder %v1300, 0.0
        %vm1339 = vcmp.gt.f32.partialorder %v1303, 0.0
        %vm1340 = vcmp.gt.f32.partialorder %v1308, 0.0
        %vm1341 = vcmp.gt.f32.partialorder %v1311, 0.0
        %vm1342 = vcmp.gt.f32.partialorder %v1316, 0.0
        %vm1343 = vcmp.gt.f32.partialorder %v1319, 0.0
        %vm1344 = vcmp.gt.f32.partialorder %v1324, 0.0
        %vm1345 = vcmp.gt.f32.partialorder %v1327, 0.0
        %v1346 = vmul.f32 %v1268, 0.01
        %v1347 = vmul.f32 %v1271, 0.01
        %v1348 = vmul.f32 %v1276, 0.01
        %v1349 = vmul.f32 %v1279, 0.01
        %v1350 = vmul.f32 %v1284, 0.01
        %v1351 = vmul.f32 %v1287, 0.01
        %v1352 = vmul.f32 %v1292, 0.01
        %v1353 = vmul.f32 %v1295, 0.01
        %v1354 = vmul.f32 %v1300, 0.01
        %v1355 = vmul.f32 %v1303, 0.01
        %v1356 = vmul.f32 %v1308, 0.01
        %v1357 = vmul.f32 %v1311, 0.01
        %v1358 = vmul.f32 %v1316, 0.01
        %v1359 = vmul.f32 %v1319, 0.01
        %v1360 = vmul.f32 %v1324, 0.01
        %v1361 = vmul.f32 %v1327, 0.01
        %v1362 = vsel %vm1330, %v1268, %v1346
        %v1363 = vsel %vm1331, %v1271, %v1347
        %v1364 = vsel %vm1332, %v1276, %v1348
        %v1365 = vsel %vm1333, %v1279, %v1349
        %v1366 = vsel %vm1334, %v1284, %v1350
        %v1367 = vsel %vm1335, %v1287, %v1351
        %v1368 = vsel %vm1336, %v1292, %v1352
        %v1369 = vsel %vm1337, %v1295, %v1353
        %v1370 = vsel %vm1338, %v1300, %v1354
        %v1371 = vsel %vm1339, %v1303, %v1355
        %v1372 = vsel %vm1340, %v1308, %v1356
        %v1373 = vsel %vm1341, %v1311, %v1357
        %v1374 = vsel %vm1342, %v1316, %v1358
        %v1375 = vsel %vm1343, %v1319, %v1359
        %v1376 = vsel %vm1344, %v1324, %v1360
        %v1377 = vsel %vm1345, %v1327, %v1361
        %v1378 = vpack.c.bf16 %v1363, %v1362
        %v1379 = vpack.c.bf16 %v1365, %v1364
        %v1380 = vpack.c.bf16 %v1367, %v1366
        %v1381 = vpack.c.bf16 %v1369, %v1368
        %v1382 = vpack.c.bf16 %v1371, %v1370
        %v1383 = vpack.c.bf16 %v1373, %v1372
        %v1384 = vpack.c.bf16 %v1375, %v1374
        %v1385 = vpack.c.bf16 %v1377, %v1376
        %v1386 = vld [vmem:[#allocation10] sm:$0xf]
        %v1387 = vld [vmem:[#allocation10 + $0x4] sm:$0xf]
        %v1388 = vld [vmem:[#allocation10 + $0x8] sm:$0xf]
        %v1389 = vld [vmem:[#allocation10 + $0xc] sm:$0xf]
        %v1390 = vlaneseq
        %v1391 = vshrl.u32 %v1390, 7
        %v1392 = vsub.s32 1, %v1391
        %v1393 = vrot.slane %v1179, %v1392
        %v1398 = vunpack.c.l.b16 %v1386
        %v1399 = vunpack.c.l.b16 %v1387
        %v1400 = vunpack.c.l.b16 %v1388
        %v1401 = vunpack.c.l.b16 %v1389
        %v1402 = vpack.c.b16 %v1399, %v1398
        %v1403 = vpack.c.b16 %v1401, %v1400
        %v1407 = vsel %vm1208, %v1378, 0
        %v1410 = vsel %vm1208, %v1379, 0
        %v1413 = vsel %vm1208, %v1380, 0
        %v1416 = vsel %vm1208, %v1381, 0
        %v1419 = vsel %vm1208, %v1382, 0
        %v1422 = vsel %vm1208, %v1383, 0
        %v1425 = vsel %vm1208, %v1384, 0
        %v1428 = vsel %vm1208, %v1385, 0
        %1430 = vmatprep.subr.bf16.mxu0 0
        %1431 = vmatpush1.bf16.msra.mxu0 %v1402
        %1432 = vmatprep.subr.bf16.mxu0 0
        %1433 = vmatpush1.bf16.msra.mxu0 %v1403
        %1434 = vmatprep.subr.bf16.mxu0 0
        %1435 = vmatpush1.bf16.msra.mxu0 0
        %1436 = vmatprep.subr.bf16.mxu0 0
        %1437 = vmatpush1.bf16.msra.mxu0 0
        %1438 = vmatprep.subr.bf16.mxu0 0
        %1439 = vmatpush1.bf16.msra.mxu0 0
        %1440 = vmatprep.subr.bf16.mxu0 0
        %1441 = vmatpush1.bf16.msra.mxu0 0
        %1442 = vmatprep.subr.bf16.mxu0 0
        %1443 = vmatpush1.bf16.msra.mxu0 0
        %1444 = vmatprep.subr.bf16.mxu0 0
        %1445 = vmatpush1.bf16.msra.mxu0 0
        %1446 = vmatprep.subr.bf16.mxu0 0
        %1447 = vmatpush1.bf16.msra.mxu0 0
        %1448 = vmatprep.subr.bf16.mxu0 0
        %1449 = vmatpush1.bf16.msra.mxu0 0
        %1450 = vmatprep.subr.bf16.mxu0 0
        %1451 = vmatpush1.bf16.msra.mxu0 0
        %1452 = vmatprep.subr.bf16.mxu0 0
        %1453 = vmatpush1.bf16.msra.mxu0 0
        %1454 = vmatprep.subr.bf16.mxu0 0
        %1455 = vmatpush1.bf16.msra.mxu0 0
        %1456 = vmatprep.subr.bf16.mxu0 0
        %1457 = vmatpush1.bf16.msra.mxu0 0
        %1458 = vmatprep.subr.bf16.mxu0 0
        %1459 = vmatpush1.bf16.msra.mxu0 0
        %1460 = vmatprep.subr.bf16.mxu0 0
        %1461 = vmatpush1.bf16.msra.mxu0 0
        %1462 = vmatprep.mubr.bf16.mxu0 0
        %1463 = vmatmul.mubr.bf16.gmra.mrb[0].mxu0 %v1407
        %v1464 = vpop.f32.mrb[0].mxu0
        %v1465 = vadd.f32 %v1393, %v1464
        %v1466 = vpop.f32.mrb[0].mxu0
        %v1467 = vpop.f32.mrb[0].mxu0
        %v1468 = vadd.f32 %v1393, %v1467
        %v1469 = vpop.f32.mrb[0].mxu0
        %1470 = vmatprep.mubr.bf16.mxu0 0
        %1471 = vmatmul.mubr.bf16.gmra.mrb[0].mxu0 %v1410
        %v1472 = vpop.f32.mrb[0].mxu0
        %v1473 = vadd.f32 %v1393, %v1472
        %v1474 = vpop.f32.mrb[0].mxu0
        %v1475 = vpop.f32.mrb[0].mxu0
        %v1476 = vadd.f32 %v1393, %v1475
        %v1477 = vpop.f32.mrb[0].mxu0
        %1478 = vmatprep.mubr.bf16.mxu0 0
        %1479 = vmatmul.mubr.bf16.gmra.mrb[0].mxu0 %v1413
        %v1480 = vpop.f32.mrb[0].mxu0
        %v1481 = vadd.f32 %v1393, %v1480
        %v1482 = vpop.f32.mrb[0].mxu0
        %v1483 = vpop.f32.mrb[0].mxu0
        %v1484 = vadd.f32 %v1393, %v1483
        %v1485 = vpop.f32.mrb[0].mxu0
        %1486 = vmatprep.mubr.bf16.mxu0 0
        %1487 = vmatmul.mubr.bf16.gmra.mrb[0].mxu0 %v1416
        %v1488 = vpop.f32.mrb[0].mxu0
        %v1489 = vadd.f32 %v1393, %v1488
        %v1490 = vpop.f32.mrb[0].mxu0
        %v1491 = vpop.f32.mrb[0].mxu0
        %v1492 = vadd.f32 %v1393, %v1491
        %v1493 = vpop.f32.mrb[0].mxu0
        %1494 = vmatprep.mubr.bf16.mxu0 0
        %1495 = vmatmul.mubr.bf16.gmra.mrb[0].mxu0 %v1419
        %v1496 = vpop.f32.mrb[0].mxu0
        %v1497 = vadd.f32 %v1393, %v1496
        %v1498 = vpop.f32.mrb[0].mxu0
        %v1499 = vpop.f32.mrb[0].mxu0
        %v1500 = vadd.f32 %v1393, %v1499
        %v1501 = vpop.f32.mrb[0].mxu0
        %1502 = vmatprep.mubr.bf16.mxu0 0
        %1503 = vmatmul.mubr.bf16.gmra.mrb[0].mxu0 %v1422
        %v1504 = vpop.f32.mrb[0].mxu0
        %v1505 = vadd.f32 %v1393, %v1504
        %v1506 = vpop.f32.mrb[0].mxu0
        %v1507 = vpop.f32.mrb[0].mxu0
        %v1508 = vadd.f32 %v1393, %v1507
        %v1509 = vpop.f32.mrb[0].mxu0
        %1510 = vmatprep.mubr.bf16.mxu0 0
        %1511 = vmatmul.mubr.bf16.gmra.mrb[0].mxu0 %v1425
        %v1512 = vpop.f32.mrb[0].mxu0
        %v1513 = vadd.f32 %v1393, %v1512
        %v1514 = vpop.f32.mrb[0].mxu0
        %v1515 = vpop.f32.mrb[0].mxu0
        %v1516 = vadd.f32 %v1393, %v1515
        %v1517 = vpop.f32.mrb[0].mxu0
        %1518 = vmatprep.mubr.bf16.mxu0 0
        %1519 = vmatmul.mubr.bf16.gmra.mrb[0].mxu0 %v1428
        %v1520 = vpop.f32.mrb[0].mxu0
        %v1521 = vadd.f32 %v1393, %v1520
        %v1522 = vpop.f32.mrb[0].mxu0
        %v1523 = vpop.f32.mrb[0].mxu0
        %v1524 = vadd.f32 %v1393, %v1523
        %v1525 = vpop.f32.mrb[0].mxu0
        %1526 = vdwg.mxu0
        %vm1527 = vcmp.gt.f32.partialorder %v1465, 0.0
        %vm1528 = vcmp.gt.f32.partialorder %v1468, 0.0
        %vm1529 = vcmp.gt.f32.partialorder %v1473, 0.0
        %vm1530 = vcmp.gt.f32.partialorder %v1476, 0.0
        %vm1531 = vcmp.gt.f32.partialorder %v1481, 0.0
        %vm1532 = vcmp.gt.f32.partialorder %v1484, 0.0
        %vm1533 = vcmp.gt.f32.partialorder %v1489, 0.0
        %vm1534 = vcmp.gt.f32.partialorder %v1492, 0.0
        %vm1535 = vcmp.gt.f32.partialorder %v1497, 0.0
        %vm1536 = vcmp.gt.f32.partialorder %v1500, 0.0
        %vm1537 = vcmp.gt.f32.partialorder %v1505, 0.0
        %vm1538 = vcmp.gt.f32.partialorder %v1508, 0.0
        %vm1539 = vcmp.gt.f32.partialorder %v1513, 0.0
        %vm1540 = vcmp.gt.f32.partialorder %v1516, 0.0
        %vm1541 = vcmp.gt.f32.partialorder %v1521, 0.0
        %vm1542 = vcmp.gt.f32.partialorder %v1524, 0.0
        %v1543 = vmul.f32 %v1465, 0.01
        %v1544 = vmul.f32 %v1468, 0.01
        %v1545 = vmul.f32 %v1473, 0.01
        %v1546 = vmul.f32 %v1476, 0.01
        %v1547 = vmul.f32 %v1481, 0.01
        %v1548 = vmul.f32 %v1484, 0.01
        %v1549 = vmul.f32 %v1489, 0.01
        %v1550 = vmul.f32 %v1492, 0.01
        %v1551 = vmul.f32 %v1497, 0.01
        %v1552 = vmul.f32 %v1500, 0.01
        %v1553 = vmul.f32 %v1505, 0.01
        %v1554 = vmul.f32 %v1508, 0.01
        %v1555 = vmul.f32 %v1513, 0.01
        %v1556 = vmul.f32 %v1516, 0.01
        %v1557 = vmul.f32 %v1521, 0.01
        %v1558 = vmul.f32 %v1524, 0.01
        %v1559 = vsel %vm1527, %v1465, %v1543
        %v1560 = vsel %vm1528, %v1468, %v1544
        %v1561 = vsel %vm1529, %v1473, %v1545
        %v1562 = vsel %vm1530, %v1476, %v1546
        %v1563 = vsel %vm1531, %v1481, %v1547
        %v1564 = vsel %vm1532, %v1484, %v1548
        %v1565 = vsel %vm1533, %v1489, %v1549
        %v1566 = vsel %vm1534, %v1492, %v1550
        %v1567 = vsel %vm1535, %v1497, %v1551
        %v1568 = vsel %vm1536, %v1500, %v1552
        %v1569 = vsel %vm1537, %v1505, %v1553
        %v1570 = vsel %vm1538, %v1508, %v1554
        %v1571 = vsel %vm1539, %v1513, %v1555
        %v1572 = vsel %vm1540, %v1516, %v1556
        %v1573 = vsel %vm1541, %v1521, %v1557
        %v1574 = vsel %vm1542, %v1524, %v1558
        %v1575 = vpack.c.bf16 %v1560, %v1559
        %v1576 = vpack.c.bf16 %v1562, %v1561
        %v1577 = vpack.c.bf16 %v1564, %v1563
        %v1578 = vpack.c.bf16 %v1566, %v1565
        %v1579 = vpack.c.bf16 %v1568, %v1567
        %v1580 = vpack.c.bf16 %v1570, %v1569
        %v1581 = vpack.c.bf16 %v1572, %v1571
        %v1582 = vpack.c.bf16 %v1574, %v1573
        %v1583 = vld [vmem:[#allocation11] sm:$0xf]
        %v1584 = vld [vmem:[#allocation11 + $0x4] sm:$0xf]
        %v1585 = vld [vmem:[#allocation11 + $0x8] sm:$0xf]
        %v1586 = vld [vmem:[#allocation11 + $0xc] sm:$0xf]
        %v1587 = vlaneseq
        %v1588 = vshrl.u32 %v1587, 7
        %v1589 = vsub.s32 2, %v1588
        %v1590 = vrot.slane %v1179, %v1589
        %v1595 = vunpack.c.l.b16 %v1583
        %v1596 = vunpack.c.l.b16 %v1584
        %v1597 = vunpack.c.l.b16 %v1585
        %v1598 = vunpack.c.l.b16 %v1586
        %v1599 = vpack.c.b16 %v1596, %v1595
        %v1600 = vpack.c.b16 %v1598, %v1597
        %v1604 = vsel %vm1208, %v1575, 0
        %v1607 = vsel %vm1208, %v1576, 0
        %v1610 = vsel %vm1208, %v1577, 0
        %v1613 = vsel %vm1208, %v1578, 0
        %v1616 = vsel %vm1208, %v1579, 0
        %v1619 = vsel %vm1208, %v1580, 0
        %v1622 = vsel %vm1208, %v1581, 0
        %v1625 = vsel %vm1208, %v1582, 0
        %1627 = vmatprep.subr.bf16.mxu0 0
        %1628 = vmatpush1.bf16.msra.mxu0 %v1599
        %1629 = vmatprep.subr.bf16.mxu0 0
        %1630 = vmatpush1.bf16.msra.mxu0 %v1600
        %1631 = vmatprep.subr.bf16.mxu0 0
        %1632 = vmatpush1.bf16.msra.mxu0 0
        %1633 = vmatprep.subr.bf16.mxu0 0
        %1634 = vmatpush1.bf16.msra.mxu0 0
        %1635 = vmatprep.subr.bf16.mxu0 0
        %1636 = vmatpush1.bf16.msra.mxu0 0
        %1637 = vmatprep.subr.bf16.mxu0 0
        %1638 = vmatpush1.bf16.msra.mxu0 0
        %1639 = vmatprep.subr.bf16.mxu0 0
        %1640 = vmatpush1.bf16.msra.mxu0 0
        %1641 = vmatprep.subr.bf16.mxu0 0
        %1642 = vmatpush1.bf16.msra.mxu0 0
        %1643 = vmatprep.subr.bf16.mxu0 0
        %1644 = vmatpush1.bf16.msra.mxu0 0
        %1645 = vmatprep.subr.bf16.mxu0 0
        %1646 = vmatpush1.bf16.msra.mxu0 0
        %1647 = vmatprep.subr.bf16.mxu0 0
        %1648 = vmatpush1.bf16.msra.mxu0 0
        %1649 = vmatprep.subr.bf16.mxu0 0
        %1650 = vmatpush1.bf16.msra.mxu0 0
        %1651 = vmatprep.subr.bf16.mxu0 0
        %1652 = vmatpush1.bf16.msra.mxu0 0
        %1653 = vmatprep.subr.bf16.mxu0 0
        %1654 = vmatpush1.bf16.msra.mxu0 0
        %1655 = vmatprep.subr.bf16.mxu0 0
        %1656 = vmatpush1.bf16.msra.mxu0 0
        %1657 = vmatprep.subr.bf16.mxu0 0
        %1658 = vmatpush1.bf16.msra.mxu0 0
        %1659 = vmatprep.mubr.bf16.mxu0 0
        %1660 = vmatmul.mubr.bf16.gmra.mrb[0].mxu0 %v1604
        %v1661 = vpop.f32.mrb[0].mxu0
        %v1662 = vadd.f32 %v1590, %v1661
        %v1663 = vpop.f32.mrb[0].mxu0
        %v1664 = vpop.f32.mrb[0].mxu0
        %v1665 = vadd.f32 %v1590, %v1664
        %v1666 = vpop.f32.mrb[0].mxu0
        %1667 = vmatprep.mubr.bf16.mxu0 0
        %1668 = vmatmul.mubr.bf16.gmra.mrb[0].mxu0 %v1607
        %v1669 = vpop.f32.mrb[0].mxu0
        %v1670 = vadd.f32 %v1590, %v1669
        %v1671 = vpop.f32.mrb[0].mxu0
        %v1672 = vpop.f32.mrb[0].mxu0
        %v1673 = vadd.f32 %v1590, %v1672
        %v1674 = vpop.f32.mrb[0].mxu0
        %1675 = vmatprep.mubr.bf16.mxu0 0
        %1676 = vmatmul.mubr.bf16.gmra.mrb[0].mxu0 %v1610
        %v1677 = vpop.f32.mrb[0].mxu0
        %v1678 = vadd.f32 %v1590, %v1677
        %v1679 = vpop.f32.mrb[0].mxu0
        %v1680 = vpop.f32.mrb[0].mxu0
        %v1681 = vadd.f32 %v1590, %v1680
        %v1682 = vpop.f32.mrb[0].mxu0
        %1683 = vmatprep.mubr.bf16.mxu0 0
        %1684 = vmatmul.mubr.bf16.gmra.mrb[0].mxu0 %v1613
        %v1685 = vpop.f32.mrb[0].mxu0
        %v1686 = vadd.f32 %v1590, %v1685
        %v1687 = vpop.f32.mrb[0].mxu0
        %v1688 = vpop.f32.mrb[0].mxu0
        %v1689 = vadd.f32 %v1590, %v1688
        %v1690 = vpop.f32.mrb[0].mxu0
        %1691 = vmatprep.mubr.bf16.mxu0 0
        %1692 = vmatmul.mubr.bf16.gmra.mrb[0].mxu0 %v1616
        %v1693 = vpop.f32.mrb[0].mxu0
        %v1694 = vadd.f32 %v1590, %v1693
        %v1695 = vpop.f32.mrb[0].mxu0
        %v1696 = vpop.f32.mrb[0].mxu0
        %v1697 = vadd.f32 %v1590, %v1696
        %v1698 = vpop.f32.mrb[0].mxu0
        %1699 = vmatprep.mubr.bf16.mxu0 0
        %1700 = vmatmul.mubr.bf16.gmra.mrb[0].mxu0 %v1619
        %v1701 = vpop.f32.mrb[0].mxu0
        %v1702 = vadd.f32 %v1590, %v1701
        %v1703 = vpop.f32.mrb[0].mxu0
        %v1704 = vpop.f32.mrb[0].mxu0
        %v1705 = vadd.f32 %v1590, %v1704
        %v1706 = vpop.f32.mrb[0].mxu0
        %1707 = vmatprep.mubr.bf16.mxu0 0
        %1708 = vmatmul.mubr.bf16.gmra.mrb[0].mxu0 %v1622
        %v1709 = vpop.f32.mrb[0].mxu0
        %v1710 = vadd.f32 %v1590, %v1709
        %v1711 = vpop.f32.mrb[0].mxu0
        %v1712 = vpop.f32.mrb[0].mxu0
        %v1713 = vadd.f32 %v1590, %v1712
        %v1714 = vpop.f32.mrb[0].mxu0
        %1715 = vmatprep.mubr.bf16.mxu0 0
        %1716 = vmatmul.mubr.bf16.gmra.mrb[0].mxu0 %v1625
        %v1717 = vpop.f32.mrb[0].mxu0
        %v1718 = vadd.f32 %v1590, %v1717
        %v1719 = vpop.f32.mrb[0].mxu0
        %v1720 = vpop.f32.mrb[0].mxu0
        %v1721 = vadd.f32 %v1590, %v1720
        %v1722 = vpop.f32.mrb[0].mxu0
        %1723 = vdwg.mxu0
        %vm1724 = vcmp.gt.f32.partialorder %v1662, 0.0
        %vm1725 = vcmp.gt.f32.partialorder %v1665, 0.0
        %vm1726 = vcmp.gt.f32.partialorder %v1670, 0.0
        %vm1727 = vcmp.gt.f32.partialorder %v1673, 0.0
        %vm1728 = vcmp.gt.f32.partialorder %v1678, 0.0
        %vm1729 = vcmp.gt.f32.partialorder %v1681, 0.0
        %vm1730 = vcmp.gt.f32.partialorder %v1686, 0.0
        %vm1731 = vcmp.gt.f32.partialorder %v1689, 0.0
        %vm1732 = vcmp.gt.f32.partialorder %v1694, 0.0
        %vm1733 = vcmp.gt.f32.partialorder %v1697, 0.0
        %vm1734 = vcmp.gt.f32.partialorder %v1702, 0.0
        %vm1735 = vcmp.gt.f32.partialorder %v1705, 0.0
        %vm1736 = vcmp.gt.f32.partialorder %v1710, 0.0
        %vm1737 = vcmp.gt.f32.partialorder %v1713, 0.0
        %vm1738 = vcmp.gt.f32.partialorder %v1718, 0.0
        %vm1739 = vcmp.gt.f32.partialorder %v1721, 0.0
        %v1740 = vmul.f32 %v1662, 0.01
        %v1741 = vmul.f32 %v1665, 0.01
        %v1742 = vmul.f32 %v1670, 0.01
        %v1743 = vmul.f32 %v1673, 0.01
        %v1744 = vmul.f32 %v1678, 0.01
        %v1745 = vmul.f32 %v1681, 0.01
        %v1746 = vmul.f32 %v1686, 0.01
        %v1747 = vmul.f32 %v1689, 0.01
        %v1748 = vmul.f32 %v1694, 0.01
        %v1749 = vmul.f32 %v1697, 0.01
        %v1750 = vmul.f32 %v1702, 0.01
        %v1751 = vmul.f32 %v1705, 0.01
        %v1752 = vmul.f32 %v1710, 0.01
        %v1753 = vmul.f32 %v1713, 0.01
        %v1754 = vmul.f32 %v1718, 0.01
        %v1755 = vmul.f32 %v1721, 0.01
        %v1756 = vsel %vm1724, %v1662, %v1740
        %v1757 = vsel %vm1725, %v1665, %v1741
        %v1758 = vsel %vm1726, %v1670, %v1742
        %v1759 = vsel %vm1727, %v1673, %v1743
        %v1760 = vsel %vm1728, %v1678, %v1744
        %v1761 = vsel %vm1729, %v1681, %v1745
        %v1762 = vsel %vm1730, %v1686, %v1746
        %v1763 = vsel %vm1731, %v1689, %v1747
        %v1764 = vsel %vm1732, %v1694, %v1748
        %v1765 = vsel %vm1733, %v1697, %v1749
        %v1766 = vsel %vm1734, %v1702, %v1750
        %v1767 = vsel %vm1735, %v1705, %v1751
        %v1768 = vsel %vm1736, %v1710, %v1752
        %v1769 = vsel %vm1737, %v1713, %v1753
        %v1770 = vsel %vm1738, %v1718, %v1754
        %v1771 = vsel %vm1739, %v1721, %v1755
        %1772 = vmax.xlane.f32.xlu0 %v1756
        %v1773 = vpop.xlane.xlu0 %1772
        %1774 = vmax.xlane.f32.xlu0 %v1757
        %v1775 = vpop.xlane.xlu0 %1774
        %1776 = vmax.xlane.f32.xlu0 %v1758
        %v1777 = vpop.xlane.xlu0 %1776
        %1778 = vmax.xlane.f32.xlu0 %v1759
        %v1779 = vpop.xlane.xlu0 %1778
        %1780 = vmax.xlane.f32.xlu0 %v1760
        %v1781 = vpop.xlane.xlu0 %1780
        %1782 = vmax.xlane.f32.xlu0 %v1761
        %v1783 = vpop.xlane.xlu0 %1782
        %1784 = vmax.xlane.f32.xlu0 %v1762
        %v1785 = vpop.xlane.xlu0 %1784
        %1786 = vmax.xlane.f32.xlu0 %v1763
        %v1787 = vpop.xlane.xlu0 %1786
        %1788 = vmax.xlane.f32.xlu0 %v1764
        %v1789 = vpop.xlane.xlu0 %1788
        %1790 = vmax.xlane.f32.xlu0 %v1765
        %v1791 = vpop.xlane.xlu0 %1790
        %1792 = vmax.xlane.f32.xlu0 %v1766
        %v1793 = vpop.xlane.xlu0 %1792
        %1794 = vmax.xlane.f32.xlu0 %v1767
        %v1795 = vpop.xlane.xlu0 %1794
        %1796 = vmax.xlane.f32.xlu0 %v1768
        %v1797 = vpop.xlane.xlu0 %1796
        %1798 = vmax.xlane.f32.xlu0 %v1769
        %v1799 = vpop.xlane.xlu0 %1798
        %1800 = vmax.xlane.f32.xlu0 %v1770
        %v1801 = vpop.xlane.xlu0 %1800
        %1802 = vmax.xlane.f32.xlu0 %v1771
        %v1803 = vpop.xlane.xlu0 %1802
        %v1804 = vsub.f32 %v1756, %v1773
        %v1805 = vsub.f32 %v1757, %v1775
        %v1806 = vsub.f32 %v1758, %v1777
        %v1807 = vsub.f32 %v1759, %v1779
        %v1808 = vsub.f32 %v1760, %v1781
        %v1809 = vsub.f32 %v1761, %v1783
        %v1810 = vsub.f32 %v1762, %v1785
        %v1811 = vsub.f32 %v1763, %v1787
        %v1812 = vsub.f32 %v1764, %v1789
        %v1813 = vsub.f32 %v1765, %v1791
        %v1814 = vsub.f32 %v1766, %v1793
        %v1815 = vsub.f32 %v1767, %v1795
        %v1816 = vsub.f32 %v1768, %v1797
        %v1817 = vsub.f32 %v1769, %v1799
        %v1818 = vsub.f32 %v1770, %v1801
        %v1819 = vsub.f32 %v1771, %v1803
        %v1820 = vmul.f32 %v1804, 1.442695
        %v1821 = vpow.pop %v1820
        %v1822 = vmul.f32 %v1805, 1.442695
        %v1823 = vpow.pop %v1822
        %v1824 = vmul.f32 %v1806, 1.442695
        %v1825 = vpow.pop %v1824
        %v1826 = vmul.f32 %v1807, 1.442695
        %v1827 = vpow.pop %v1826
        %v1828 = vmul.f32 %v1808, 1.442695
        %v1829 = vpow.pop %v1828
        %v1830 = vmul.f32 %v1809, 1.442695
        %v1831 = vpow.pop %v1830
        %v1832 = vmul.f32 %v1810, 1.442695
        %v1833 = vpow.pop %v1832
        %v1834 = vmul.f32 %v1811, 1.442695
        %v1835 = vpow.pop %v1834
        %v1836 = vmul.f32 %v1812, 1.442695
        %v1837 = vpow.pop %v1836
        %v1838 = vmul.f32 %v1813, 1.442695
        %v1839 = vpow.pop %v1838
        %v1840 = vmul.f32 %v1814, 1.442695
        %v1841 = vpow.pop %v1840
        %v1842 = vmul.f32 %v1815, 1.442695
        %v1843 = vpow.pop %v1842
        %v1844 = vmul.f32 %v1816, 1.442695
        %v1845 = vpow.pop %v1844
        %v1846 = vmul.f32 %v1817, 1.442695
        %v1847 = vpow.pop %v1846
        %v1848 = vmul.f32 %v1818, 1.442695
        %v1849 = vpow.pop %v1848
        %v1850 = vmul.f32 %v1819, 1.442695
        %v1851 = vpow.pop %v1850
        %1852 = vadd.xlane.f32.xlu0 %v1821
        %v1853 = vpop.xlane.xlu0 %1852
        %1854 = vadd.xlane.f32.xlu0 %v1823
        %v1855 = vpop.xlane.xlu0 %1854
        %1856 = vadd.xlane.f32.xlu0 %v1825
        %v1857 = vpop.xlane.xlu0 %1856
        %1858 = vadd.xlane.f32.xlu0 %v1827
        %v1859 = vpop.xlane.xlu0 %1858
        %1860 = vadd.xlane.f32.xlu0 %v1829
        %v1861 = vpop.xlane.xlu0 %1860
        %1862 = vadd.xlane.f32.xlu0 %v1831
        %v1863 = vpop.xlane.xlu0 %1862
        %1864 = vadd.xlane.f32.xlu0 %v1833
        %v1865 = vpop.xlane.xlu0 %1864
        %1866 = vadd.xlane.f32.xlu0 %v1835
        %v1867 = vpop.xlane.xlu0 %1866
        %1868 = vadd.xlane.f32.xlu0 %v1837
        %v1869 = vpop.xlane.xlu0 %1868
        %1870 = vadd.xlane.f32.xlu0 %v1839
        %v1871 = vpop.xlane.xlu0 %1870
        %1872 = vadd.xlane.f32.xlu0 %v1841
        %v1873 = vpop.xlane.xlu0 %1872
        %1874 = vadd.xlane.f32.xlu0 %v1843
        %v1875 = vpop.xlane.xlu0 %1874
        %1876 = vadd.xlane.f32.xlu0 %v1845
        %v1877 = vpop.xlane.xlu0 %1876
        %1878 = vadd.xlane.f32.xlu0 %v1847
        %v1879 = vpop.xlane.xlu0 %1878
        %1880 = vadd.xlane.f32.xlu0 %v1849
        %v1881 = vpop.xlane.xlu0 %1880
        %1882 = vadd.xlane.f32.xlu0 %v1851
        %v1883 = vpop.xlane.xlu0 %1882
        %v1884 = vrcp.pop %v1853
        %v1885 = vrcp.pop %v1855
        %v1886 = vrcp.pop %v1857
        %v1887 = vrcp.pop %v1859
        %v1888 = vrcp.pop %v1861
        %v1889 = vrcp.pop %v1863
        %v1890 = vrcp.pop %v1865
        %v1891 = vrcp.pop %v1867
        %v1892 = vrcp.pop %v1869
        %v1893 = vrcp.pop %v1871
        %v1894 = vrcp.pop %v1873
        %v1895 = vrcp.pop %v1875
        %v1896 = vrcp.pop %v1877
        %v1897 = vrcp.pop %v1879
        %v1898 = vrcp.pop %v1881
        %v1899 = vrcp.pop %v1883
        %v1900 = vmul.f32 %v1853, %v1884
        %v1901 = vmul.f32 %v1855, %v1885
        %v1902 = vmul.f32 %v1857, %v1886
        %v1903 = vmul.f32 %v1859, %v1887
        %v1904 = vmul.f32 %v1861, %v1888
        %v1905 = vmul.f32 %v1863, %v1889
        %v1906 = vmul.f32 %v1865, %v1890
        %v1907 = vmul.f32 %v1867, %v1891
        %v1908 = vmul.f32 %v1869, %v1892
        %v1909 = vmul.f32 %v1871, %v1893
        %v1910 = vmul.f32 %v1873, %v1894
        %v1911 = vmul.f32 %v1875, %v1895
        %v1912 = vmul.f32 %v1877, %v1896
        %v1913 = vmul.f32 %v1879, %v1897
        %v1914 = vmul.f32 %v1881, %v1898
        %v1915 = vmul.f32 %v1883, %v1899
        %v1916 = vsub.f32 2.0, %v1900
        %v1917 = vsub.f32 2.0, %v1901
        %v1918 = vsub.f32 2.0, %v1902
        %v1919 = vsub.f32 2.0, %v1903
        %v1920 = vsub.f32 2.0, %v1904
        %v1921 = vsub.f32 2.0, %v1905
        %v1922 = vsub.f32 2.0, %v1906
        %v1923 = vsub.f32 2.0, %v1907
        %v1924 = vsub.f32 2.0, %v1908
        %v1925 = vsub.f32 2.0, %v1909
        %v1926 = vsub.f32 2.0, %v1910
        %v1927 = vsub.f32 2.0, %v1911
        %v1928 = vsub.f32 2.0, %v1912
        %v1929 = vsub.f32 2.0, %v1913
        %v1930 = vsub.f32 2.0, %v1914
        %v1931 = vsub.f32 2.0, %v1915
        %v1932 = vmul.f32 %v1884, %v1916
        %v1933 = vmul.f32 %v1885, %v1917
        %v1934 = vmul.f32 %v1886, %v1918
        %v1935 = vmul.f32 %v1887, %v1919
        %v1936 = vmul.f32 %v1888, %v1920
        %v1937 = vmul.f32 %v1889, %v1921
        %v1938 = vmul.f32 %v1890, %v1922
        %v1939 = vmul.f32 %v1891, %v1923
        %v1940 = vmul.f32 %v1892, %v1924
        %v1941 = vmul.f32 %v1893, %v1925
        %v1942 = vmul.f32 %v1894, %v1926
        %v1943 = vmul.f32 %v1895, %v1927
        %v1944 = vmul.f32 %v1896, %v1928
        %v1945 = vmul.f32 %v1897, %v1929
        %v1946 = vmul.f32 %v1898, %v1930
        %v1947 = vmul.f32 %v1899, %v1931
        %v1948 = vmul.f32 %v1821, %v1932
        %v1949 = vmul.f32 %v1823, %v1933
        %v1950 = vmul.f32 %v1825, %v1934
        %v1951 = vmul.f32 %v1827, %v1935
        %v1952 = vmul.f32 %v1829, %v1936
        %v1953 = vmul.f32 %v1831, %v1937
        %v1954 = vmul.f32 %v1833, %v1938
        %v1955 = vmul.f32 %v1835, %v1939
        %v1956 = vmul.f32 %v1837, %v1940
        %v1957 = vmul.f32 %v1839, %v1941
        %v1958 = vmul.f32 %v1841, %v1942
        %v1959 = vmul.f32 %v1843, %v1943
        %v1960 = vmul.f32 %v1845, %v1944
        %v1961 = vmul.f32 %v1847, %v1945
        %v1962 = vmul.f32 %v1849, %v1946
        %v1963 = vmul.f32 %v1851, %v1947
        %v1964 = vpack.c.bf16 %v1949, %v1948
        %v1965 = vpack.c.bf16 %v1951, %v1950
        %v1966 = vpack.c.bf16 %v1953, %v1952
        %v1967 = vpack.c.bf16 %v1955, %v1954
        %v1968 = vpack.c.bf16 %v1957, %v1956
        %v1969 = vpack.c.bf16 %v1959, %v1958
        %v1970 = vpack.c.bf16 %v1961, %v1960
        %v1971 = vpack.c.bf16 %v1963, %v1962
        %v1980 = vunpack.c.l.b16 %v1964
        %v1981 = vunpack.c.h.b16 %v1964
        %v1982 = vunpack.c.l.b16 %v1965
        %v1983 = vunpack.c.h.b16 %v1965
        %v1984 = vunpack.c.l.b16 %v1966
        %v1985 = vunpack.c.h.b16 %v1966
        %v1986 = vunpack.c.l.b16 %v1967
        %v1987 = vunpack.c.h.b16 %v1967
        %v1988 = vunpack.c.l.b16 %v1968
        %v1989 = vunpack.c.h.b16 %v1968
        %v1990 = vunpack.c.l.b16 %v1969
        %v1991 = vunpack.c.h.b16 %v1969
        %v1992 = vunpack.c.l.b16 %v1970
        %v1993 = vunpack.c.h.b16 %v1970
        %v1994 = vunpack.c.l.b16 %v1971
        %v1995 = vunpack.c.h.b16 %v1971
        %v1996 = vpack.c.b16 %v1980, %v1980
        %v1997 = vpack.c.b16 %v1981, %v1981
        %v1998 = vpack.c.b16 %v1982, %v1982
        %v1999 = vpack.c.b16 %v1983, %v1983
        %v2000 = vpack.c.b16 %v1984, %v1984
        %v2001 = vpack.c.b16 %v1985, %v1985
        %v2002 = vpack.c.b16 %v1986, %v1986
        %v2003 = vpack.c.b16 %v1987, %v1987
        %v2004 = vpack.c.b16 %v1988, %v1988
        %v2005 = vpack.c.b16 %v1989, %v1989
        %v2006 = vpack.c.b16 %v1990, %v1990
        %v2007 = vpack.c.b16 %v1991, %v1991
        %v2008 = vpack.c.b16 %v1992, %v1992
        %v2009 = vpack.c.b16 %v1993, %v1993
        %v2010 = vpack.c.b16 %v1994, %v1994
        %v2011 = vpack.c.b16 %v1995, %v1995
        %2028 = vst [vmem:[%s382] sm:$0xf] %v1996
        %2029 = vst [vmem:[%s382 + $0x4] sm:$0xf] %v1997
        %2030 = vst [vmem:[%s382 + $0x8] sm:$0xf] %v1998
        %2031 = vst [vmem:[%s382 + $0xc] sm:$0xf] %v1999
        %2032 = vst [vmem:[%s382 + $0x10] sm:$0xf] %v2000
        %2033 = vst [vmem:[%s382 + $0x14] sm:$0xf] %v2001
        %2034 = vst [vmem:[%s382 + $0x18] sm:$0xf] %v2002
        %2035 = vst [vmem:[%s382 + $0x1c] sm:$0xf] %v2003
        %2036 = vst [vmem:[%s382 + $0x20] sm:$0xf] %v2004
        %2037 = vst [vmem:[%s382 + $0x24] sm:$0xf] %v2005
        %2038 = vst [vmem:[%s382 + $0x28] sm:$0xf] %v2006
        %2039 = vst [vmem:[%s382 + $0x2c] sm:$0xf] %v2007
        %2040 = vst [vmem:[%s382 + $0x30] sm:$0xf] %v2008
        %2041 = vst [vmem:[%s382 + $0x34] sm:$0xf] %v2009
        %2042 = vst [vmem:[%s382 + $0x38] sm:$0xf] %v2010
        %2043 = vst [vmem:[%s382 + $0x3c] sm:$0xf] %v2011
        %s2044 = sand.u32 %s187, 1
        %s2045 = scalar_lea.sflag [#allocation4], %s2044
        %s2046 = sand.u32 %s187, 1
        %s2047 = smul.addr %s2046, 64
        %s2048 = scalar_lea.vmem [#allocation14], %s2047
        // Predicated region
        $region77: #{tpu_custom_call.1} parent=47 // pred_check
          %p2049 = pneg %p197
        $region78: #{tpu_custom_call.1} parent=47 // pred_check_branch
          %2051 = sbr.rel (%p2049) target = $region80
        $region79: #{tpu_custom_call.1} parent=47 // pred_region
          %s2052 = smul.u32 16, %s27
          %s2054 = ssub.s32 1024, 1024
          %2055 = vsyncadd %s2045, %s2054
          %s2056 = smul.addr %s2052, 64
          %s2057 = scalar_lea.hbm %s7, %s2056
          %s2058 = sshll.u32 %s2048, 4
          %s2059 = int_to_ptr.vmem [resolvable:$true] %s2058
          %2064 = dma.vmem_to_hbm [thread:$0]  %s2059, 1024, %s2057, %s2045, 64, 64, 4
        $region80: #{tpu_custom_call.1} parent=47 // pred_fallthru
          _
      $region48: #{tpu_custom_call.1} parent=5 // pred_fallthru
        _
      %p2065 = scmp.le.s32.totalorder 2, %s22
      // Predicated region
      $region81: #{tpu_custom_call.1} parent=5 // pred_check
        %p2066 = pneg %p2065
      $region82: #{tpu_custom_call.1} parent=5 // pred_check_branch
        %2068 = sbr.rel (%p2066) target = $region84
      $region83: #{tpu_custom_call.1} parent=5 // pred_region
        %s2069 = ssub.s32 %s22, 2
        // Predicated region
        $region85: #{tpu_custom_call.1} parent=83 // pred_check
          %p2070 = pneg %p203
        $region86: #{tpu_custom_call.1} parent=83 // pred_check_branch
          %2072 = sbr.rel (%p2070) target = $region88
        $region87: #{tpu_custom_call.1} parent=83 // pred_region
          %s2073 = sand.u32 %s188, 1
          %s2074 = scalar_lea.sflag [#allocation4], %s2073
          %s2075 = sand.u32 %s188, 1
          %s2076 = smul.addr %s2075, 64
          %s2077 = scalar_lea.vmem [#allocation14], %s2076
          %2078 = dma.done %s2074, 1024
        $region88: #{tpu_custom_call.1} parent=83 // pred_fallthru
          _
      $region84: #{tpu_custom_call.1} parent=5 // pred_fallthru
        _
    $region6: #{tpu_custom_call.1} parent=1 // loop_footer
      %s26 = sadd.s32 1, %s22
    $region7: #{tpu_custom_call.1} parent=1 // loop_footer_branch
      %21 = sbr.rel target = $region3
    $region8: #{tpu_custom_call.1} parent=1 // loop_exit
      _
    %2079 = vsyncpa [#allocation3], 1
    %s2080 = scalar_lea.sflag [#allocation3], 1
    %2081 = vsyncpa %s2080, 1
    %2082 = vsyncpa [#allocation6], 1
    %s2083 = scalar_lea.sflag [#allocation6], 1
    %2084 = vsyncpa %s2083, 1
    %2085 = vsyncpa [#allocation9], 1
    %2086 = vsyncpa [#allocation12], 1
    %2087 = vsyncpa [#allocation4], 1
    %s2088 = scalar_lea.sflag [#allocation4], 1
    %2089 = vsyncpa %s2088, 1

// kernel: tpu_custom_call.1
$region0: #{tpu_custom_call.1}
  #allocation0 [shape = 'u32[]', space=smem, size = 0x4, offset = 0x4, fixed_abs, tag = 'smem constant byte address 0x4 - core index']
  #allocation1 [shape = 'u32[144,128]{1,0:T(1,128)}', space=vmem, size = 0x12000, scoped, tag = 'internal scratch']
  %s0 = inlined_call_operand.hbm [shape: bf16[256,17], index: 0, kind: input, shape index: {}]
  %s1 = inlined_call_operand.hbm [shape: bf16[256,256], index: 1, kind: input, shape index: {}]
  %s2 = inlined_call_operand.hbm [shape: bf16[32,32], index: 2, kind: input, shape index: {}]
  %s3 = inlined_call_operand.hbm [shape: bf16[32,32], index: 3, kind: input, shape index: {}]
  %s4 = inlined_call_operand.hbm [shape: bf16[32,32], index: 4, kind: input, shape index: {}]
  %s5 = inlined_call_operand.hbm [shape: bf16[32,128], index: 5, kind: input, shape index: {}]
  %s6 = inlined_call_operand.hbm [shape: f32[3,128], index: 6, kind: input, shape index: {}]
  %s7 = inlined_call_operand.hbm [shape: bf16[256,128], index: 7, kind: output, shape index: {}]
  %s8 = sld [smem:[#allocation0]]
  $region89: #{tpu_custom_call.1} parent=0
    _
  %s10 = ssub.s32 1, %s8
  %s11 = scalar_select 0, %s10, %s8
  $region1: #{tpu_custom_call.1} parent=0
    #allocation2 [shape = 'u8[65536]{0}', space=vmem, size = 0x10000, scoped, tag = 'input window, operand 0, single buffered']
    #allocation3 [shape = 's32[2]{0}', space=sflag, size = 0x8, scoped, tag = 'scoped memory for tpu_custom_call.1']
    #allocation4 [shape = 's32[2]{0}', space=sflag, size = 0x8, scoped, tag = 'scoped memory for tpu_custom_call.1']
    #allocation5 [shape = 'u8[131072]{0}', space=vmem, size = 0x20000, scoped, tag = 'input window, operand 1']
    #allocation6 [shape = 's32[2]{0}', space=sflag, size = 0x8, scoped, tag = 'scoped memory for tpu_custom_call.1']
    #allocation7 [shape = 'u8[8192]{0}', space=vmem, size = 0x2000, scoped, tag = 'input window, operand 2, single buffered']
    #allocation8 [shape = 'u8[8192]{0}', space=vmem, size = 0x2000, scoped, tag = 'input window, operand 3, single buffered']
    #allocation9 [shape = 's32[1]{0}', space=sflag, size = 0x4, scoped, tag = 'scoped memory for tpu_custom_call.1']
    #allocation10 [shape = 'u8[8192]{0}', space=vmem, size = 0x2000, scoped, tag = 'input window, operand 4, single buffered']
    #allocation11 [shape = 'u8[8192]{0}', space=vmem, size = 0x2000, scoped, tag = 'input window, operand 5, single buffered']
    #allocation12 [shape = 's32[1]{0}', space=sflag, size = 0x4, scoped, tag = 'scoped memory for tpu_custom_call.1']
    #allocation13 [shape = 'u8[2048]{0}', space=vmem, size = 0x800, scoped, tag = 'input window, operand 6, single buffered']
    #allocation14 [shape = 'u8[65536]{0}', space=vmem, size = 0x10000, scoped, tag = 'output window, operand 0']
    %12 = vsyncpa [#allocation3], 0
    %13 = vsyncpa [#allocation6], 0
    %s14 = scalar_lea.sflag [#allocation6], 1
    %15 = vsyncpa %s14, 0
    %16 = vsyncpa [#allocation9], 0
    %17 = vsyncpa [#allocation12], 0
    %18 = vsyncpa [#allocation4], 0
    %s19 = scalar_lea.sflag [#allocation4], 1
    %20 = vsyncpa %s19, 0
    loop: start=0, step=1, limit=4
    $region2: #{tpu_custom_call.1} parent=1 // loop_pre_header
      _
    $region3: #{tpu_custom_call.1} parent=1 // loop_header
      %s22 = sphi 0, %s26
      %p23 = scmp.ge.s32.totalorder %s22, 4
      %s30 = sphi 0, %s30
      %s32 = sphi 0, %s30
      %s33 = sphi 0, %s32
      %s47 = sphi 0, %s33
      %s53 = sphi 0, %s55
      %s56 = sphi 0, %s53
      %s57 = sphi 0, %s56
      %s73 = sphi 0, %s57
      %s77 = sphi 0, %s77
      %s79 = sphi 0, %s77
      %s80 = sphi 0, %s79
      %s94 = sphi 0, %s80
      %s98 = sphi 0, %s98
      %s100 = sphi 0, %s98
      %s101 = sphi 0, %s100
      %s115 = sphi 0, %s101
      %s119 = sphi 0, %s119
      %s121 = sphi 0, %s119
      %s122 = sphi 0, %s121
      %s136 = sphi 0, %s122
      %s140 = sphi 0, %s140
      %s142 = sphi 0, %s140
      %s143 = sphi 0, %s142
      %s157 = sphi 0, %s143
      %s161 = sphi 0, %s161
      %s163 = sphi 0, %s161
      %s164 = sphi 0, %s163
      %s178 = sphi 0, %s164
      %s184 = sphi 0, %s186
      %s187 = sphi 0, %s184
      %s188 = sphi 0, %s187
      %s204 = sphi 0, %s188
    $region4: #{tpu_custom_call.1} parent=1 // loop_header_branch
      %25 = sbr.rel (%p23) target = $region8
    $region5: #{tpu_custom_call.1} parent=1 // loop_body
      %s27 = ssub.s32 %s22, 1
      %s28 = ssub.s32 %s22, 2
      %s29 = sadd.s32 %s22, 1
      %s31 = sadd.s32 %s30, 1
      %p34 = scmp.eq.s32.totalorder %s22, 1
      %p35 = scmp.ne.s32.totalorder %s30, %s32
      %p36 = scmp.eq.s32.totalorder %s22, 0
      %p37 = por %p35, %p36
      %p38 = scmp.ne.s32.totalorder %s30, %s32
      %p39 = scmp.eq.s32.totalorder %s27, 1
      %p40 = por %p38, %p39
      %p41 = scmp.ne.s32.totalorder %s32, %s33
      %p42 = scmp.eq.s32.totalorder %s27, 0
      %p43 = por %p41, %p42
      %p44 = scmp.ne.s32.totalorder %s32, %s33
      %p45 = scmp.eq.s32.totalorder %s28, 1
      %p46 = por %p44, %p45
      %p48 = scmp.ne.s32.totalorder %s33, %s47
      %p49 = scmp.eq.s32.totalorder %s28, 0
      %p50 = por %p48, %p49
      %s51 = ssub.s32 %s22, %s29
      %p52 = scmp.eq.s32.totalorder %s51, 0
      %s54 = sadd.s32 %s53, 1
      %s55 = scalar_select %p52, %s53, %s54
      %p58 = pneg %p52
      %p59 = scmp.eq.s32.totalorder %s22, 1
      %p60 = por %p58, %p59
      %p61 = scmp.ne.s32.totalorder %s53, %s56
      %p62 = scmp.eq.s32.totalorder %s22, 0
      %p63 = por %p61, %p62
      %p64 = scmp.ne.s32.totalorder %s53, %s56
      %p65 = scmp.eq.s32.totalorder %s27, 1
      %p66 = por %p64, %p65
      %p67 = scmp.ne.s32.totalorder %s56, %s57
      %p68 = scmp.eq.s32.totalorder %s27, 0
      %p69 = por %p67, %p68
      %p70 = scmp.ne.s32.totalorder %s56, %s57
      %p71 = scmp.eq.s32.totalorder %s28, 1
      %p72 = por %p70, %p71
      %p74 = scmp.ne.s32.totalorder %s57, %s73
      %p75 = scmp.eq.s32.totalorder %s28, 0
      %p76 = por %p74, %p75
      %s78 = sadd.s32 %s77, 1
      %p81 = scmp.eq.s32.totalorder %s22, 1
      %p82 = scmp.ne.s32.totalorder %s77, %s79
      %p83 = scmp.eq.s32.totalorder %s22, 0
      %p84 = por %p82, %p83
      %p85 = scmp.ne.s32.totalorder %s77, %s79
      %p86 = scmp.eq.s32.totalorder %s27, 1
      %p87 = por %p85, %p86
      %p88 = scmp.ne.s32.totalorder %s79, %s80
      %p89 = scmp.eq.s32.totalorder %s27, 0
      %p90 = por %p88, %p89
      %p91 = scmp.ne.s32.totalorder %s79, %s80
      %p92 = scmp.eq.s32.totalorder %s28, 1
      %p93 = por %p91, %p92
      %p95 = scmp.ne.s32.totalorder %s80, %s94
      %p96 = scmp.eq.s32.totalorder %s28, 0
      %p97 = por %p95, %p96
      %s99 = sadd.s32 %s98, 1
      %p102 = scmp.eq.s32.totalorder %s22, 1
      %p103 = scmp.ne.s32.totalorder %s98, %s100
      %p104 = scmp.eq.s32.totalorder %s22, 0
      %p105 = por %p103, %p104
      %p106 = scmp.ne.s32.totalorder %s98, %s100
      %p107 = scmp.eq.s32.totalorder %s27, 1
      %p108 = por %p106, %p107
      %p109 = scmp.ne.s32.totalorder %s100, %s101
      %p110 = scmp.eq.s32.totalorder %s27, 0
      %p111 = por %p109, %p110
      %p112 = scmp.ne.s32.totalorder %s100, %s101
      %p113 = scmp.eq.s32.totalorder %s28, 1
      %p114 = por %p112, %p113
      %p116 = scmp.ne.s32.totalorder %s101, %s115
      %p117 = scmp.eq.s32.totalorder %s28, 0
      %p118 = por %p116, %p117
      %s120 = sadd.s32 %s119, 1
      %p123 = scmp.eq.s32.totalorder %s22, 1
      %p124 = scmp.ne.s32.totalorder %s119, %s121
      %p125 = scmp.eq.s32.totalorder %s22, 0
      %p126 = por %p124, %p125
      %p127 = scmp.ne.s32.totalorder %s119, %s121
      %p128 = scmp.eq.s32.totalorder %s27, 1
      %p129 = por %p127, %p128
      %p130 = scmp.ne.s32.totalorder %s121, %s122
      %p131 = scmp.eq.s32.totalorder %s27, 0
      %p132 = por %p130, %p131
      %p133 = scmp.ne.s32.totalorder %s121, %s122
      %p134 = scmp.eq.s32.totalorder %s28, 1
      %p135 = por %p133, %p134
      %p137 = scmp.ne.s32.totalorder %s122, %s136
      %p138 = scmp.eq.s32.totalorder %s28, 0
      %p139 = por %p137, %p138
      %s141 = sadd.s32 %s140, 1
      %p144 = scmp.eq.s32.totalorder %s22, 1
      %p145 = scmp.ne.s32.totalorder %s140, %s142
      %p146 = scmp.eq.s32.totalorder %s22, 0
      %p147 = por %p145, %p146
      %p148 = scmp.ne.s32.totalorder %s140, %s142
      %p149 = scmp.eq.s32.totalorder %s27, 1
      %p150 = por %p148, %p149
      %p151 = scmp.ne.s32.totalorder %s142, %s143
      %p152 = scmp.eq.s32.totalorder %s27, 0
      %p153 = por %p151, %p152
      %p154 = scmp.ne.s32.totalorder %s142, %s143
      %p155 = scmp.eq.s32.totalorder %s28, 1
      %p156 = por %p154, %p155
      %p158 = scmp.ne.s32.totalorder %s143, %s157
      %p159 = scmp.eq.s32.totalorder %s28, 0
      %p160 = por %p158, %p159
      %s162 = sadd.s32 %s161, 1
      %p165 = scmp.eq.s32.totalorder %s22, 1
      %p166 = scmp.ne.s32.totalorder %s161, %s163
      %p167 = scmp.eq.s32.totalorder %s22, 0
      %p168 = por %p166, %p167
      %p169 = scmp.ne.s32.totalorder %s161, %s163
      %p170 = scmp.eq.s32.totalorder %s27, 1
      %p171 = por %p169, %p170
      %p172 = scmp.ne.s32.totalorder %s163, %s164
      %p173 = scmp.eq.s32.totalorder %s27, 0
      %p174 = por %p172, %p173
      %p175 = scmp.ne.s32.totalorder %s163, %s164
      %p176 = scmp.eq.s32.totalorder %s28, 1
      %p177 = por %p175, %p176
      %p179 = scmp.ne.s32.totalorder %s164, %s178
      %p180 = scmp.eq.s32.totalorder %s28, 0
      %p181 = por %p179, %p180
      %s182 = ssub.s32 %s22, %s29
      %p183 = scmp.eq.s32.totalorder %s182, 0
      %s185 = sadd.s32 %s184, 1
      %s186 = scalar_select %p183, %s184, %s185
      %p189 = pneg %p183
      %p190 = scmp.eq.s32.totalorder %s22, 1
      %p191 = por %p189, %p190
      %p192 = scmp.ne.s32.totalorder %s184, %s187
      %p193 = scmp.eq.s32.totalorder %s22, 0
      %p194 = por %p192, %p193
      %p195 = scmp.ne.s32.totalorder %s184, %s187
      %p196 = scmp.eq.s32.totalorder %s27, 1
      %p197 = por %p195, %p196
      %p198 = scmp.ne.s32.totalorder %s187, %s188
      %p199 = scmp.eq.s32.totalorder %s27, 0
      %p200 = por %p198, %p199
      %p201 = scmp.ne.s32.totalorder %s187, %s188
      %p202 = scmp.eq.s32.totalorder %s28, 1
      %p203 = por %p201, %p202
      %p205 = scmp.ne.s32.totalorder %s188, %s204
      %p206 = scmp.eq.s32.totalorder %s28, 0
      %p207 = por %p205, %p206
      %p208 = scmp.le.s32.totalorder 1, %s22
      %p209 = scmp.lt.s32.totalorder %s22, 3
      %p210 = pnand %p208, %p209
      %p211 = pneg %p210
      // Predicated region
      $region9: #{tpu_custom_call.1} parent=5 // pred_check
        _
      $region10: #{tpu_custom_call.1} parent=5 // pred_check_branch
        %213 = sbr.rel (%p210) target = $region12
      $region11: #{tpu_custom_call.1} parent=5 // pred_region
        %s214 = ssub.s32 %s22, 1
        // Predicated region
        $region13: #{tpu_custom_call.1} parent=11 // pred_check
          %p215 = pneg %p43
        $region14: #{tpu_custom_call.1} parent=11 // pred_check_branch
          %217 = sbr.rel (%p215) target = $region16
        $region15: #{tpu_custom_call.1} parent=11 // pred_region
          %s219 = ssub.s32 2048, 2048
          %220 = vsyncadd [#allocation3], %s219
          %s221 = sshll.u32 [#allocation2], 4
          %s222 = int_to_ptr.vmem [resolvable:$true] %s221
          %227 = dma.hbm_to_vmem [thread:$0]  %s0, 2048, %s222, [#allocation3], 64, 64, 4
        $region16: #{tpu_custom_call.1} parent=11 // pred_fallthru
          _
        // Predicated region
        $region17: #{tpu_custom_call.1} parent=11 // pred_check
          %p228 = pneg %p90
        $region18: #{tpu_custom_call.1} parent=11 // pred_check_branch
          %230 = sbr.rel (%p228) target = $region20
        $region19: #{tpu_custom_call.1} parent=11 // pred_region
          %s232 = ssub.s32 256, 256
          %233 = vsyncadd [#allocation6], %s232
          %s234 = sshll.u32 [#allocation7], 4
          %s235 = int_to_ptr.vmem [resolvable:$true] %s234
          %240 = dma.hbm_to_vmem [thread:$0]  %s2, 256, %s235, [#allocation6], 64, 64, 4
        $region20: #{tpu_custom_call.1} parent=11 // pred_fallthru
          _
        // Predicated region
        $region21: #{tpu_custom_call.1} parent=11 // pred_check
          %p241 = pneg %p111
        $region22: #{tpu_custom_call.1} parent=11 // pred_check_branch
          %243 = sbr.rel (%p241) target = $region24
        $region23: #{tpu_custom_call.1} parent=11 // pred_region
          %s245 = ssub.s32 256, 256
          %246 = vsyncadd [#allocation9], %s245
          %s247 = sshll.u32 [#allocation8], 4
          %s248 = int_to_ptr.vmem [resolvable:$true] %s247
          %253 = dma.hbm_to_vmem [thread:$0]  %s3, 256, %s248, [#allocation9], 64, 64, 4
        $region24: #{tpu_custom_call.1} parent=11 // pred_fallthru
          _
        // Predicated region
        $region25: #{tpu_custom_call.1} parent=11 // pred_check
          %p254 = pneg %p132
        $region26: #{tpu_custom_call.1} parent=11 // pred_check_branch
          %256 = sbr.rel (%p254) target = $region28
        $region27: #{tpu_custom_call.1} parent=11 // pred_region
          %s258 = ssub.s32 256, 256
          %259 = vsyncadd [#allocation9], %s258
          %s260 = sshll.u32 [#allocation10], 4
          %s261 = int_to_ptr.vmem [resolvable:$true] %s260
          %266 = dma.hbm_to_vmem [thread:$0]  %s4, 256, %s261, [#allocation9], 64, 64, 4
        $region28: #{tpu_custom_call.1} parent=11 // pred_fallthru
          _
        // Predicated region
        $region29: #{tpu_custom_call.1} parent=11 // pred_check
          %p267 = pneg %p153
        $region30: #{tpu_custom_call.1} parent=11 // pred_check_branch
          %269 = sbr.rel (%p267) target = $region32
        $region31: #{tpu_custom_call.1} parent=11 // pred_region
          %s271 = ssub.s32 256, 256
          %272 = vsyncadd [#allocation12], %s271
          %s273 = sshll.u32 [#allocation11], 4
          %s274 = int_to_ptr.vmem [resolvable:$true] %s273
          %279 = dma.hbm_to_vmem [thread:$0]  %s5, 256, %s274, [#allocation12], 64, 64, 4
        $region32: #{tpu_custom_call.1} parent=11 // pred_fallthru
          _
        // Predicated region
        $region33: #{tpu_custom_call.1} parent=11 // pred_check
          %p280 = pneg %p174
        $region34: #{tpu_custom_call.1} parent=11 // pred_check_branch
          %282 = sbr.rel (%p280) target = $region36
        $region35: #{tpu_custom_call.1} parent=11 // pred_region
          %s284 = ssub.s32 64, 64
          %285 = vsyncadd [#allocation12], %s284
          %s287 = sshll.u32 [#allocation13], 4
          %s288 = int_to_ptr.vmem [resolvable:$true] %s287
          %290 = dma.hbm_to_vmem [thread:$0]  %s6, 64, %s288, [#allocation12]
        $region36: #{tpu_custom_call.1} parent=11 // pred_fallthru
          _
      $region12: #{tpu_custom_call.1} parent=5 // pred_fallthru
        _
      %p291 = scmp.lt.s32.totalorder %s22, 2
      // Predicated region
      $region37: #{tpu_custom_call.1} parent=5 // pred_check
        %p292 = pneg %p291
      $region38: #{tpu_custom_call.1} parent=5 // pred_check_branch
        %294 = sbr.rel (%p292) target = $region40
      $region39: #{tpu_custom_call.1} parent=5 // pred_region
        // Predicated region
        $region41: #{tpu_custom_call.1} parent=39 // pred_check
          %p295 = pneg %p63
        $region42: #{tpu_custom_call.1} parent=39 // pred_check_branch
          %297 = sbr.rel (%p295) target = $region44
        $region43: #{tpu_custom_call.1} parent=39 // pred_region
          %s298 = sand.u32 %s22, 1
          %s299 = scalar_lea.sflag [#allocation6], %s298
          %s300 = sand.u32 %s53, 1
          %s301 = smul.addr %s300, 128
          %s302 = scalar_lea.vmem [#allocation5], %s301
          %s303 = smul.u32 16, %s22
          %s305 = ssub.s32 2048, 2048
          %306 = vsyncadd %s299, %s305
          %s307 = smul.addr %s303, 2
          %s308 = smul.addr %s307, 64
          %s309 = scalar_lea.hbm %s1, %s308
          %s310 = sshll.u32 %s302, 4
          %s311 = int_to_ptr.vmem [resolvable:$true] %s310
          %316 = dma.hbm_to_vmem [thread:$0]  %s309, 2048, %s311, %s299, 128, 128, 8
        $region44: #{tpu_custom_call.1} parent=39 // pred_fallthru
          _
      $region40: #{tpu_custom_call.1} parent=5 // pred_fallthru
        _
      %p317 = scmp.le.s32.totalorder 1, %s22
      %p318 = scmp.lt.s32.totalorder %s22, 3
      %p319 = pnand %p317, %p318
      %p320 = pneg %p319
      // Predicated region
      $region45: #{tpu_custom_call.1} parent=5 // pred_check
        _
      $region46: #{tpu_custom_call.1} parent=5 // pred_check_branch
        %322 = sbr.rel (%p319) target = $region48
      $region47: #{tpu_custom_call.1} parent=5 // pred_region
        %s323 = ssub.s32 %s22, 1
        // Predicated region
        $region49: #{tpu_custom_call.1} parent=47 // pred_check
          %p324 = pneg %p43
        $region50: #{tpu_custom_call.1} parent=47 // pred_check_branch
          %326 = sbr.rel (%p324) target = $region52
        $region51: #{tpu_custom_call.1} parent=47 // pred_region
          %327 = dma.done [#allocation3], 2048
        $region52: #{tpu_custom_call.1} parent=47 // pred_fallthru
          _
        %s328 = sand.u32 %s27, 1
        %s329 = scalar_lea.sflag [#allocation6], %s328
        %s330 = sand.u32 %s56, 1
        %s331 = smul.addr %s330, 128
        %s332 = scalar_lea.vmem [#allocation5], %s331
        // Predicated region
        $region53: #{tpu_custom_call.1} parent=47 // pred_check
          %p333 = pneg %p69
        $region54: #{tpu_custom_call.1} parent=47 // pred_check_branch
          %335 = sbr.rel (%p333) target = $region56
        $region55: #{tpu_custom_call.1} parent=47 // pred_region
          %336 = dma.done %s329, 2048
        $region56: #{tpu_custom_call.1} parent=47 // pred_fallthru
          _
        // Predicated region
        $region57: #{tpu_custom_call.1} parent=47 // pred_check
          %p337 = pneg %p90
        $region58: #{tpu_custom_call.1} parent=47 // pred_check_branch
          %339 = sbr.rel (%p337) target = $region60
        $region59: #{tpu_custom_call.1} parent=47 // pred_region
          %340 = dma.done [#allocation6], 256
        $region60: #{tpu_custom_call.1} parent=47 // pred_fallthru
          _
        // Predicated region
        $region61: #{tpu_custom_call.1} parent=47 // pred_check
          %p341 = pneg %p111
        $region62: #{tpu_custom_call.1} parent=47 // pred_check_branch
          %343 = sbr.rel (%p341) target = $region64
        $region63: #{tpu_custom_call.1} parent=47 // pred_region
          %344 = dma.done [#allocation9], 256
        $region64: #{tpu_custom_call.1} parent=47 // pred_fallthru
          _
        // Predicated region
        $region65: #{tpu_custom_call.1} parent=47 // pred_check
          %p345 = pneg %p132
        $region66: #{tpu_custom_call.1} parent=47 // pred_check_branch
          %347 = sbr.rel (%p345) target = $region68
        $region67: #{tpu_custom_call.1} parent=47 // pred_region
          %348 = dma.done [#allocation9], 256
        $region68: #{tpu_custom_call.1} parent=47 // pred_fallthru
          _
        // Predicated region
        $region69: #{tpu_custom_call.1} parent=47 // pred_check
          %p349 = pneg %p153
        $region70: #{tpu_custom_call.1} parent=47 // pred_check_branch
          %351 = sbr.rel (%p349) target = $region72
        $region71: #{tpu_custom_call.1} parent=47 // pred_region
          %352 = dma.done [#allocation12], 256
        $region72: #{tpu_custom_call.1} parent=47 // pred_fallthru
          _
        // Predicated region
        $region73: #{tpu_custom_call.1} parent=47 // pred_check
          %p353 = pneg %p174
        $region74: #{tpu_custom_call.1} parent=47 // pred_check_branch
          %355 = sbr.rel (%p353) target = $region76
        $region75: #{tpu_custom_call.1} parent=47 // pred_region
          %356 = dma.done [#allocation12], 64
        $region76: #{tpu_custom_call.1} parent=47 // pred_fallthru
          _
        %p357 = pneg %p43
        %p358 = pneg %p40
        %s359 = sand.u32 %s27, 1
        %s360 = scalar_lea.sflag [#allocation6], %s359
        %s361 = sand.u32 %s56, 1
        %s362 = smul.addr %s361, 128
        %s363 = scalar_lea.vmem [#allocation5], %s362
        %p364 = pneg %p69
        %p365 = pneg %p66
        %p366 = pneg %p90
        %p367 = pneg %p87
        %p368 = pneg %p111
        %p369 = pneg %p108
        %p370 = pneg %p132
        %p371 = pneg %p129
        %p372 = pneg %p153
        %p373 = pneg %p150
        %p374 = pneg %p174
        %p375 = pneg %p171
        %p376 = pneg %p200
        %p377 = pneg %p197
        %s378 = sand.u32 %s187, 1
        %s379 = scalar_lea.sflag [#allocation4], %s378
        %s380 = sand.u32 %s187, 1
        %s381 = smul.addr %s380, 64
        %s382 = scalar_lea.vmem [#allocation14], %s381
        %s383 = smul.u32 16, %s27
        %s384 = smul.u32 16, %s27
        %s386 = smul.u32 %s27, 128
        %v387 = vld [vmem:[#allocation2] sm:$0xf]
        %v388 = vld [vmem:[#allocation2 + $0x4] sm:$0xf]
        %v389 = vld [vmem:[#allocation2 + $0x8] sm:$0xf]
        %v390 = vld [vmem:[#allocation2 + $0xc] sm:$0xf]
        %v391 = vld [vmem:[#allocation2 + $0x10] sm:$0xf]
        %v392 = vld [vmem:[#allocation2 + $0x14] sm:$0xf]
        %v393 = vld [vmem:[#allocation2 + $0x18] sm:$0xf]
        %v394 = vld [vmem:[#allocation2 + $0x1c] sm:$0xf]
        %v395 = vld [vmem:[#allocation2 + $0x20] sm:$0xf]
        %v396 = vld [vmem:[#allocation2 + $0x24] sm:$0xf]
        %v397 = vld [vmem:[#allocation2 + $0x28] sm:$0xf]
        %v398 = vld [vmem:[#allocation2 + $0x2c] sm:$0xf]
        %v399 = vld [vmem:[#allocation2 + $0x30] sm:$0xf]
        %v400 = vld [vmem:[#allocation2 + $0x34] sm:$0xf]
        %v401 = vld [vmem:[#allocation2 + $0x38] sm:$0xf]
        %v402 = vld [vmem:[#allocation2 + $0x3c] sm:$0xf]
        %v403 = vld [vmem:[#allocation2 + $0x40] sm:$0xf]
        %v404 = vld [vmem:[#allocation2 + $0x44] sm:$0xf]
        %v405 = vld [vmem:[#allocation2 + $0x48] sm:$0xf]
        %v406 = vld [vmem:[#allocation2 + $0x4c] sm:$0xf]
        %v407 = vld [vmem:[#allocation2 + $0x50] sm:$0xf]
        %v408 = vld [vmem:[#allocation2 + $0x54] sm:$0xf]
        %v409 = vld [vmem:[#allocation2 + $0x58] sm:$0xf]
        %v410 = vld [vmem:[#allocation2 + $0x5c] sm:$0xf]
        %v411 = vld [vmem:[#allocation2 + $0x60] sm:$0xf]
        %v412 = vld [vmem:[#allocation2 + $0x64] sm:$0xf]
        %v413 = vld [vmem:[#allocation2 + $0x68] sm:$0xf]
        %v414 = vld [vmem:[#allocation2 + $0x6c] sm:$0xf]
        %v415 = vld [vmem:[#allocation2 + $0x70] sm:$0xf]
        %v416 = vld [vmem:[#allocation2 + $0x74] sm:$0xf]
        %v417 = vld [vmem:[#allocation2 + $0x78] sm:$0xf]
        %v418 = vld [vmem:[#allocation2 + $0x7c] sm:$0xf]
        %s419 = sshra.s32 %s386, 3
        %s420 = sand.u32 %s386, 7
        %s421 = smul.addr %s419, 4
        %s422 = scalar_lea.vmem [#allocation2], %s421
        %v423 = vld [vmem:[%s422] sm:$0xf]
        %v424 = vld [vmem:[%s422 + $0x4] sm:$0xf]
        %v425 = vld [vmem:[%s422 + $0x8] sm:$0xf]
        %v426 = vld [vmem:[%s422 + $0xc] sm:$0xf]
        %v427 = vld [vmem:[%s422 + $0x10] sm:$0xf]
        %v428 = vld [vmem:[%s422 + $0x14] sm:$0xf]
        %v429 = vld [vmem:[%s422 + $0x18] sm:$0xf]
        %v430 = vld [vmem:[%s422 + $0x1c] sm:$0xf]
        %v431 = vld [vmem:[%s422 + $0x20] sm:$0xf]
        %v432 = vld [vmem:[%s422 + $0x24] sm:$0xf]
        %v433 = vld [vmem:[%s422 + $0x28] sm:$0xf]
        %v434 = vld [vmem:[%s422 + $0x2c] sm:$0xf]
        %v435 = vld [vmem:[%s422 + $0x30] sm:$0xf]
        %v436 = vld [vmem:[%s422 + $0x34] sm:$0xf]
        %v437 = vld [vmem:[%s422 + $0x38] sm:$0xf]
        %v438 = vld [vmem:[%s422 + $0x3c] sm:$0xf]
        %v439 = vld [vmem:[%s332] sm:$0xff]
        %v440 = vld [vmem:[%s332 + $0x8] sm:$0xff]
        %v441 = vld [vmem:[%s332 + $0x10] sm:$0xff]
        %v442 = vld [vmem:[%s332 + $0x18] sm:$0xff]
        %v443 = vld [vmem:[%s332 + $0x20] sm:$0xff]
        %v444 = vld [vmem:[%s332 + $0x28] sm:$0xff]
        %v445 = vld [vmem:[%s332 + $0x30] sm:$0xff]
        %v446 = vld [vmem:[%s332 + $0x38] sm:$0xff]
        %v447 = vld [vmem:[%s332 + $0x40] sm:$0xff]
        %v448 = vld [vmem:[%s332 + $0x48] sm:$0xff]
        %v449 = vld [vmem:[%s332 + $0x50] sm:$0xff]
        %v450 = vld [vmem:[%s332 + $0x58] sm:$0xff]
        %v451 = vld [vmem:[%s332 + $0x60] sm:$0xff]
        %v452 = vld [vmem:[%s332 + $0x68] sm:$0xff]
        %v453 = vld [vmem:[%s332 + $0x70] sm:$0xff]
        %v454 = vld [vmem:[%s332 + $0x78] sm:$0xff]
        %v471 = vunpack.c.l.b16 %v439
        %v472 = vunpack.c.h.b16 %v439
        %v473 = vunpack.c.l.b16 %v440
        %v474 = vunpack.c.h.b16 %v440
        %v475 = vunpack.c.l.b16 %v441
        %v476 = vunpack.c.h.b16 %v441
        %v477 = vunpack.c.l.b16 %v442
        %v478 = vunpack.c.h.b16 %v442
        %v479 = vunpack.c.l.b16 %v443
        %v480 = vunpack.c.h.b16 %v443
        %v481 = vunpack.c.l.b16 %v444
        %v482 = vunpack.c.h.b16 %v444
        %v483 = vunpack.c.l.b16 %v445
        %v484 = vunpack.c.h.b16 %v445
        %v485 = vunpack.c.l.b16 %v446
        %v486 = vunpack.c.h.b16 %v446
        %v487 = vunpack.c.l.b16 %v447
        %v488 = vunpack.c.h.b16 %v447
        %v489 = vunpack.c.l.b16 %v448
        %v490 = vunpack.c.h.b16 %v448
        %v491 = vunpack.c.l.b16 %v449
        %v492 = vunpack.c.h.b16 %v449
        %v493 = vunpack.c.l.b16 %v450
        %v494 = vunpack.c.h.b16 %v450
        %v495 = vunpack.c.l.b16 %v451
        %v496 = vunpack.c.h.b16 %v451
        %v497 = vunpack.c.l.b16 %v452
        %v498 = vunpack.c.h.b16 %v452
        %v499 = vunpack.c.l.b16 %v453
        %v500 = vunpack.c.h.b16 %v453
        %v501 = vunpack.c.l.b16 %v454
        %v502 = vunpack.c.h.b16 %v454
        %v503 = vpack.c.b16 %v473, %v471
        %v504 = vpack.c.b16 %v474, %v472
        %v505 = vpack.c.b16 %v477, %v475
        %v506 = vpack.c.b16 %v478, %v476
        %v507 = vpack.c.b16 %v481, %v479
        %v508 = vpack.c.b16 %v482, %v480
        %v509 = vpack.c.b16 %v485, %v483
        %v510 = vpack.c.b16 %v486, %v484
        %v511 = vpack.c.b16 %v489, %v487
        %v512 = vpack.c.b16 %v490, %v488
        %v513 = vpack.c.b16 %v493, %v491
        %v514 = vpack.c.b16 %v494, %v492
        %v515 = vpack.c.b16 %v497, %v495
        %v516 = vpack.c.b16 %v498, %v496
        %v517 = vpack.c.b16 %v501, %v499
        %v518 = vpack.c.b16 %v502, %v500
        %v567 = vunpack.c.l.b16 %v387
        %v568 = vunpack.c.l.b16 %v388
        %v569 = vunpack.c.l.b16 %v389
        %v570 = vunpack.c.l.b16 %v390
        %v571 = vunpack.c.l.b16 %v391
        %v572 = vunpack.c.l.b16 %v392
        %v573 = vunpack.c.l.b16 %v393
        %v574 = vunpack.c.l.b16 %v394
        %v575 = vunpack.c.l.b16 %v395
        %v576 = vunpack.c.l.b16 %v396
        %v577 = vunpack.c.l.b16 %v397
        %v578 = vunpack.c.l.b16 %v398
        %v579 = vunpack.c.l.b16 %v399
        %v580 = vunpack.c.l.b16 %v400
        %v581 = vunpack.c.l.b16 %v401
        %v582 = vunpack.c.l.b16 %v402
        %v583 = vunpack.c.l.b16 %v403
        %v584 = vunpack.c.l.b16 %v404
        %v585 = vunpack.c.l.b16 %v405
        %v586 = vunpack.c.l.b16 %v406
        %v587 = vunpack.c.l.b16 %v407
        %v588 = vunpack.c.l.b16 %v408
        %v589 = vunpack.c.l.b16 %v409
        %v590 = vunpack.c.l.b16 %v410
        %v591 = vunpack.c.l.b16 %v411
        %v592 = vunpack.c.l.b16 %v412
        %v593 = vunpack.c.l.b16 %v413
        %v594 = vunpack.c.l.b16 %v414
        %v595 = vunpack.c.l.b16 %v415
        %v596 = vunpack.c.l.b16 %v416
        %v597 = vunpack.c.l.b16 %v417
        %v598 = vunpack.c.l.b16 %v418
        %v599 = vpack.c.b16 %v568, %v567
        %v600 = vpack.c.b16 %v570, %v569
        %v601 = vpack.c.b16 %v572, %v571
        %v602 = vpack.c.b16 %v574, %v573
        %v603 = vpack.c.b16 %v576, %v575
        %v604 = vpack.c.b16 %v578, %v577
        %v605 = vpack.c.b16 %v580, %v579
        %v606 = vpack.c.b16 %v582, %v581
        %v607 = vpack.c.b16 %v584, %v583
        %v608 = vpack.c.b16 %v586, %v585
        %v609 = vpack.c.b16 %v588, %v587
        %v610 = vpack.c.b16 %v590, %v589
        %v611 = vpack.c.b16 %v592, %v591
        %v612 = vpack.c.b16 %v594, %v593
        %v613 = vpack.c.b16 %v596, %v595
        %v614 = vpack.c.b16 %v598, %v597
        %631 = vmatprep.subr.bf16.mxu0 0
        %632 = vmatpush1.bf16.msra.mxu0 %v599
        %633 = vmatprep.subr.bf16.mxu0 0
        %634 = vmatpush1.bf16.msra.mxu0 %v600
        %635 = vmatprep.subr.bf16.mxu0 0
        %636 = vmatpush1.bf16.msra.mxu0 %v601
        %637 = vmatprep.subr.bf16.mxu0 0
        %638 = vmatpush1.bf16.msra.mxu0 %v602
        %639 = vmatprep.subr.bf16.mxu0 0
        %640 = vmatpush1.bf16.msra.mxu0 %v603
        %641 = vmatprep.subr.bf16.mxu0 0
        %642 = vmatpush1.bf16.msra.mxu0 %v604
        %643 = vmatprep.subr.bf16.mxu0 0
        %644 = vmatpush1.bf16.msra.mxu0 %v605
        %645 = vmatprep.subr.bf16.mxu0 0
        %646 = vmatpush1.bf16.msra.mxu0 %v606
        %647 = vmatprep.subr.bf16.mxu0 0
        %648 = vmatpush1.bf16.msra.mxu0 %v607
        %649 = vmatprep.subr.bf16.mxu0 0
        %650 = vmatpush1.bf16.msra.mxu0 %v608
        %651 = vmatprep.subr.bf16.mxu0 0
        %652 = vmatpush1.bf16.msra.mxu0 %v609
        %653 = vmatprep.subr.bf16.mxu0 0
        %654 = vmatpush1.bf16.msra.mxu0 %v610
        %655 = vmatprep.subr.bf16.mxu0 0
        %656 = vmatpush1.bf16.msra.mxu0 %v611
        %657 = vmatprep.subr.bf16.mxu0 0
        %658 = vmatpush1.bf16.msra.mxu0 %v612
        %659 = vmatprep.subr.bf16.mxu0 0
        %660 = vmatpush1.bf16.msra.mxu0 %v613
        %661 = vmatprep.subr.bf16.mxu0 0
        %662 = vmatpush1.bf16.msra.mxu0 %v614
        %663 = vmatprep.mubr.bf16.mxu0 %v504
        %664 = vmatmul.mubr.bf16.gmra.mrb[0].mxu0 %v503
        %v665 = vpop.f32.mrb[0].mxu0
        %v666 = vadd.f32 0.0, %v665
        %v667 = vpop.f32.mrb[0].mxu0
        %v668 = vpop.f32.mrb[0].mxu0
        %v669 = vadd.f32 0.0, %v668
        %v670 = vpop.f32.mrb[0].mxu0
        %671 = vmatprep.mubr.bf16.mxu0 %v506
        %672 = vmatmul.mubr.bf16.gmra.mrb[0].mxu0 %v505
        %v673 = vpop.f32.mrb[0].mxu0
        %v674 = vadd.f32 0.0, %v673
        %v675 = vpop.f32.mrb[0].mxu0
        %v676 = vpop.f32.mrb[0].mxu0
        %v677 = vadd.f32 0.0, %v676
        %v678 = vpop.f32.mrb[0].mxu0
        %679 = vmatprep.mubr.bf16.mxu0 %v508
        %680 = vmatmul.mubr.bf16.gmra.mrb[0].mxu0 %v507
        %v681 = vpop.f32.mrb[0].mxu0
        %v682 = vadd.f32 0.0, %v681
        %v683 = vpop.f32.mrb[0].mxu0
        %v684 = vpop.f32.mrb[0].mxu0
        %v685 = vadd.f32 0.0, %v684
        %v686 = vpop.f32.mrb[0].mxu0
        %687 = vmatprep.mubr.bf16.mxu0 %v510
        %688 = vmatmul.mubr.bf16.gmra.mrb[0].mxu0 %v509
        %v689 = vpop.f32.mrb[0].mxu0
        %v690 = vadd.f32 0.0, %v689
        %v691 = vpop.f32.mrb[0].mxu0
        %v692 = vpop.f32.mrb[0].mxu0
        %v693 = vadd.f32 0.0, %v692
        %v694 = vpop.f32.mrb[0].mxu0
        %695 = vmatprep.mubr.bf16.mxu0 %v512
        %696 = vmatmul.mubr.bf16.gmra.mrb[0].mxu0 %v511
        %v697 = vpop.f32.mrb[0].mxu0
        %v698 = vadd.f32 0.0, %v697
        %v699 = vpop.f32.mrb[0].mxu0
        %v700 = vpop.f32.mrb[0].mxu0
        %v701 = vadd.f32 0.0, %v700
        %v702 = vpop.f32.mrb[0].mxu0
        %703 = vmatprep.mubr.bf16.mxu0 %v514
        %704 = vmatmul.mubr.bf16.gmra.mrb[0].mxu0 %v513
        %v705 = vpop.f32.mrb[0].mxu0
        %v706 = vadd.f32 0.0, %v705
        %v707 = vpop.f32.mrb[0].mxu0
        %v708 = vpop.f32.mrb[0].mxu0
        %v709 = vadd.f32 0.0, %v708
        %v710 = vpop.f32.mrb[0].mxu0
        %711 = vmatprep.mubr.bf16.mxu0 %v516
        %712 = vmatmul.mubr.bf16.gmra.mrb[0].mxu0 %v515
        %v713 = vpop.f32.mrb[0].mxu0
        %v714 = vadd.f32 0.0, %v713
        %v715 = vpop.f32.mrb[0].mxu0
        %v716 = vpop.f32.mrb[0].mxu0
        %v717 = vadd.f32 0.0, %v716
        %v718 = vpop.f32.mrb[0].mxu0
        %719 = vmatprep.mubr.bf16.mxu0 %v518
        %720 = vmatmul.mubr.bf16.gmra.mrb[0].mxu0 %v517
        %v721 = vpop.f32.mrb[0].mxu0
        %v722 = vadd.f32 0.0, %v721
        %v723 = vpop.f32.mrb[0].mxu0
        %v724 = vpop.f32.mrb[0].mxu0
        %v725 = vadd.f32 0.0, %v724
        %v726 = vpop.f32.mrb[0].mxu0
        %727 = vdwg.mxu0
        %v728 = vadd.f32 %v666, 1.0
        %v729 = vadd.f32 %v669, 1.0
        %v730 = vadd.f32 %v674, 1.0
        %v731 = vadd.f32 %v677, 1.0
        %v732 = vadd.f32 %v682, 1.0
        %v733 = vadd.f32 %v685, 1.0
        %v734 = vadd.f32 %v690, 1.0
        %v735 = vadd.f32 %v693, 1.0
        %v736 = vadd.f32 %v698, 1.0
        %v737 = vadd.f32 %v701, 1.0
        %v738 = vadd.f32 %v706, 1.0
        %v739 = vadd.f32 %v709, 1.0
        %v740 = vadd.f32 %v714, 1.0
        %v741 = vadd.f32 %v717, 1.0
        %v742 = vadd.f32 %v722, 1.0
        %v743 = vadd.f32 %v725, 1.0
        %745 = vset.pattern.permute.xlu0 16
        %746 = vperm.xlu0 %745, %v728
        %v747 = vpop.permute.xlu0 %746
        %750 = vset.pattern.permute.xlu0 16
        %751 = vperm.xlu0 %750, %v729
        %v752 = vpop.permute.xlu0 %751
        %755 = vset.pattern.permute.xlu0 16
        %756 = vperm.xlu0 %755, %v730
        %v757 = vpop.permute.xlu0 %756
        %760 = vset.pattern.permute.xlu0 16
        %761 = vperm.xlu0 %760, %v731
        %v762 = vpop.permute.xlu0 %761
        %765 = vset.pattern.permute.xlu0 16
        %766 = vperm.xlu0 %765, %v732
        %v767 = vpop.permute.xlu0 %766
        %770 = vset.pattern.permute.xlu0 16
        %771 = vperm.xlu0 %770, %v733
        %v772 = vpop.permute.xlu0 %771
        %775 = vset.pattern.permute.xlu0 16
        %776 = vperm.xlu0 %775, %v734
        %v777 = vpop.permute.xlu0 %776
        %780 = vset.pattern.permute.xlu0 16
        %781 = vperm.xlu0 %780, %v735
        %v782 = vpop.permute.xlu0 %781
        %785 = vset.pattern.permute.xlu0 16
        %786 = vperm.xlu0 %785, %v736
        %v787 = vpop.permute.xlu0 %786
        %790 = vset.pattern.permute.xlu0 16
        %791 = vperm.xlu0 %790, %v737
        %v792 = vpop.permute.xlu0 %791
        %795 = vset.pattern.permute.xlu0 16
        %796 = vperm.xlu0 %795, %v738
        %v797 = vpop.permute.xlu0 %796
        %800 = vset.pattern.permute.xlu0 16
        %801 = vperm.xlu0 %800, %v739
        %v802 = vpop.permute.xlu0 %801
        %805 = vset.pattern.permute.xlu0 16
        %806 = vperm.xlu0 %805, %v740
        %v807 = vpop.permute.xlu0 %806
        %810 = vset.pattern.permute.xlu0 16
        %811 = vperm.xlu0 %810, %v741
        %v812 = vpop.permute.xlu0 %811
        %815 = vset.pattern.permute.xlu0 16
        %816 = vperm.xlu0 %815, %v742
        %v817 = vpop.permute.xlu0 %816
        %820 = vset.pattern.permute.xlu0 16
        %821 = vperm.xlu0 %820, %v743
        %v822 = vpop.permute.xlu0 %821
        %v824 = vrcp.pop %v747
        %v825 = vmul.f32 %v666, %v824
        %v826 = vrcp.pop %v752
        %v827 = vmul.f32 %v669, %v826
        %v828 = vrcp.pop %v757
        %v829 = vmul.f32 %v674, %v828
        %v830 = vrcp.pop %v762
        %v831 = vmul.f32 %v677, %v830
        %v832 = vrcp.pop %v767
        %v833 = vmul.f32 %v682, %v832
        %v834 = vrcp.pop %v772
        %v835 = vmul.f32 %v685, %v834
        %v836 = vrcp.pop %v777
        %v837 = vmul.f32 %v690, %v836
        %v838 = vrcp.pop %v782
        %v839 = vmul.f32 %v693, %v838
        %v840 = vrcp.pop %v787
        %v841 = vmul.f32 %v698, %v840
        %v842 = vrcp.pop %v792
        %v843 = vmul.f32 %v701, %v842
        %v844 = vrcp.pop %v797
        %v845 = vmul.f32 %v706, %v844
        %v846 = vrcp.pop %v802
        %v847 = vmul.f32 %v709, %v846
        %v848 = vrcp.pop %v807
        %v849 = vmul.f32 %v714, %v848
        %v850 = vrcp.pop %v812
        %v851 = vmul.f32 %v717, %v850
        %v852 = vrcp.pop %v817
        %v853 = vmul.f32 %v722, %v852
        %v854 = vrcp.pop %v822
        %v855 = vmul.f32 %v725, %v854
        %v856 = vld [vmem:[#allocation7] sm:$0xf]
        %v857 = vld [vmem:[#allocation7 + $0x4] sm:$0xf]
        %v858 = vld [vmem:[#allocation7 + $0x8] sm:$0xf]
        %v859 = vld [vmem:[#allocation7 + $0xc] sm:$0xf]
        %v860 = vpack.c.bf16 %v827, %v825
        %v861 = vpack.c.bf16 %v831, %v829
        %v862 = vpack.c.bf16 %v835, %v833
        %v863 = vpack.c.bf16 %v839, %v837
        %v864 = vpack.c.bf16 %v843, %v841
        %v865 = vpack.c.bf16 %v847, %v845
        %v866 = vpack.c.bf16 %v851, %v849
        %v867 = vpack.c.bf16 %v855, %v853
        %v870 = vunpack.c.l.b16 %v858
        %v871 = vunpack.c.l.b16 %v859
        %v872 = vpack.c.b16 %v871, %v870
        %vm874 = vcmask 130048
        %v876 = vsel %vm874, %v860, 0
        %v879 = vsel %vm874, %v861, 0
        %v882 = vsel %vm874, %v862, 0
        %v885 = vsel %vm874, %v863, 0
        %v888 = vsel %vm874, %v864, 0
        %v891 = vsel %vm874, %v865, 0
        %v894 = vsel %vm874, %v866, 0
        %v897 = vsel %vm874, %v867, 0
        %899 = vmatprep.subr.bf16.mxu0 0
        %900 = vmatpush1.bf16.msra.mxu0 %v872
        %901 = vmatprep.subr.bf16.mxu0 0
        %902 = vmatpush1.bf16.msra.mxu0 0
        %903 = vmatprep.subr.bf16.mxu0 0
        %904 = vmatpush1.bf16.msra.mxu0 0
        %905 = vmatprep.subr.bf16.mxu0 0
        %906 = vmatpush1.bf16.msra.mxu0 0
        %907 = vmatprep.subr.bf16.mxu0 0
        %908 = vmatpush1.bf16.msra.mxu0 0
        %909 = vmatprep.subr.bf16.mxu0 0
        %910 = vmatpush1.bf16.msra.mxu0 0
        %911 = vmatprep.subr.bf16.mxu0 0
        %912 = vmatpush1.bf16.msra.mxu0 0
        %913 = vmatprep.subr.bf16.mxu0 0
        %914 = vmatpush1.bf16.msra.mxu0 0
        %915 = vmatprep.subr.bf16.mxu0 0
        %916 = vmatpush1.bf16.msra.mxu0 0
        %917 = vmatprep.subr.bf16.mxu0 0
        %918 = vmatpush1.bf16.msra.mxu0 0
        %919 = vmatprep.subr.bf16.mxu0 0
        %920 = vmatpush1.bf16.msra.mxu0 0
        %921 = vmatprep.subr.bf16.mxu0 0
        %922 = vmatpush1.bf16.msra.mxu0 0
        %923 = vmatprep.subr.bf16.mxu0 0
        %924 = vmatpush1.bf16.msra.mxu0 0
        %925 = vmatprep.subr.bf16.mxu0 0
        %926 = vmatpush1.bf16.msra.mxu0 0
        %927 = vmatprep.subr.bf16.mxu0 0
        %928 = vmatpush1.bf16.msra.mxu0 0
        %929 = vmatprep.subr.bf16.mxu0 0
        %930 = vmatpush1.bf16.msra.mxu0 0
        %931 = vmatprep.mubr.bf16.mxu0 0
        %932 = vmatmul.mubr.bf16.gmra.mrb[0].mxu0 %v876
        %v933 = vpop.f32.mrb[0].mxu0
        %v934 = vadd.f32 0.0, %v933
        %v935 = vpop.f32.mrb[0].mxu0
        %v936 = vpop.f32.mrb[0].mxu0
        %v937 = vadd.f32 0.0, %v936
        %v938 = vpop.f32.mrb[0].mxu0
        %939 = vmatprep.mubr.bf16.mxu0 0
        %940 = vmatmul.mubr.bf16.gmra.mrb[0].mxu0 %v879
        %v941 = vpop.f32.mrb[0].mxu0
        %v942 = vadd.f32 0.0, %v941
        %v943 = vpop.f32.mrb[0].mxu0
        %v944 = vpop.f32.mrb[0].mxu0
        %v945 = vadd.f32 0.0, %v944
        %v946 = vpop.f32.mrb[0].mxu0
        %947 = vmatprep.mubr.bf16.mxu0 0
        %948 = vmatmul.mubr.bf16.gmra.mrb[0].mxu0 %v882
        %v949 = vpop.f32.mrb[0].mxu0
        %v950 = vadd.f32 0.0, %v949
        %v951 = vpop.f32.mrb[0].mxu0
        %v952 = vpop.f32.mrb[0].mxu0
        %v953 = vadd.f32 0.0, %v952
        %v954 = vpop.f32.mrb[0].mxu0
        %955 = vmatprep.mubr.bf16.mxu0 0
        %956 = vmatmul.mubr.bf16.gmra.mrb[0].mxu0 %v885
        %v957 = vpop.f32.mrb[0].mxu0
        %v958 = vadd.f32 0.0, %v957
        %v959 = vpop.f32.mrb[0].mxu0
        %v960 = vpop.f32.mrb[0].mxu0
        %v961 = vadd.f32 0.0, %v960
        %v962 = vpop.f32.mrb[0].mxu0
        %963 = vmatprep.mubr.bf16.mxu0 0
        %964 = vmatmul.mubr.bf16.gmra.mrb[0].mxu0 %v888
        %v965 = vpop.f32.mrb[0].mxu0
        %v966 = vadd.f32 0.0, %v965
        %v967 = vpop.f32.mrb[0].mxu0
        %v968 = vpop.f32.mrb[0].mxu0
        %v969 = vadd.f32 0.0, %v968
        %v970 = vpop.f32.mrb[0].mxu0
        %971 = vmatprep.mubr.bf16.mxu0 0
        %972 = vmatmul.mubr.bf16.gmra.mrb[0].mxu0 %v891
        %v973 = vpop.f32.mrb[0].mxu0
        %v974 = vadd.f32 0.0, %v973
        %v975 = vpop.f32.mrb[0].mxu0
        %v976 = vpop.f32.mrb[0].mxu0
        %v977 = vadd.f32 0.0, %v976
        %v978 = vpop.f32.mrb[0].mxu0
        %979 = vmatprep.mubr.bf16.mxu0 0
        %980 = vmatmul.mubr.bf16.gmra.mrb[0].mxu0 %v894
        %v981 = vpop.f32.mrb[0].mxu0
        %v982 = vadd.f32 0.0, %v981
        %v983 = vpop.f32.mrb[0].mxu0
        %v984 = vpop.f32.mrb[0].mxu0
        %v985 = vadd.f32 0.0, %v984
        %v986 = vpop.f32.mrb[0].mxu0
        %987 = vmatprep.mubr.bf16.mxu0 0
        %988 = vmatmul.mubr.bf16.gmra.mrb[0].mxu0 %v897
        %v989 = vpop.f32.mrb[0].mxu0
        %v990 = vadd.f32 0.0, %v989
        %v991 = vpop.f32.mrb[0].mxu0
        %v992 = vpop.f32.mrb[0].mxu0
        %v993 = vadd.f32 0.0, %v992
        %v994 = vpop.f32.mrb[0].mxu0
        %995 = vdwg.mxu0
        %v1012 = vunpack.c.l.b16 %v423
        %v1013 = vunpack.c.l.b16 %v424
        %v1014 = vunpack.c.l.b16 %v425
        %v1015 = vunpack.c.l.b16 %v426
        %v1016 = vunpack.c.l.b16 %v427
        %v1017 = vunpack.c.l.b16 %v428
        %v1018 = vunpack.c.l.b16 %v429
        %v1019 = vunpack.c.l.b16 %v430
        %v1020 = vunpack.c.l.b16 %v431
        %v1021 = vunpack.c.l.b16 %v432
        %v1022 = vunpack.c.l.b16 %v433
        %v1023 = vunpack.c.l.b16 %v434
        %v1024 = vunpack.c.l.b16 %v435
        %v1025 = vunpack.c.l.b16 %v436
        %v1026 = vunpack.c.l.b16 %v437
        %v1027 = vunpack.c.l.b16 %v438
        %v1028 = vpack.c.b16 %v1013, %v1012
        %v1029 = vpack.c.b16 %v1015, %v1014
        %v1030 = vpack.c.b16 %v1017, %v1016
        %v1031 = vpack.c.b16 %v1019, %v1018
        %v1032 = vpack.c.b16 %v1021, %v1020
        %v1033 = vpack.c.b16 %v1023, %v1022
        %v1034 = vpack.c.b16 %v1025, %v1024
        %v1035 = vpack.c.b16 %v1027, %v1026
        %v1038 = vunpack.c.l.b16 %v856
        %v1039 = vunpack.c.l.b16 %v857
        %v1040 = vpack.c.b16 %v1039, %v1038
        %v1043 = vsel %vm874, %v1028, 0
        %v1046 = vsel %vm874, %v1029, 0
        %v1049 = vsel %vm874, %v1030, 0
        %v1052 = vsel %vm874, %v1031, 0
        %v1055 = vsel %vm874, %v1032, 0
        %v1058 = vsel %vm874, %v1033, 0
        %v1061 = vsel %vm874, %v1034, 0
        %v1064 = vsel %vm874, %v1035, 0
        %1066 = vmatprep.subr.bf16.mxu0 0
        %1067 = vmatpush1.bf16.msra.mxu0 %v1040
        %1068 = vmatprep.subr.bf16.mxu0 0
        %1069 = vmatpush1.bf16.msra.mxu0 0
        %1070 = vmatprep.subr.bf16.mxu0 0
        %1071 = vmatpush1.bf16.msra.mxu0 0
        %1072 = vmatprep.subr.bf16.mxu0 0
        %1073 = vmatpush1.bf16.msra.mxu0 0
        %1074 = vmatprep.subr.bf16.mxu0 0
        %1075 = vmatpush1.bf16.msra.mxu0 0
        %1076 = vmatprep.subr.bf16.mxu0 0
        %1077 = vmatpush1.bf16.msra.mxu0 0
        %1078 = vmatprep.subr.bf16.mxu0 0
        %1079 = vmatpush1.bf16.msra.mxu0 0
        %1080 = vmatprep.subr.bf16.mxu0 0
        %1081 = vmatpush1.bf16.msra.mxu0 0
        %1082 = vmatprep.subr.bf16.mxu0 0
        %1083 = vmatpush1.bf16.msra.mxu0 0
        %1084 = vmatprep.subr.bf16.mxu0 0
        %1085 = vmatpush1.bf16.msra.mxu0 0
        %1086 = vmatprep.subr.bf16.mxu0 0
        %1087 = vmatpush1.bf16.msra.mxu0 0
        %1088 = vmatprep.subr.bf16.mxu0 0
        %1089 = vmatpush1.bf16.msra.mxu0 0
        %1090 = vmatprep.subr.bf16.mxu0 0
        %1091 = vmatpush1.bf16.msra.mxu0 0
        %1092 = vmatprep.subr.bf16.mxu0 0
        %1093 = vmatpush1.bf16.msra.mxu0 0
        %1094 = vmatprep.subr.bf16.mxu0 0
        %1095 = vmatpush1.bf16.msra.mxu0 0
        %1096 = vmatprep.subr.bf16.mxu0 0
        %1097 = vmatpush1.bf16.msra.mxu0 0
        %1098 = vmatprep.mubr.bf16.mxu0 0
        %1099 = vmatmul.mubr.bf16.gmra.mrb[0].mxu0 %v1043
        %v1100 = vpop.f32.mrb[0].mxu0
        %v1101 = vadd.f32 %v934, %v1100
        %v1102 = vpop.f32.mrb[0].mxu0
        %v1103 = vpop.f32.mrb[0].mxu0
        %v1104 = vadd.f32 %v937, %v1103
        %v1105 = vpop.f32.mrb[0].mxu0
        %1106 = vmatprep.mubr.bf16.mxu0 0
        %1107 = vmatmul.mubr.bf16.gmra.mrb[0].mxu0 %v1046
        %v1108 = vpop.f32.mrb[0].mxu0
        %v1109 = vadd.f32 %v942, %v1108
        %v1110 = vpop.f32.mrb[0].mxu0
        %v1111 = vpop.f32.mrb[0].mxu0
        %v1112 = vadd.f32 %v945, %v1111
        %v1113 = vpop.f32.mrb[0].mxu0
        %1114 = vmatprep.mubr.bf16.mxu0 0
        %1115 = vmatmul.mubr.bf16.gmra.mrb[0].mxu0 %v1049
        %v1116 = vpop.f32.mrb[0].mxu0
        %v1117 = vadd.f32 %v950, %v1116
        %v1118 = vpop.f32.mrb[0].mxu0
        %v1119 = vpop.f32.mrb[0].mxu0
        %v1120 = vadd.f32 %v953, %v1119
        %v1121 = vpop.f32.mrb[0].mxu0
        %1122 = vmatprep.mubr.bf16.mxu0 0
        %1123 = vmatmul.mubr.bf16.gmra.mrb[0].mxu0 %v1052
        %v1124 = vpop.f32.mrb[0].mxu0
        %v1125 = vadd.f32 %v958, %v1124
        %v1126 = vpop.f32.mrb[0].mxu0
        %v1127 = vpop.f32.mrb[0].mxu0
        %v1128 = vadd.f32 %v961, %v1127
        %v1129 = vpop.f32.mrb[0].mxu0
        %1130 = vmatprep.mubr.bf16.mxu0 0
        %1131 = vmatmul.mubr.bf16.gmra.mrb[0].mxu0 %v1055
        %v1132 = vpop.f32.mrb[0].mxu0
        %v1133 = vadd.f32 %v966, %v1132
        %v1134 = vpop.f32.mrb[0].mxu0
        %v1135 = vpop.f32.mrb[0].mxu0
        %v1136 = vadd.f32 %v969, %v1135
        %v1137 = vpop.f32.mrb[0].mxu0
        %1138 = vmatprep.mubr.bf16.mxu0 0
        %1139 = vmatmul.mubr.bf16.gmra.mrb[0].mxu0 %v1058
        %v1140 = vpop.f32.mrb[0].mxu0
        %v1141 = vadd.f32 %v974, %v1140
        %v1142 = vpop.f32.mrb[0].mxu0
        %v1143 = vpop.f32.mrb[0].mxu0
        %v1144 = vadd.f32 %v977, %v1143
        %v1145 = vpop.f32.mrb[0].mxu0
        %1146 = vmatprep.mubr.bf16.mxu0 0
        %1147 = vmatmul.mubr.bf16.gmra.mrb[0].mxu0 %v1061
        %v1148 = vpop.f32.mrb[0].mxu0
        %v1149 = vadd.f32 %v982, %v1148
        %v1150 = vpop.f32.mrb[0].mxu0
        %v1151 = vpop.f32.mrb[0].mxu0
        %v1152 = vadd.f32 %v985, %v1151
        %v1153 = vpop.f32.mrb[0].mxu0
        %1154 = vmatprep.mubr.bf16.mxu0 0
        %1155 = vmatmul.mubr.bf16.gmra.mrb[0].mxu0 %v1064
        %v1156 = vpop.f32.mrb[0].mxu0
        %v1157 = vadd.f32 %v990, %v1156
        %v1158 = vpop.f32.mrb[0].mxu0
        %v1159 = vpop.f32.mrb[0].mxu0
        %v1160 = vadd.f32 %v993, %v1159
        %v1161 = vpop.f32.mrb[0].mxu0
        %1162 = vdwg.mxu0
        %v1163 = vmax.f32 %v1101, 0.0
        %v1164 = vmax.f32 %v1104, 0.0
        %v1165 = vmax.f32 %v1109, 0.0
        %v1166 = vmax.f32 %v1112, 0.0
        %v1167 = vmax.f32 %v1117, 0.0
        %v1168 = vmax.f32 %v1120, 0.0
        %v1169 = vmax.f32 %v1125, 0.0
        %v1170 = vmax.f32 %v1128, 0.0
        %v1171 = vmax.f32 %v1133, 0.0
        %v1172 = vmax.f32 %v1136, 0.0
        %v1173 = vmax.f32 %v1141, 0.0
        %v1174 = vmax.f32 %v1144, 0.0
        %v1175 = vmax.f32 %v1149, 0.0
        %v1176 = vmax.f32 %v1152, 0.0
        %v1177 = vmax.f32 %v1157, 0.0
        %v1178 = vmax.f32 %v1160, 0.0
        %v1179 = vld [vmem:[#allocation13] sm:$0x7]
        %v1180 = vpack.c.bf16 %v1164, %v1163
        %v1181 = vpack.c.bf16 %v1166, %v1165
        %v1182 = vpack.c.bf16 %v1168, %v1167
        %v1183 = vpack.c.bf16 %v1170, %v1169
        %v1184 = vpack.c.bf16 %v1172, %v1171
        %v1185 = vpack.c.bf16 %v1174, %v1173
        %v1186 = vpack.c.bf16 %v1176, %v1175
        %v1187 = vpack.c.bf16 %v1178, %v1177
        %v1188 = vld [vmem:[#allocation8] sm:$0xf]
        %v1189 = vld [vmem:[#allocation8 + $0x4] sm:$0xf]
        %v1190 = vld [vmem:[#allocation8 + $0x8] sm:$0xf]
        %v1191 = vld [vmem:[#allocation8 + $0xc] sm:$0xf]
        %v1192 = vlaneseq
        %v1193 = vshrl.u32 %v1192, 7
        %v1194 = vsub.s32 0, %v1193
        %v1195 = vrot.slane %v1179, %v1194
        %v1200 = vunpack.c.l.b16 %v1188
        %v1201 = vunpack.c.l.b16 %v1189
        %v1202 = vunpack.c.l.b16 %v1190
        %v1203 = vunpack.c.l.b16 %v1191
        %v1204 = vpack.c.b16 %v1201, %v1200
        %v1205 = vpack.c.b16 %v1203, %v1202
        %vm1208 = vcmask 261120
        %v1210 = vsel %vm1208, %v1180, 0
        %v1213 = vsel %vm1208, %v1181, 0
        %v1216 = vsel %vm1208, %v1182, 0
        %v1219 = vsel %vm1208, %v1183, 0
        %v1222 = vsel %vm1208, %v1184, 0
        %v1225 = vsel %vm1208, %v1185, 0
        %v1228 = vsel %vm1208, %v1186, 0
        %v1231 = vsel %vm1208, %v1187, 0
        %1233 = vmatprep.subr.bf16.mxu0 0
        %1234 = vmatpush1.bf16.msra.mxu0 %v1204
        %1235 = vmatprep.subr.bf16.mxu0 0
        %1236 = vmatpush1.bf16.msra.mxu0 %v1205
        %1237 = vmatprep.subr.bf16.mxu0 0
        %1238 = vmatpush1.bf16.msra.mxu0 0
        %1239 = vmatprep.subr.bf16.mxu0 0
        %1240 = vmatpush1.bf16.msra.mxu0 0
        %1241 = vmatprep.subr.bf16.mxu0 0
        %1242 = vmatpush1.bf16.msra.mxu0 0
        %1243 = vmatprep.subr.bf16.mxu0 0
        %1244 = vmatpush1.bf16.msra.mxu0 0
        %1245 = vmatprep.subr.bf16.mxu0 0
        %1246 = vmatpush1.bf16.msra.mxu0 0
        %1247 = vmatprep.subr.bf16.mxu0 0
        %1248 = vmatpush1.bf16.msra.mxu0 0
        %1249 = vmatprep.subr.bf16.mxu0 0
        %1250 = vmatpush1.bf16.msra.mxu0 0
        %1251 = vmatprep.subr.bf16.mxu0 0
        %1252 = vmatpush1.bf16.msra.mxu0 0
        %1253 = vmatprep.subr.bf16.mxu0 0
        %1254 = vmatpush1.bf16.msra.mxu0 0
        %1255 = vmatprep.subr.bf16.mxu0 0
        %1256 = vmatpush1.bf16.msra.mxu0 0
        %1257 = vmatprep.subr.bf16.mxu0 0
        %1258 = vmatpush1.bf16.msra.mxu0 0
        %1259 = vmatprep.subr.bf16.mxu0 0
        %1260 = vmatpush1.bf16.msra.mxu0 0
        %1261 = vmatprep.subr.bf16.mxu0 0
        %1262 = vmatpush1.bf16.msra.mxu0 0
        %1263 = vmatprep.subr.bf16.mxu0 0
        %1264 = vmatpush1.bf16.msra.mxu0 0
        %1265 = vmatprep.mubr.bf16.mxu0 0
        %1266 = vmatmul.mubr.bf16.gmra.mrb[0].mxu0 %v1210
        %v1267 = vpop.f32.mrb[0].mxu0
        %v1268 = vadd.f32 %v1195, %v1267
        %v1269 = vpop.f32.mrb[0].mxu0
        %v1270 = vpop.f32.mrb[0].mxu0
        %v1271 = vadd.f32 %v1195, %v1270
        %v1272 = vpop.f32.mrb[0].mxu0
        %1273 = vmatprep.mubr.bf16.mxu0 0
        %1274 = vmatmul.mubr.bf16.gmra.mrb[0].mxu0 %v1213
        %v1275 = vpop.f32.mrb[0].mxu0
        %v1276 = vadd.f32 %v1195, %v1275
        %v1277 = vpop.f32.mrb[0].mxu0
        %v1278 = vpop.f32.mrb[0].mxu0
        %v1279 = vadd.f32 %v1195, %v1278
        %v1280 = vpop.f32.mrb[0].mxu0
        %1281 = vmatprep.mubr.bf16.mxu0 0
        %1282 = vmatmul.mubr.bf16.gmra.mrb[0].mxu0 %v1216
        %v1283 = vpop.f32.mrb[0].mxu0
        %v1284 = vadd.f32 %v1195, %v1283
        %v1285 = vpop.f32.mrb[0].mxu0
        %v1286 = vpop.f32.mrb[0].mxu0
        %v1287 = vadd.f32 %v1195, %v1286
        %v1288 = vpop.f32.mrb[0].mxu0
        %1289 = vmatprep.mubr.bf16.mxu0 0
        %1290 = vmatmul.mubr.bf16.gmra.mrb[0].mxu0 %v1219
        %v1291 = vpop.f32.mrb[0].mxu0
        %v1292 = vadd.f32 %v1195, %v1291
        %v1293 = vpop.f32.mrb[0].mxu0
        %v1294 = vpop.f32.mrb[0].mxu0
        %v1295 = vadd.f32 %v1195, %v1294
        %v1296 = vpop.f32.mrb[0].mxu0
        %1297 = vmatprep.mubr.bf16.mxu0 0
        %1298 = vmatmul.mubr.bf16.gmra.mrb[0].mxu0 %v1222
        %v1299 = vpop.f32.mrb[0].mxu0
        %v1300 = vadd.f32 %v1195, %v1299
        %v1301 = vpop.f32.mrb[0].mxu0
        %v1302 = vpop.f32.mrb[0].mxu0
        %v1303 = vadd.f32 %v1195, %v1302
        %v1304 = vpop.f32.mrb[0].mxu0
        %1305 = vmatprep.mubr.bf16.mxu0 0
        %1306 = vmatmul.mubr.bf16.gmra.mrb[0].mxu0 %v1225
        %v1307 = vpop.f32.mrb[0].mxu0
        %v1308 = vadd.f32 %v1195, %v1307
        %v1309 = vpop.f32.mrb[0].mxu0
        %v1310 = vpop.f32.mrb[0].mxu0
        %v1311 = vadd.f32 %v1195, %v1310
        %v1312 = vpop.f32.mrb[0].mxu0
        %1313 = vmatprep.mubr.bf16.mxu0 0
        %1314 = vmatmul.mubr.bf16.gmra.mrb[0].mxu0 %v1228
        %v1315 = vpop.f32.mrb[0].mxu0
        %v1316 = vadd.f32 %v1195, %v1315
        %v1317 = vpop.f32.mrb[0].mxu0
        %v1318 = vpop.f32.mrb[0].mxu0
        %v1319 = vadd.f32 %v1195, %v1318
        %v1320 = vpop.f32.mrb[0].mxu0
        %1321 = vmatprep.mubr.bf16.mxu0 0
        %1322 = vmatmul.mubr.bf16.gmra.mrb[0].mxu0 %v1231
        %v1323 = vpop.f32.mrb[0].mxu0
        %v1324 = vadd.f32 %v1195, %v1323
        %v1325 = vpop.f32.mrb[0].mxu0
        %v1326 = vpop.f32.mrb[0].mxu0
        %v1327 = vadd.f32 %v1195, %v1326
        %v1328 = vpop.f32.mrb[0].mxu0
        %1329 = vdwg.mxu0
        %vm1330 = vcmp.gt.f32.partialorder %v1268, 0.0
        %vm1331 = vcmp.gt.f32.partialorder %v1271, 0.0
        %vm1332 = vcmp.gt.f32.partialorder %v1276, 0.0
        %vm1333 = vcmp.gt.f32.partialorder %v1279, 0.0
        %vm1334 = vcmp.gt.f32.partialorder %v1284, 0.0
        %vm1335 = vcmp.gt.f32.partialorder %v1287, 0.0
        %vm1336 = vcmp.gt.f32.partialorder %v1292, 0.0
        %vm1337 = vcmp.gt.f32.partialorder %v1295, 0.0
        %vm1338 = vcmp.gt.f32.partialorder %v1300, 0.0
        %vm1339 = vcmp.gt.f32.partialorder %v1303, 0.0
        %vm1340 = vcmp.gt.f32.partialorder %v1308, 0.0
        %vm1341 = vcmp.gt.f32.partialorder %v1311, 0.0
        %vm1342 = vcmp.gt.f32.partialorder %v1316, 0.0
        %vm1343 = vcmp.gt.f32.partialorder %v1319, 0.0
        %vm1344 = vcmp.gt.f32.partialorder %v1324, 0.0
        %vm1345 = vcmp.gt.f32.partialorder %v1327, 0.0
        %v1346 = vmul.f32 %v1268, 0.01
        %v1347 = vmul.f32 %v1271, 0.01
        %v1348 = vmul.f32 %v1276, 0.01
        %v1349 = vmul.f32 %v1279, 0.01
        %v1350 = vmul.f32 %v1284, 0.01
        %v1351 = vmul.f32 %v1287, 0.01
        %v1352 = vmul.f32 %v1292, 0.01
        %v1353 = vmul.f32 %v1295, 0.01
        %v1354 = vmul.f32 %v1300, 0.01
        %v1355 = vmul.f32 %v1303, 0.01
        %v1356 = vmul.f32 %v1308, 0.01
        %v1357 = vmul.f32 %v1311, 0.01
        %v1358 = vmul.f32 %v1316, 0.01
        %v1359 = vmul.f32 %v1319, 0.01
        %v1360 = vmul.f32 %v1324, 0.01
        %v1361 = vmul.f32 %v1327, 0.01
        %v1362 = vsel %vm1330, %v1268, %v1346
        %v1363 = vsel %vm1331, %v1271, %v1347
        %v1364 = vsel %vm1332, %v1276, %v1348
        %v1365 = vsel %vm1333, %v1279, %v1349
        %v1366 = vsel %vm1334, %v1284, %v1350
        %v1367 = vsel %vm1335, %v1287, %v1351
        %v1368 = vsel %vm1336, %v1292, %v1352
        %v1369 = vsel %vm1337, %v1295, %v1353
        %v1370 = vsel %vm1338, %v1300, %v1354
        %v1371 = vsel %vm1339, %v1303, %v1355
        %v1372 = vsel %vm1340, %v1308, %v1356
        %v1373 = vsel %vm1341, %v1311, %v1357
        %v1374 = vsel %vm1342, %v1316, %v1358
        %v1375 = vsel %vm1343, %v1319, %v1359
        %v1376 = vsel %vm1344, %v1324, %v1360
        %v1377 = vsel %vm1345, %v1327, %v1361
        %v1378 = vpack.c.bf16 %v1363, %v1362
        %v1379 = vpack.c.bf16 %v1365, %v1364
        %v1380 = vpack.c.bf16 %v1367, %v1366
        %v1381 = vpack.c.bf16 %v1369, %v1368
        %v1382 = vpack.c.bf16 %v1371, %v1370
        %v1383 = vpack.c.bf16 %v1373, %v1372
        %v1384 = vpack.c.bf16 %v1375, %v1374
        %v1385 = vpack.c.bf16 %v1377, %v1376
        %v1386 = vld [vmem:[#allocation10] sm:$0xf]
        %v1387 = vld [vmem:[#allocation10 + $0x4] sm:$0xf]
        %v1388 = vld [vmem:[#allocation10 + $0x8] sm:$0xf]
        %v1389 = vld [vmem:[#allocation10 + $0xc] sm:$0xf]
        %v1390 = vlaneseq
        %v1391 = vshrl.u32 %v1390, 7
        %v1392 = vsub.s32 1, %v1391
        %v1393 = vrot.slane %v1179, %v1392
        %v1398 = vunpack.c.l.b16 %v1386
        %v1399 = vunpack.c.l.b16 %v1387
        %v1400 = vunpack.c.l.b16 %v1388
        %v1401 = vunpack.c.l.b16 %v1389
        %v1402 = vpack.c.b16 %v1399, %v1398
        %v1403 = vpack.c.b16 %v1401, %v1400
        %v1407 = vsel %vm1208, %v1378, 0
        %v1410 = vsel %vm1208, %v1379, 0
        %v1413 = vsel %vm1208, %v1380, 0
        %v1416 = vsel %vm1208, %v1381, 0
        %v1419 = vsel %vm1208, %v1382, 0
        %v1422 = vsel %vm1208, %v1383, 0
        %v1425 = vsel %vm1208, %v1384, 0
        %v1428 = vsel %vm1208, %v1385, 0
        %1430 = vmatprep.subr.bf16.mxu0 0
        %1431 = vmatpush1.bf16.msra.mxu0 %v1402
        %1432 = vmatprep.subr.bf16.mxu0 0
        %1433 = vmatpush1.bf16.msra.mxu0 %v1403
        %1434 = vmatprep.subr.bf16.mxu0 0
        %1435 = vmatpush1.bf16.msra.mxu0 0
        %1436 = vmatprep.subr.bf16.mxu0 0
        %1437 = vmatpush1.bf16.msra.mxu0 0
        %1438 = vmatprep.subr.bf16.mxu0 0
        %1439 = vmatpush1.bf16.msra.mxu0 0
        %1440 = vmatprep.subr.bf16.mxu0 0
        %1441 = vmatpush1.bf16.msra.mxu0 0
        %1442 = vmatprep.subr.bf16.mxu0 0
        %1443 = vmatpush1.bf16.msra.mxu0 0
        %1444 = vmatprep.subr.bf16.mxu0 0
        %1445 = vmatpush1.bf16.msra.mxu0 0
        %1446 = vmatprep.subr.bf16.mxu0 0
        %1447 = vmatpush1.bf16.msra.mxu0 0
        %1448 = vmatprep.subr.bf16.mxu0 0
        %1449 = vmatpush1.bf16.msra.mxu0 0
        %1450 = vmatprep.subr.bf16.mxu0 0
        %1451 = vmatpush1.bf16.msra.mxu0 0
        %1452 = vmatprep.subr.bf16.mxu0 0
        %1453 = vmatpush1.bf16.msra.mxu0 0
        %1454 = vmatprep.subr.bf16.mxu0 0
        %1455 = vmatpush1.bf16.msra.mxu0 0
        %1456 = vmatprep.subr.bf16.mxu0 0
        %1457 = vmatpush1.bf16.msra.mxu0 0
        %1458 = vmatprep.subr.bf16.mxu0 0
        %1459 = vmatpush1.bf16.msra.mxu0 0
        %1460 = vmatprep.subr.bf16.mxu0 0
        %1461 = vmatpush1.bf16.msra.mxu0 0
        %1462 = vmatprep.mubr.bf16.mxu0 0
        %1463 = vmatmul.mubr.bf16.gmra.mrb[0].mxu0 %v1407
        %v1464 = vpop.f32.mrb[0].mxu0
        %v1465 = vadd.f32 %v1393, %v1464
        %v1466 = vpop.f32.mrb[0].mxu0
        %v1467 = vpop.f32.mrb[0].mxu0
        %v1468 = vadd.f32 %v1393, %v1467
        %v1469 = vpop.f32.mrb[0].mxu0
        %1470 = vmatprep.mubr.bf16.mxu0 0
        %1471 = vmatmul.mubr.bf16.gmra.mrb[0].mxu0 %v1410
        %v1472 = vpop.f32.mrb[0].mxu0
        %v1473 = vadd.f32 %v1393, %v1472
        %v1474 = vpop.f32.mrb[0].mxu0
        %v1475 = vpop.f32.mrb[0].mxu0
        %v1476 = vadd.f32 %v1393, %v1475
        %v1477 = vpop.f32.mrb[0].mxu0
        %1478 = vmatprep.mubr.bf16.mxu0 0
        %1479 = vmatmul.mubr.bf16.gmra.mrb[0].mxu0 %v1413
        %v1480 = vpop.f32.mrb[0].mxu0
        %v1481 = vadd.f32 %v1393, %v1480
        %v1482 = vpop.f32.mrb[0].mxu0
        %v1483 = vpop.f32.mrb[0].mxu0
        %v1484 = vadd.f32 %v1393, %v1483
        %v1485 = vpop.f32.mrb[0].mxu0
        %1486 = vmatprep.mubr.bf16.mxu0 0
        %1487 = vmatmul.mubr.bf16.gmra.mrb[0].mxu0 %v1416
        %v1488 = vpop.f32.mrb[0].mxu0
        %v1489 = vadd.f32 %v1393, %v1488
        %v1490 = vpop.f32.mrb[0].mxu0
        %v1491 = vpop.f32.mrb[0].mxu0
        %v1492 = vadd.f32 %v1393, %v1491
        %v1493 = vpop.f32.mrb[0].mxu0
        %1494 = vmatprep.mubr.bf16.mxu0 0
        %1495 = vmatmul.mubr.bf16.gmra.mrb[0].mxu0 %v1419
        %v1496 = vpop.f32.mrb[0].mxu0
        %v1497 = vadd.f32 %v1393, %v1496
        %v1498 = vpop.f32.mrb[0].mxu0
        %v1499 = vpop.f32.mrb[0].mxu0
        %v1500 = vadd.f32 %v1393, %v1499
        %v1501 = vpop.f32.mrb[0].mxu0
        %1502 = vmatprep.mubr.bf16.mxu0 0
        %1503 = vmatmul.mubr.bf16.gmra.mrb[0].mxu0 %v1422
        %v1504 = vpop.f32.mrb[0].mxu0
        %v1505 = vadd.f32 %v1393, %v1504
        %v1506 = vpop.f32.mrb[0].mxu0
        %v1507 = vpop.f32.mrb[0].mxu0
        %v1508 = vadd.f32 %v1393, %v1507
        %v1509 = vpop.f32.mrb[0].mxu0
        %1510 = vmatprep.mubr.bf16.mxu0 0
        %1511 = vmatmul.mubr.bf16.gmra.mrb[0].mxu0 %v1425
        %v1512 = vpop.f32.mrb[0].mxu0
        %v1513 = vadd.f32 %v1393, %v1512
        %v1514 = vpop.f32.mrb[0].mxu0
        %v1515 = vpop.f32.mrb[0].mxu0
        %v1516 = vadd.f32 %v1393, %v1515
        %v1517 = vpop.f32.mrb[0].mxu0
        %1518 = vmatprep.mubr.bf16.mxu0 0
        %1519 = vmatmul.mubr.bf16.gmra.mrb[0].mxu0 %v1428
        %v1520 = vpop.f32.mrb[0].mxu0
        %v1521 = vadd.f32 %v1393, %v1520
        %v1522 = vpop.f32.mrb[0].mxu0
        %v1523 = vpop.f32.mrb[0].mxu0
        %v1524 = vadd.f32 %v1393, %v1523
        %v1525 = vpop.f32.mrb[0].mxu0
        %1526 = vdwg.mxu0
        %vm1527 = vcmp.gt.f32.partialorder %v1465, 0.0
        %vm1528 = vcmp.gt.f32.partialorder %v1468, 0.0
        %vm1529 = vcmp.gt.f32.partialorder %v1473, 0.0
        %vm1530 = vcmp.gt.f32.partialorder %v1476, 0.0
        %vm1531 = vcmp.gt.f32.partialorder %v1481, 0.0
        %vm1532 = vcmp.gt.f32.partialorder %v1484, 0.0
        %vm1533 = vcmp.gt.f32.partialorder %v1489, 0.0
        %vm1534 = vcmp.gt.f32.partialorder %v1492, 0.0
        %vm1535 = vcmp.gt.f32.partialorder %v1497, 0.0
        %vm1536 = vcmp.gt.f32.partialorder %v1500, 0.0
        %vm1537 = vcmp.gt.f32.partialorder %v1505, 0.0
        %vm1538 = vcmp.gt.f32.partialorder %v1508, 0.0
        %vm1539 = vcmp.gt.f32.partialorder %v1513, 0.0
        %vm1540 = vcmp.gt.f32.partialorder %v1516, 0.0
        %vm1541 = vcmp.gt.f32.partialorder %v1521, 0.0
        %vm1542 = vcmp.gt.f32.partialorder %v1524, 0.0
        %v1543 = vmul.f32 %v1465, 0.01
        %v1544 = vmul.f32 %v1468, 0.01
        %v1545 = vmul.f32 %v1473, 0.01
        %v1546 = vmul.f32 %v1476, 0.01
        %v1547 = vmul.f32 %v1481, 0.01
        %v1548 = vmul.f32 %v1484, 0.01
        %v1549 = vmul.f32 %v1489, 0.01
        %v1550 = vmul.f32 %v1492, 0.01
        %v1551 = vmul.f32 %v1497, 0.01
        %v1552 = vmul.f32 %v1500, 0.01
        %v1553 = vmul.f32 %v1505, 0.01
        %v1554 = vmul.f32 %v1508, 0.01
        %v1555 = vmul.f32 %v1513, 0.01
        %v1556 = vmul.f32 %v1516, 0.01
        %v1557 = vmul.f32 %v1521, 0.01
        %v1558 = vmul.f32 %v1524, 0.01
        %v1559 = vsel %vm1527, %v1465, %v1543
        %v1560 = vsel %vm1528, %v1468, %v1544
        %v1561 = vsel %vm1529, %v1473, %v1545
        %v1562 = vsel %vm1530, %v1476, %v1546
        %v1563 = vsel %vm1531, %v1481, %v1547
        %v1564 = vsel %vm1532, %v1484, %v1548
        %v1565 = vsel %vm1533, %v1489, %v1549
        %v1566 = vsel %vm1534, %v1492, %v1550
        %v1567 = vsel %vm1535, %v1497, %v1551
        %v1568 = vsel %vm1536, %v1500, %v1552
        %v1569 = vsel %vm1537, %v1505, %v1553
        %v1570 = vsel %vm1538, %v1508, %v1554
        %v1571 = vsel %vm1539, %v1513, %v1555
        %v1572 = vsel %vm1540, %v1516, %v1556
        %v1573 = vsel %vm1541, %v1521, %v1557
        %v1574 = vsel %vm1542, %v1524, %v1558
        %v1575 = vpack.c.bf16 %v1560, %v1559
        %v1576 = vpack.c.bf16 %v1562, %v1561
        %v1577 = vpack.c.bf16 %v1564, %v1563
        %v1578 = vpack.c.bf16 %v1566, %v1565
        %v1579 = vpack.c.bf16 %v1568, %v1567
        %v1580 = vpack.c.bf16 %v1570, %v1569
        %v1581 = vpack.c.bf16 %v1572, %v1571
        %v1582 = vpack.c.bf16 %v1574, %v1573
        %v1583 = vld [vmem:[#allocation11] sm:$0xf]
        %v1584 = vld [vmem:[#allocation11 + $0x4] sm:$0xf]
        %v1585 = vld [vmem:[#allocation11 + $0x8] sm:$0xf]
        %v1586 = vld [vmem:[#allocation11 + $0xc] sm:$0xf]
        %v1587 = vlaneseq
        %v1588 = vshrl.u32 %v1587, 7
        %v1589 = vsub.s32 2, %v1588
        %v1590 = vrot.slane %v1179, %v1589
        %v1595 = vunpack.c.l.b16 %v1583
        %v1596 = vunpack.c.l.b16 %v1584
        %v1597 = vunpack.c.l.b16 %v1585
        %v1598 = vunpack.c.l.b16 %v1586
        %v1599 = vpack.c.b16 %v1596, %v1595
        %v1600 = vpack.c.b16 %v1598, %v1597
        %v1604 = vsel %vm1208, %v1575, 0
        %v1607 = vsel %vm1208, %v1576, 0
        %v1610 = vsel %vm1208, %v1577, 0
        %v1613 = vsel %vm1208, %v1578, 0
        %v1616 = vsel %vm1208, %v1579, 0
        %v1619 = vsel %vm1208, %v1580, 0
        %v1622 = vsel %vm1208, %v1581, 0
        %v1625 = vsel %vm1208, %v1582, 0
        %1627 = vmatprep.subr.bf16.mxu0 0
        %1628 = vmatpush1.bf16.msra.mxu0 %v1599
        %1629 = vmatprep.subr.bf16.mxu0 0
        %1630 = vmatpush1.bf16.msra.mxu0 %v1600
        %1631 = vmatprep.subr.bf16.mxu0 0
        %1632 = vmatpush1.bf16.msra.mxu0 0
        %1633 = vmatprep.subr.bf16.mxu0 0
        %1634 = vmatpush1.bf16.msra.mxu0 0
        %1635 = vmatprep.subr.bf16.mxu0 0
        %1636 = vmatpush1.bf16.msra.mxu0 0
        %1637 = vmatprep.subr.bf16.mxu0 0
        %1638 = vmatpush1.bf16.msra.mxu0 0
        %1639 = vmatprep.subr.bf16.mxu0 0
        %1640 = vmatpush1.bf16.msra.mxu0 0
        %1641 = vmatprep.subr.bf16.mxu0 0
        %1642 = vmatpush1.bf16.msra.mxu0 0
        %1643 = vmatprep.subr.bf16.mxu0 0
        %1644 = vmatpush1.bf16.msra.mxu0 0
        %1645 = vmatprep.subr.bf16.mxu0 0
        %1646 = vmatpush1.bf16.msra.mxu0 0
        %1647 = vmatprep.subr.bf16.mxu0 0
        %1648 = vmatpush1.bf16.msra.mxu0 0
        %1649 = vmatprep.subr.bf16.mxu0 0
        %1650 = vmatpush1.bf16.msra.mxu0 0
        %1651 = vmatprep.subr.bf16.mxu0 0
        %1652 = vmatpush1.bf16.msra.mxu0 0
        %1653 = vmatprep.subr.bf16.mxu0 0
        %1654 = vmatpush1.bf16.msra.mxu0 0
        %1655 = vmatprep.subr.bf16.mxu0 0
        %1656 = vmatpush1.bf16.msra.mxu0 0
        %1657 = vmatprep.subr.bf16.mxu0 0
        %1658 = vmatpush1.bf16.msra.mxu0 0
        %1659 = vmatprep.mubr.bf16.mxu0 0
        %1660 = vmatmul.mubr.bf16.gmra.mrb[0].mxu0 %v1604
        %v1661 = vpop.f32.mrb[0].mxu0
        %v1662 = vadd.f32 %v1590, %v1661
        %v1663 = vpop.f32.mrb[0].mxu0
        %v1664 = vpop.f32.mrb[0].mxu0
        %v1665 = vadd.f32 %v1590, %v1664
        %v1666 = vpop.f32.mrb[0].mxu0
        %1667 = vmatprep.mubr.bf16.mxu0 0
        %1668 = vmatmul.mubr.bf16.gmra.mrb[0].mxu0 %v1607
        %v1669 = vpop.f32.mrb[0].mxu0
        %v1670 = vadd.f32 %v1590, %v1669
        %v1671 = vpop.f32.mrb[0].mxu0
        %v1672 = vpop.f32.mrb[0].mxu0
        %v1673 = vadd.f32 %v1590, %v1672
        %v1674 = vpop.f32.mrb[0].mxu0
        %1675 = vmatprep.mubr.bf16.mxu0 0
        %1676 = vmatmul.mubr.bf16.gmra.mrb[0].mxu0 %v1610
        %v1677 = vpop.f32.mrb[0].mxu0
        %v1678 = vadd.f32 %v1590, %v1677
        %v1679 = vpop.f32.mrb[0].mxu0
        %v1680 = vpop.f32.mrb[0].mxu0
        %v1681 = vadd.f32 %v1590, %v1680
        %v1682 = vpop.f32.mrb[0].mxu0
        %1683 = vmatprep.mubr.bf16.mxu0 0
        %1684 = vmatmul.mubr.bf16.gmra.mrb[0].mxu0 %v1613
        %v1685 = vpop.f32.mrb[0].mxu0
        %v1686 = vadd.f32 %v1590, %v1685
        %v1687 = vpop.f32.mrb[0].mxu0
        %v1688 = vpop.f32.mrb[0].mxu0
        %v1689 = vadd.f32 %v1590, %v1688
        %v1690 = vpop.f32.mrb[0].mxu0
        %1691 = vmatprep.mubr.bf16.mxu0 0
        %1692 = vmatmul.mubr.bf16.gmra.mrb[0].mxu0 %v1616
        %v1693 = vpop.f32.mrb[0].mxu0
        %v1694 = vadd.f32 %v1590, %v1693
        %v1695 = vpop.f32.mrb[0].mxu0
        %v1696 = vpop.f32.mrb[0].mxu0
        %v1697 = vadd.f32 %v1590, %v1696
        %v1698 = vpop.f32.mrb[0].mxu0
        %1699 = vmatprep.mubr.bf16.mxu0 0
        %1700 = vmatmul.mubr.bf16.gmra.mrb[0].mxu0 %v1619
        %v1701 = vpop.f32.mrb[0].mxu0
        %v1702 = vadd.f32 %v1590, %v1701
        %v1703 = vpop.f32.mrb[0].mxu0
        %v1704 = vpop.f32.mrb[0].mxu0
        %v1705 = vadd.f32 %v1590, %v1704
        %v1706 = vpop.f32.mrb[0].mxu0
        %1707 = vmatprep.mubr.bf16.mxu0 0
        %1708 = vmatmul.mubr.bf16.gmra.mrb[0].mxu0 %v1622
        %v1709 = vpop.f32.mrb[0].mxu0
        %v1710 = vadd.f32 %v1590, %v1709
        %v1711 = vpop.f32.mrb[0].mxu0
        %v1712 = vpop.f32.mrb[0].mxu0
        %v1713 = vadd.f32 %v1590, %v1712
        %v1714 = vpop.f32.mrb[0].mxu0
        %1715 = vmatprep.mubr.bf16.mxu0 0
        %1716 = vmatmul.mubr.bf16.gmra.mrb[0].mxu0 %v1625
        %v1717 = vpop.f32.mrb[0].mxu0
        %v1718 = vadd.f32 %v1590, %v1717
        %v1719 = vpop.f32.mrb[0].mxu0
        %v1720 = vpop.f32.mrb[0].mxu0
        %v1721 = vadd.f32 %v1590, %v1720
        %v1722 = vpop.f32.mrb[0].mxu0
        %1723 = vdwg.mxu0
        %vm1724 = vcmp.gt.f32.partialorder %v1662, 0.0
        %vm1725 = vcmp.gt.f32.partialorder %v1665, 0.0
        %vm1726 = vcmp.gt.f32.partialorder %v1670, 0.0
        %vm1727 = vcmp.gt.f32.partialorder %v1673, 0.0
        %vm1728 = vcmp.gt.f32.partialorder %v1678, 0.0
        %vm1729 = vcmp.gt.f32.partialorder %v1681, 0.0
        %vm1730 = vcmp.gt.f32.partialorder %v1686, 0.0
        %vm1731 = vcmp.gt.f32.partialorder %v1689, 0.0
        %vm1732 = vcmp.gt.f32.partialorder %v1694, 0.0
        %vm1733 = vcmp.gt.f32.partialorder %v1697, 0.0
        %vm1734 = vcmp.gt.f32.partialorder %v1702, 0.0
        %vm1735 = vcmp.gt.f32.partialorder %v1705, 0.0
        %vm1736 = vcmp.gt.f32.partialorder %v1710, 0.0
        %vm1737 = vcmp.gt.f32.partialorder %v1713, 0.0
        %vm1738 = vcmp.gt.f32.partialorder %v1718, 0.0
        %vm1739 = vcmp.gt.f32.partialorder %v1721, 0.0
        %v1740 = vmul.f32 %v1662, 0.01
        %v1741 = vmul.f32 %v1665, 0.01
        %v1742 = vmul.f32 %v1670, 0.01
        %v1743 = vmul.f32 %v1673, 0.01
        %v1744 = vmul.f32 %v1678, 0.01
        %v1745 = vmul.f32 %v1681, 0.01
        %v1746 = vmul.f32 %v1686, 0.01
        %v1747 = vmul.f32 %v1689, 0.01
        %v1748 = vmul.f32 %v1694, 0.01
        %v1749 = vmul.f32 %v1697, 0.01
        %v1750 = vmul.f32 %v1702, 0.01
        %v1751 = vmul.f32 %v1705, 0.01
        %v1752 = vmul.f32 %v1710, 0.01
        %v1753 = vmul.f32 %v1713, 0.01
        %v1754 = vmul.f32 %v1718, 0.01
        %v1755 = vmul.f32 %v1721, 0.01
        %v1756 = vsel %vm1724, %v1662, %v1740
        %v1757 = vsel %vm1725, %v1665, %v1741
        %v1758 = vsel %vm1726, %v1670, %v1742
        %v1759 = vsel %vm1727, %v1673, %v1743
        %v1760 = vsel %vm1728, %v1678, %v1744
        %v1761 = vsel %vm1729, %v1681, %v1745
        %v1762 = vsel %vm1730, %v1686, %v1746
        %v1763 = vsel %vm1731, %v1689, %v1747
        %v1764 = vsel %vm1732, %v1694, %v1748
        %v1765 = vsel %vm1733, %v1697, %v1749
        %v1766 = vsel %vm1734, %v1702, %v1750
        %v1767 = vsel %vm1735, %v1705, %v1751
        %v1768 = vsel %vm1736, %v1710, %v1752
        %v1769 = vsel %vm1737, %v1713, %v1753
        %v1770 = vsel %vm1738, %v1718, %v1754
        %v1771 = vsel %vm1739, %v1721, %v1755
        %1772 = vmax.xlane.f32.xlu0 %v1756
        %v1773 = vpop.xlane.xlu0 %1772
        %1774 = vmax.xlane.f32.xlu0 %v1757
        %v1775 = vpop.xlane.xlu0 %1774
        %1776 = vmax.xlane.f32.xlu0 %v1758
        %v1777 = vpop.xlane.xlu0 %1776
        %1778 = vmax.xlane.f32.xlu0 %v1759
        %v1779 = vpop.xlane.xlu0 %1778
        %1780 = vmax.xlane.f32.xlu0 %v1760
        %v1781 = vpop.xlane.xlu0 %1780
        %1782 = vmax.xlane.f32.xlu0 %v1761
        %v1783 = vpop.xlane.xlu0 %1782
        %1784 = vmax.xlane.f32.xlu0 %v1762
        %v1785 = vpop.xlane.xlu0 %1784
        %1786 = vmax.xlane.f32.xlu0 %v1763
        %v1787 = vpop.xlane.xlu0 %1786
        %1788 = vmax.xlane.f32.xlu0 %v1764
        %v1789 = vpop.xlane.xlu0 %1788
        %1790 = vmax.xlane.f32.xlu0 %v1765
        %v1791 = vpop.xlane.xlu0 %1790
        %1792 = vmax.xlane.f32.xlu0 %v1766
        %v1793 = vpop.xlane.xlu0 %1792
        %1794 = vmax.xlane.f32.xlu0 %v1767
        %v1795 = vpop.xlane.xlu0 %1794
        %1796 = vmax.xlane.f32.xlu0 %v1768
        %v1797 = vpop.xlane.xlu0 %1796
        %1798 = vmax.xlane.f32.xlu0 %v1769
        %v1799 = vpop.xlane.xlu0 %1798
        %1800 = vmax.xlane.f32.xlu0 %v1770
        %v1801 = vpop.xlane.xlu0 %1800
        %1802 = vmax.xlane.f32.xlu0 %v1771
        %v1803 = vpop.xlane.xlu0 %1802
        %v1804 = vsub.f32 %v1756, %v1773
        %v1805 = vsub.f32 %v1757, %v1775
        %v1806 = vsub.f32 %v1758, %v1777
        %v1807 = vsub.f32 %v1759, %v1779
        %v1808 = vsub.f32 %v1760, %v1781
        %v1809 = vsub.f32 %v1761, %v1783
        %v1810 = vsub.f32 %v1762, %v1785
        %v1811 = vsub.f32 %v1763, %v1787
        %v1812 = vsub.f32 %v1764, %v1789
        %v1813 = vsub.f32 %v1765, %v1791
        %v1814 = vsub.f32 %v1766, %v1793
        %v1815 = vsub.f32 %v1767, %v1795
        %v1816 = vsub.f32 %v1768, %v1797
        %v1817 = vsub.f32 %v1769, %v1799
        %v1818 = vsub.f32 %v1770, %v1801
        %v1819 = vsub.f32 %v1771, %v1803
        %v1820 = vmul.f32 %v1804, 1.442695
        %v1821 = vpow.pop %v1820
        %v1822 = vmul.f32 %v1805, 1.442695
        %v1823 = vpow.pop %v1822
        %v1824 = vmul.f32 %v1806, 1.442695
        %v1825 = vpow.pop %v1824
        %v1826 = vmul.f32 %v1807, 1.442695
        %v1827 = vpow.pop %v1826
        %v1828 = vmul.f32 %v1808, 1.442695
        %v1829 = vpow.pop %v1828
        %v1830 = vmul.f32 %v1809, 1.442695
        %v1831 = vpow.pop %v1830
        %v1832 = vmul.f32 %v1810, 1.442695
        %v1833 = vpow.pop %v1832
        %v1834 = vmul.f32 %v1811, 1.442695
        %v1835 = vpow.pop %v1834
        %v1836 = vmul.f32 %v1812, 1.442695
        %v1837 = vpow.pop %v1836
        %v1838 = vmul.f32 %v1813, 1.442695
        %v1839 = vpow.pop %v1838
        %v1840 = vmul.f32 %v1814, 1.442695
        %v1841 = vpow.pop %v1840
        %v1842 = vmul.f32 %v1815, 1.442695
        %v1843 = vpow.pop %v1842
        %v1844 = vmul.f32 %v1816, 1.442695
        %v1845 = vpow.pop %v1844
        %v1846 = vmul.f32 %v1817, 1.442695
        %v1847 = vpow.pop %v1846
        %v1848 = vmul.f32 %v1818, 1.442695
        %v1849 = vpow.pop %v1848
        %v1850 = vmul.f32 %v1819, 1.442695
        %v1851 = vpow.pop %v1850
        %1852 = vadd.xlane.f32.xlu0 %v1821
        %v1853 = vpop.xlane.xlu0 %1852
        %1854 = vadd.xlane.f32.xlu0 %v1823
        %v1855 = vpop.xlane.xlu0 %1854
        %1856 = vadd.xlane.f32.xlu0 %v1825
        %v1857 = vpop.xlane.xlu0 %1856
        %1858 = vadd.xlane.f32.xlu0 %v1827
        %v1859 = vpop.xlane.xlu0 %1858
        %1860 = vadd.xlane.f32.xlu0 %v1829
        %v1861 = vpop.xlane.xlu0 %1860
        %1862 = vadd.xlane.f32.xlu0 %v1831
        %v1863 = vpop.xlane.xlu0 %1862
        %1864 = vadd.xlane.f32.xlu0 %v1833
        %v1865 = vpop.xlane.xlu0 %1864
        %1866 = vadd.xlane.f32.xlu0 %v1835
        %v1867 = vpop.xlane.xlu0 %1866
        %1868 = vadd.xlane.f32.xlu0 %v1837
        %v1869 = vpop.xlane.xlu0 %1868
        %1870 = vadd.xlane.f32.xlu0 %v1839
        %v1871 = vpop.xlane.xlu0 %1870
        %1872 = vadd.xlane.f32.xlu0 %v1841
        %v1873 = vpop.xlane.xlu0 %1872
        %1874 = vadd.xlane.f32.xlu0 %v1843
        %v1875 = vpop.xlane.xlu0 %1874
        %1876 = vadd.xlane.f32.xlu0 %v1845
        %v1877 = vpop.xlane.xlu0 %1876
        %1878 = vadd.xlane.f32.xlu0 %v1847
        %v1879 = vpop.xlane.xlu0 %1878
        %1880 = vadd.xlane.f32.xlu0 %v1849
        %v1881 = vpop.xlane.xlu0 %1880
        %1882 = vadd.xlane.f32.xlu0 %v1851
        %v1883 = vpop.xlane.xlu0 %1882
        %v1884 = vrcp.pop %v1853
        %v1885 = vrcp.pop %v1855
        %v1886 = vrcp.pop %v1857
        %v1887 = vrcp.pop %v1859
        %v1888 = vrcp.pop %v1861
        %v1889 = vrcp.pop %v1863
        %v1890 = vrcp.pop %v1865
        %v1891 = vrcp.pop %v1867
        %v1892 = vrcp.pop %v1869
        %v1893 = vrcp.pop %v1871
        %v1894 = vrcp.pop %v1873
        %v1895 = vrcp.pop %v1875
        %v1896 = vrcp.pop %v1877
        %v1897 = vrcp.pop %v1879
        %v1898 = vrcp.pop %v1881
        %v1899 = vrcp.pop %v1883
        %v1900 = vmul.f32 %v1853, %v1884
        %v1901 = vmul.f32 %v1855, %v1885
        %v1902 = vmul.f32 %v1857, %v1886
        %v1903 = vmul.f32 %v1859, %v1887
        %v1904 = vmul.f32 %v1861, %v1888
        %v1905 = vmul.f32 %v1863, %v1889
        %v1906 = vmul.f32 %v1865, %v1890
        %v1907 = vmul.f32 %v1867, %v1891
        %v1908 = vmul.f32 %v1869, %v1892
        %v1909 = vmul.f32 %v1871, %v1893
        %v1910 = vmul.f32 %v1873, %v1894
        %v1911 = vmul.f32 %v1875, %v1895
        %v1912 = vmul.f32 %v1877, %v1896
        %v1913 = vmul.f32 %v1879, %v1897
        %v1914 = vmul.f32 %v1881, %v1898
        %v1915 = vmul.f32 %v1883, %v1899
        %v1916 = vsub.f32 2.0, %v1900
        %v1917 = vsub.f32 2.0, %v1901
        %v1918 = vsub.f32 2.0, %v1902
        %v1919 = vsub.f32 2.0, %v1903
        %v1920 = vsub.f32 2.0, %v1904
        %v1921 = vsub.f32 2.0, %v1905
        %v1922 = vsub.f32 2.0, %v1906
        %v1923 = vsub.f32 2.0, %v1907
        %v1924 = vsub.f32 2.0, %v1908
        %v1925 = vsub.f32 2.0, %v1909
        %v1926 = vsub.f32 2.0, %v1910
        %v1927 = vsub.f32 2.0, %v1911
        %v1928 = vsub.f32 2.0, %v1912
        %v1929 = vsub.f32 2.0, %v1913
        %v1930 = vsub.f32 2.0, %v1914
        %v1931 = vsub.f32 2.0, %v1915
        %v1932 = vmul.f32 %v1884, %v1916
        %v1933 = vmul.f32 %v1885, %v1917
        %v1934 = vmul.f32 %v1886, %v1918
        %v1935 = vmul.f32 %v1887, %v1919
        %v1936 = vmul.f32 %v1888, %v1920
        %v1937 = vmul.f32 %v1889, %v1921
        %v1938 = vmul.f32 %v1890, %v1922
        %v1939 = vmul.f32 %v1891, %v1923
        %v1940 = vmul.f32 %v1892, %v1924
        %v1941 = vmul.f32 %v1893, %v1925
        %v1942 = vmul.f32 %v1894, %v1926
        %v1943 = vmul.f32 %v1895, %v1927
        %v1944 = vmul.f32 %v1896, %v1928
        %v1945 = vmul.f32 %v1897, %v1929
        %v1946 = vmul.f32 %v1898, %v1930
        %v1947 = vmul.f32 %v1899, %v1931
        %v1948 = vmul.f32 %v1821, %v1932
        %v1949 = vmul.f32 %v1823, %v1933
        %v1950 = vmul.f32 %v1825, %v1934
        %v1951 = vmul.f32 %v1827, %v1935
        %v1952 = vmul.f32 %v1829, %v1936
        %v1953 = vmul.f32 %v1831, %v1937
        %v1954 = vmul.f32 %v1833, %v1938
        %v1955 = vmul.f32 %v1835, %v1939
        %v1956 = vmul.f32 %v1837, %v1940
        %v1957 = vmul.f32 %v1839, %v1941
        %v1958 = vmul.f32 %v1841, %v1942
        %v1959 = vmul.f32 %v1843, %v1943
        %v1960 = vmul.f32 %v1845, %v1944
        %v1961 = vmul.f32 %v1847, %v1945
        %v1962 = vmul.f32 %v1849, %v1946
        %v1963 = vmul.f32 %v1851, %v1947
        %v1964 = vpack.c.bf16 %v1949, %v1948
        %v1965 = vpack.c.bf16 %v1951, %v1950
        %v1966 = vpack.c.bf16 %v1953, %v1952
        %v1967 = vpack.c.bf16 %v1955, %v1954
        %v1968 = vpack.c.bf16 %v1957, %v1956
        %v1969 = vpack.c.bf16 %v1959, %v1958
        %v1970 = vpack.c.bf16 %v1961, %v1960
        %v1971 = vpack.c.bf16 %v1963, %v1962
        %v1980 = vunpack.c.l.b16 %v1964
        %v1981 = vunpack.c.h.b16 %v1964
        %v1982 = vunpack.c.l.b16 %v1965
        %v1983 = vunpack.c.h.b16 %v1965
        %v1984 = vunpack.c.l.b16 %v1966
        %v1985 = vunpack.c.h.b16 %v1966
        %v1986 = vunpack.c.l.b16 %v1967
        %v1987 = vunpack.c.h.b16 %v1967
        %v1988 = vunpack.c.l.b16 %v1968
        %v1989 = vunpack.c.h.b16 %v1968
        %v1990 = vunpack.c.l.b16 %v1969
        %v1991 = vunpack.c.h.b16 %v1969
        %v1992 = vunpack.c.l.b16 %v1970
        %v1993 = vunpack.c.h.b16 %v1970
        %v1994 = vunpack.c.l.b16 %v1971
        %v1995 = vunpack.c.h.b16 %v1971
        %v1996 = vpack.c.b16 %v1980, %v1980
        %v1997 = vpack.c.b16 %v1981, %v1981
        %v1998 = vpack.c.b16 %v1982, %v1982
        %v1999 = vpack.c.b16 %v1983, %v1983
        %v2000 = vpack.c.b16 %v1984, %v1984
        %v2001 = vpack.c.b16 %v1985, %v1985
        %v2002 = vpack.c.b16 %v1986, %v1986
        %v2003 = vpack.c.b16 %v1987, %v1987
        %v2004 = vpack.c.b16 %v1988, %v1988
        %v2005 = vpack.c.b16 %v1989, %v1989
        %v2006 = vpack.c.b16 %v1990, %v1990
        %v2007 = vpack.c.b16 %v1991, %v1991
        %v2008 = vpack.c.b16 %v1992, %v1992
        %v2009 = vpack.c.b16 %v1993, %v1993
        %v2010 = vpack.c.b16 %v1994, %v1994
        %v2011 = vpack.c.b16 %v1995, %v1995
        %2028 = vst [vmem:[%s382] sm:$0xf] %v1996
        %2029 = vst [vmem:[%s382 + $0x4] sm:$0xf] %v1997
        %2030 = vst [vmem:[%s382 + $0x8] sm:$0xf] %v1998
        %2031 = vst [vmem:[%s382 + $0xc] sm:$0xf] %v1999
        %2032 = vst [vmem:[%s382 + $0x10] sm:$0xf] %v2000
        %2033 = vst [vmem:[%s382 + $0x14] sm:$0xf] %v2001
        %2034 = vst [vmem:[%s382 + $0x18] sm:$0xf] %v2002
        %2035 = vst [vmem:[%s382 + $0x1c] sm:$0xf] %v2003
        %2036 = vst [vmem:[%s382 + $0x20] sm:$0xf] %v2004
        %2037 = vst [vmem:[%s382 + $0x24] sm:$0xf] %v2005
        %2038 = vst [vmem:[%s382 + $0x28] sm:$0xf] %v2006
        %2039 = vst [vmem:[%s382 + $0x2c] sm:$0xf] %v2007
        %2040 = vst [vmem:[%s382 + $0x30] sm:$0xf] %v2008
        %2041 = vst [vmem:[%s382 + $0x34] sm:$0xf] %v2009
        %2042 = vst [vmem:[%s382 + $0x38] sm:$0xf] %v2010
        %2043 = vst [vmem:[%s382 + $0x3c] sm:$0xf] %v2011
        %s2044 = sand.u32 %s187, 1
        %s2045 = scalar_lea.sflag [#allocation4], %s2044
        %s2046 = sand.u32 %s187, 1
        %s2047 = smul.addr %s2046, 64
        %s2048 = scalar_lea.vmem [#allocation14], %s2047
        // Predicated region
        $region77: #{tpu_custom_call.1} parent=47 // pred_check
          %p2049 = pneg %p197
        $region78: #{tpu_custom_call.1} parent=47 // pred_check_branch
          %2051 = sbr.rel (%p2049) target = $region80
        $region79: #{tpu_custom_call.1} parent=47 // pred_region
          %s2052 = smul.u32 16, %s27
          %s2054 = ssub.s32 1024, 1024
          %2055 = vsyncadd %s2045, %s2054
          %s2056 = smul.addr %s2052, 64
          %s2057 = scalar_lea.hbm %s7, %s2056
          %s2058 = sshll.u32 %s2048, 4
          %s2059 = int_to_ptr.vmem [resolvable:$true] %s2058
          %2064 = dma.vmem_to_hbm [thread:$0]  %s2059, 1024, %s2057, %s2045, 64, 64, 4
        $region80: #{tpu_custom_call.1} parent=47 // pred_fallthru
          _
      $region48: #{tpu_custom_call.1} parent=5 // pred_fallthru
        _
      %p2065 = scmp.le.s32.totalorder 2, %s22
      // Predicated region
      $region81: #{tpu_custom_call.1} parent=5 // pred_check
        %p2066 = pneg %p2065
      $region82: #{tpu_custom_call.1} parent=5 // pred_check_branch
        %2068 = sbr.rel (%p2066) target = $region84
      $region83: #{tpu_custom_call.1} parent=5 // pred_region
        %s2069 = ssub.s32 %s22, 2
        // Predicated region
        $region85: #{tpu_custom_call.1} parent=83 // pred_check
          %p2070 = pneg %p203
        $region86: #{tpu_custom_call.1} parent=83 // pred_check_branch
          %2072 = sbr.rel (%p2070) target = $region88
        $region87: #{tpu_custom_call.1} parent=83 // pred_region
          %s2073 = sand.u32 %s188, 1
          %s2074 = scalar_lea.sflag [#allocation4], %s2073
          %s2075 = sand.u32 %s188, 1
          %s2076 = smul.addr %s2075, 64
          %s2077 = scalar_lea.vmem [#allocation14], %s2076
          %2078 = dma.done %s2074, 1024
        $region88: #{tpu_custom_call.1} parent=83 // pred_fallthru
          _
      $region84: #{tpu_custom_call.1} parent=5 // pred_fallthru
        _
    $region6: #{tpu_custom_call.1} parent=1 // loop_footer
      %s26 = sadd.s32 1, %s22
    $region7: #{tpu_custom_call.1} parent=1 // loop_footer_branch
      %21 = sbr.rel target = $region3
    $region8: #{tpu_custom_call.1} parent=1 // loop_exit
      _
    %2079 = vsyncpa [#allocation3], 1
    %s2080 = scalar_lea.sflag [#allocation3], 1
    %2081 = vsyncpa %s2080, 1
    %2082 = vsyncpa [#allocation6], 1
    %s2083 = scalar_lea.sflag [#allocation6], 1
    %2084 = vsyncpa %s2083, 1
    %2085 = vsyncpa [#allocation9], 1
    %2086 = vsyncpa [#allocation12], 1
    %2087 = vsyncpa [#allocation4], 1
    %s2088 = scalar_lea.sflag [#allocation4], 1
    %2089 = vsyncpa %s2088, 1

</llo_original>
